<compile_context>
chip_gen: v7x
topology: tpu7x:2x2x1
jax: 0.10.0
libtpu: 0.0.40
codegen_flags: <defaults>
</compile_context>

<pallas_src>
import jax
import jax.numpy as jnp
from jax.experimental import pallas as pl
from jax.experimental.pallas import tpu as pltpu

# ---------------- model hyper-parameters -------------------------------------
IN_CHANNELS = 8
HIDDEN_CHANNELS = 16
OUT_CHANNELS = 4
HEADS = 2
HC4 = HIDDEN_CHANNELS // 4               # int(hidden_channels / 4) = 4
HC1 = HEADS * HIDDEN_CHANNELS            # conv1 concat width = 32
NUM_NODES = 16                           # nodes per graph
GRAPHS_PER_BLOCK = 8                     # 8 * 16 = 128 rows per grid step
BLOCK_NODES = GRAPHS_PER_BLOCK * NUM_NODES

# ---------------- parameter-slab layout (rows x 32 lanes, 8-row aligned) -----
PARAM_ROWS = 64
_R_W1 = 0        # [8, 32]   conv1 weight (in x heads*hidden)
_R_ASRC1 = 8     # [2, 32]   per-head att_src block rows (zeros outside own head)
_R_ADST1 = 10    # [1, 32]   att_dst concat of both heads
_R_B1 = 11       # [1, 32]   conv1 bias
_R_W2A = 16      # [16, 4]   first half of conv2 weight (head-0 rows)
_R_W2B = 32      # [16, 4]   second half of conv2 weight (head-1 rows)
_R_ASRC2 = 48    # [1, 4]
_R_ADST2 = 49    # [1, 4]
_R_B2 = 50       # [1, 4]
_R_B3 = 51       # [1, 4]    final linear bias
_R_W3 = 56       # [4, 4]    final linear weight


# ----------------------------- fused Pallas kernel ---------------------------
def _gat_fused_kernel(x_ref, adj_ref, p_ref, out_ref):
    x = x_ref[...]                           # [GN, IN]
    adj = adj_ref[...]                       # [GN, GN] block-diag over 8 graphs
    mask = adj > 0.5
    neg_big = jnp.float32(-1e30)

    # ---- parameters (single slab, DMA'd once thanks to constant index_map) --
    w1 = p_ref[_R_W1:_R_W1 + IN_CHANNELS, :]                       # [8, 32]
    asrc1 = p_ref[_R_ASRC1:_R_ASRC1 + HEADS, :]                    # [2, 32]
    adst1 = p_ref[_R_ADST1:_R_ADST1 + 1, :]                        # [1, 32]
    b1 = p_ref[_R_B1:_R_B1 + 1, :]                                 # [1, 32]
    w2a = p_ref[_R_W2A:_R_W2A + HIDDEN_CHANNELS, 0:HC4]            # [16, 4]
    w2b = p_ref[_R_W2B:_R_W2B + HIDDEN_CHANNELS, 0:HC4]            # [16, 4]
    asrc2 = p_ref[_R_ASRC2:_R_ASRC2 + 1, 0:HC4]                    # [1, 4]
    adst2 = p_ref[_R_ADST2:_R_ADST2 + 1, 0:HC4]                    # [1, 4]
    b2 = p_ref[_R_B2:_R_B2 + 1, 0:HC4]                             # [1, 4]
    b3 = p_ref[_R_B3:_R_B3 + 1, 0:OUT_CHANNELS]                    # [1, 4]
    w3 = p_ref[_R_W3:_R_W3 + HC4, 0:OUT_CHANNELS]                  # [4, 4]

    def masked_softmax(e):
        # e[i, j] = raw logit for edge j -> i (within this 128-node block)
        e = jnp.where(e > 0, e, 0.2 * e)                  # LeakyReLU(0.2)
        e = jnp.where(mask, e, neg_big)
        e = e - jnp.max(e, axis=-1, keepdims=True)
        p = jnp.exp(e)                                    # masked entries -> 0
        return p * pl.reciprocal(jnp.sum(p, axis=-1, keepdims=True), approx=True)

    # ---------------- conv1 (heads=2, concat=True) ---------------------------
    xp1 = jnp.dot(x, w1, preferred_element_type=jnp.float32)        # [GN, 32]
    # source logits for BOTH heads in one MXU push (block rows mask the heads)
    al_src1 = jax.lax.dot_general(asrc1, xp1, (((1,), (1,)), ((), ())),
                                  preferred_element_type=jnp.float32)  # [2, GN]

    head_out = []
    for h in range(HEADS):                               # statically unrolled
        sl = slice(h * HIDDEN_CHANNELS, (h + 1) * HIDDEN_CHANNELS)
        xh = xp1[:, sl]                                               # [GN, 16]
        al_dst = jnp.sum(xh * adst1[:, sl], axis=-1, keepdims=True)   # [GN, 1]
        alpha = masked_softmax(al_dst + al_src1[h:h + 1, :])          # [GN, GN]
        y = jnp.dot(alpha, xh, preferred_element_type=jnp.float32) + b1[:, sl]
        head_out.append(jnp.where(y > 0, y, jnp.exp(y) - 1.0))        # ELU

    # ---------------- conv2 (heads=1, concat=False -> identity) --------------
    # concat(head0, head1) @ w2 == head0 @ w2[:16] + head1 @ w2[16:]
    xp2 = (jnp.dot(head_out[0], w2a, preferred_element_type=jnp.float32)
           + jnp.dot(head_out[1], w2b, preferred_element_type=jnp.float32))  # [GN,4]

    al_dst2 = jnp.sum(xp2 * adst2, axis=-1, keepdims=True)                    # [GN,1]
    al_src2 = jax.lax.dot_general(asrc2, xp2, (((1,), (1,)), ((), ())),
                                  preferred_element_type=jnp.float32)         # [1,GN]
    alpha2 = masked_softmax(al_dst2 + al_src2)
    y2 = jnp.dot(alpha2, xp2, preferred_element_type=jnp.float32) + b2
    emb = jnp.where(y2 > 0, y2, jnp.exp(y2) - 1.0)                   # ELU -> embeddings

    # ---------------- lin + sigmoid ------------------------------------------
    z = jnp.dot(emb, w3, preferred_element_type=jnp.float32) + b3
    sig = pl.reciprocal(1.0 + jnp.exp(-z), approx=True)              # EUP sigmoid

    # single packed, lane-contiguous output block: lanes 0:4 = out, 4:8 = emb
    out_ref[...] = jnp.concatenate([sig, emb], axis=-1)


# ----------------------------- wrappers ---------------------------------------
@jax.jit
def gat_forward(x, adj_banded, param_slab):
    """Fused batched GAT forward.  x: [num_graphs*N, IN], adj_banded:
    [num_graphs*N, BLOCK_NODES] (block-diagonal band), param_slab: [64, 32]."""
    total_nodes = x.shape[0]
    gn = adj_banded.shape[1]
    num_blocks = total_nodes // gn
    packed = pl.pallas_call(
        _gat_fused_kernel,
        grid=(num_blocks,),
        in_specs=[
            pl.BlockSpec((gn, IN_CHANNELS), lambda b: (b, 0)),   # node features
            pl.BlockSpec((gn, gn), lambda b: (b, 0)),            # adjacency band
            pl.BlockSpec((PARAM_ROWS, HC1), lambda b: (0, 0)),   # params: DMA'd once
        ],
        out_specs=pl.BlockSpec((gn, OUT_CHANNELS + HC4), lambda b: (b, 0)),
        out_shape=jax.ShapeDtypeStruct((total_nodes, OUT_CHANNELS + HC4), jnp.float32),
        compiler_params=pltpu.CompilerParams(
            dimension_semantics=("parallel",)),                  # dual-TC on v7x
    )(x, adj_banded, param_slab)
    return packed[:, :OUT_CHANNELS], packed[:, OUT_CHANNELS:]


def build_banded_adj(edge_index, num_graphs):
    """Banded block-diagonal adjacency with self-loops, built ONCE per graph
    batch outside the jitted hot path.  Row r = incoming edges of global node r
    restricted to its own 128-node block (graphs never cross blocks).
    All graphs share the same topology here; different topologies only require
    building per-graph [N,N] blocks before assembling."""
    n = NUM_NODES
    a = jnp.zeros((n, n), jnp.float32)
    a = a.at[edge_index[1], edge_index[0]].set(1.0)       # adj[dst, src] = 1
    d = jnp.arange(n)
    a = a.at[d, d].set(1.0)                               # add_self_loops=True
    blk = jnp.kron(jnp.eye(GRAPHS_PER_BLOCK, dtype=jnp.float32), a)  # [128, 128]
    num_blocks = num_graphs // GRAPHS_PER_BLOCK
    return jnp.tile(blk, (num_blocks, 1))                 # [num_graphs*N, 128]


def pack_params(p):
    """Pack all small parameters into one [64, 32] slab (one DMA per call)."""
    slab = jnp.zeros((PARAM_ROWS, HC1), jnp.float32)
    slab = slab.at[_R_W1:_R_W1 + IN_CHANNELS, :].set(p["w1"])
    asrc_rows = jnp.zeros((HEADS, HC1), jnp.float32)
    for h in range(HEADS):
        sl = slice(h * HIDDEN_CHANNELS, (h + 1) * HIDDEN_CHANNELS)
        asrc_rows = asrc_rows.at[h, sl].set(p["att_src1"][0, sl])
    slab = slab.at[_R_ASRC1:_R_ASRC1 + HEADS, :].set(asrc_rows)
    slab = slab.at[_R_ADST1, :].set(p["att_dst1"][0])
    slab = slab.at[_R_B1, :].set(p["b1"][0])
    slab = slab.at[_R_W2A:_R_W2A + HIDDEN_CHANNELS, 0:HC4].set(p["w2"][:HIDDEN_CHANNELS])
    slab = slab.at[_R_W2B:_R_W2B + HIDDEN_CHANNELS, 0:HC4].set(p["w2"][HIDDEN_CHANNELS:])
    slab = slab.at[_R_ASRC2, 0:HC4].set(p["att_src2"][0])
    slab = slab.at[_R_ADST2, 0:HC4].set(p["att_dst2"][0])
    slab = slab.at[_R_B2, 0:HC4].set(p["b2"][0])
    slab = slab.at[_R_B3, 0:OUT_CHANNELS].set(p["b3"][0])
    slab = slab.at[_R_W3:_R_W3 + HC4, 0:OUT_CHANNELS].set(p["w3"])
    return slab


def init_params(key):
    ks = jax.random.split(key, 9)
    s = 0.1
    return {
        "w1": s * jax.random.normal(ks[0], (IN_CHANNELS, HC1), jnp.float32),
        "att_src1": s * jax.random.normal(ks[1], (1, HC1), jnp.float32),
        "att_dst1": s * jax.random.normal(ks[2], (1, HC1), jnp.float32),
        "b1": s * jax.random.normal(ks[3], (1, HC1), jnp.float32),
        "w2": s * jax.random.normal(ks[4], (HC1, HC4), jnp.float32),
        "att_src2": s * jax.random.normal(ks[5], (1, HC4), jnp.float32),
        "att_dst2": s * jax.random.normal(ks[6], (1, HC4), jnp.float32),
        "b2": jnp.zeros((1, HC4), jnp.float32),
        "w3": s * jax.random.normal(ks[7], (HC4, OUT_CHANNELS), jnp.float32),
        "b3": s * jax.random.normal(ks[8], (1, OUT_CHANNELS), jnp.float32),
    }


def reference_forward(x, adj_banded, p):
    """Pure-JAX (XLA) reference with the identical dense-mask formulation."""
    gn = adj_banded.shape[1]
    nb = adj_banded.shape[0] // gn
    xb = x.reshape(nb, gn, IN_CHANNELS)
    maskb = adj_banded.reshape(nb, gn, gn) > 0.5

    def attend(xh, a_src, a_dst):
        s = jnp.einsum("bnc,c->bn", xh, a_src)
        d = jnp.einsum("bnc,c->bn", xh, a_dst)
        e = d[:, :, None] + s[:, None, :]
        e = jnp.where(e > 0, e, 0.2 * e)
        e = jnp.where(maskb, e, -1e30)
        e = e - e.max(-1, keepdims=True)
        w = jnp.exp(e) * maskb
        alpha = w / w.sum(-1, keepdims=True)
        return jnp.einsum("bij,bjc->bic", alpha, xh)

    xp1 = xb @ p["w1"]
    heads = []
    for h in range(HEADS):
        sl = slice(h * HIDDEN_CHANNELS, (h + 1) * HIDDEN_CHANNELS)
        heads.append(attend(xp1[..., sl], p["att_src1"][0, sl], p["att_dst1"][0, sl]))
    y1 = jnp.concatenate(heads, axis=-1) + p["b1"][0]
    y1 = jnp.where(y1 > 0, y1, jnp.exp(y1) - 1.0)
    xp2 = y1 @ p["w2"]
    y2 = attend(xp2, p["att_src2"][0], p["att_dst2"][0]) + p["b2"][0]
    emb = jnp.where(y2 > 0, y2, jnp.exp(y2) - 1.0)
    z = emb @ p["w3"] + p["b3"][0]
    out = jax.nn.sigmoid(z)
    return out.reshape(-1, OUT_CHANNELS), emb.reshape(-1, HC4)


if __name__ == "__main__":
    key = jax.random.PRNGKey(0)
    k_x, k_e, k_p = jax.random.split(key, 3)

    NUM_GRAPHS = 32                                   # 4 grid blocks of 8 graphs
    assert NUM_GRAPHS % GRAPHS_PER_BLOCK == 0
    total_nodes = NUM_GRAPHS * NUM_NODES              # 512 rows total

    # node features for all graphs stacked: graph g occupies rows g*N:(g+1)*N
    x = jax.random.normal(k_x, (total_nodes, IN_CHANNELS), jnp.float32)

    # bidirectional ring topology (shared by every graph in this demo)
    idx = jnp.arange(NUM_NODES, dtype=jnp.int32)
    src = jnp.concatenate([idx, (idx + 1) % NUM_NODES])
    dst = jnp.concatenate([(idx + 1) % NUM_NODES, idx])
    edge_index = jnp.stack([src, dst], axis=0)        # [2, 2N]

    # edge_attr exists in the torch signature but is unused (no edge_dim in GATConv)
    edge_attr = jax.random.normal(k_e, (edge_index.shape[1], 3), jnp.float32)
    del edge_attr

    params = init_params(k_p)
    slab = pack_params(params)
    adj_banded = build_banded_adj(edge_index, NUM_GRAPHS)

    out, embeddings = gat_forward(x, adj_banded, slab)
    jax.block_until_ready((out, embeddings))

    assert out.shape == (total_nodes, OUT_CHANNELS)
    assert embeddings.shape == (total_nodes, HC4)
    assert bool(jnp.all(jnp.isfinite(out))) and bool(jnp.all(jnp.isfinite(embeddings)))

    # loose-tolerance check vs. pure-JAX reference (approx EUP reciprocal ~1e-4 rel err)
    out_ref, emb_ref = reference_forward(x, adj_banded, params)
    assert bool(jnp.allclose(out, out_ref, atol=2e-2, rtol=2e-2))
    assert bool(jnp.allclose(embeddings, emb_ref, atol=2e-2, rtol=2e-2))

    print("KERNEL_OK")
</pallas_src>

<mosaic_0001>
module attributes {stable_mosaic.version = 11 : i64} {
  func.func @_gat_fused_kernel(%arg0: i32, %arg1: memref<128x8xf32, #tpu.memory_space<vmem>>, %arg2: memref<128x128xf32, #tpu.memory_space<vmem>>, %arg3: memref<64x32xf32, #tpu.memory_space<vmem>>, %arg4: memref<128x8xf32, #tpu.memory_space<vmem>>) attributes {dimension_semantics = [#tpu.dimension_semantics<parallel>], iteration_bounds = array<i64: 4>, scalar_prefetch = 0 : i64, scratch_operands = 0 : i64, tpu.core_type = #tpu.core_type<tc>, window_params = [{transform_indices = @transform_0, window_bounds = array<i64: 128, 8>}, {transform_indices = @transform_1, window_bounds = array<i64: 128, 128>}, {pipeline_mode = #tpu.pipeline_mode<synchronous>, transform_indices = @transform_2, window_bounds = array<i64: 64, 32>}, {transform_indices = @transform_3, window_bounds = array<i64: 128, 8>}]} {
    %c0 = arith.constant 0 : index
    %c0_0 = arith.constant 0 : index
    %0 = vector.load %arg1[%c0, %c0_0] : memref<128x8xf32, #tpu.memory_space<vmem>>, vector<128x8xf32>
    %c0_1 = arith.constant 0 : index
    %c0_2 = arith.constant 0 : index
    %1 = vector.load %arg2[%c0_1, %c0_2] : memref<128x128xf32, #tpu.memory_space<vmem>>, vector<128x128xf32>
    %cst = arith.constant 5.000000e-01 : f32
    %2 = vector.broadcast %cst : f32 to vector<128x128xf32>
    %3 = arith.cmpf ogt, %1, %2 : vector<128x128xf32>
    %c0_3 = arith.constant 0 : index
    %c0_4 = arith.constant 0 : index
    %4 = vector.load %arg3[%c0_3, %c0_4] : memref<64x32xf32, #tpu.memory_space<vmem>>, vector<8x32xf32>
    %c8 = arith.constant 8 : index
    %c0_5 = arith.constant 0 : index
    %5 = vector.load %arg3[%c8, %c0_5] : memref<64x32xf32, #tpu.memory_space<vmem>>, vector<2x32xf32>
    %c10 = arith.constant 10 : index
    %c0_6 = arith.constant 0 : index
    %6 = vector.load %arg3[%c10, %c0_6] : memref<64x32xf32, #tpu.memory_space<vmem>>, vector<1x32xf32>
    %c11 = arith.constant 11 : index
    %c0_7 = arith.constant 0 : index
    %7 = vector.load %arg3[%c11, %c0_7] : memref<64x32xf32, #tpu.memory_space<vmem>>, vector<1x32xf32>
    %c16 = arith.constant 16 : index
    %c0_8 = arith.constant 0 : index
    %8 = vector.load %arg3[%c16, %c0_8] : memref<64x32xf32, #tpu.memory_space<vmem>>, vector<16x4xf32>
    %c32 = arith.constant 32 : index
    %c0_9 = arith.constant 0 : index
    %9 = vector.load %arg3[%c32, %c0_9] : memref<64x32xf32, #tpu.memory_space<vmem>>, vector<16x4xf32>
    %c48 = arith.constant 48 : index
    %c0_10 = arith.constant 0 : index
    %10 = vector.load %arg3[%c48, %c0_10] : memref<64x32xf32, #tpu.memory_space<vmem>>, vector<1x4xf32>
    %c49 = arith.constant 49 : index
    %c0_11 = arith.constant 0 : index
    %11 = vector.load %arg3[%c49, %c0_11] : memref<64x32xf32, #tpu.memory_space<vmem>>, vector<1x4xf32>
    %c50 = arith.constant 50 : index
    %c0_12 = arith.constant 0 : index
    %12 = vector.load %arg3[%c50, %c0_12] : memref<64x32xf32, #tpu.memory_space<vmem>>, vector<1x4xf32>
    %c51 = arith.constant 51 : index
    %c0_13 = arith.constant 0 : index
    %13 = vector.load %arg3[%c51, %c0_13] : memref<64x32xf32, #tpu.memory_space<vmem>>, vector<1x4xf32>
    %c56 = arith.constant 56 : index
    %c0_14 = arith.constant 0 : index
    %14 = vector.load %arg3[%c56, %c0_14] : memref<64x32xf32, #tpu.memory_space<vmem>>, vector<4x4xf32>
    %cst_15 = arith.constant dense<0.000000e+00> : vector<128x32xf32>
    %15 = tpu.matmul %0, %4, %cst_15 {dimension_numbers = #tpu.dot_dimension_numbers<[1], [0], [0], [1], [0, 0, 1, 1], [], []>} : vector<128x8xf32>, vector<8x32xf32>, vector<128x32xf32> -> vector<128x32xf32>
    %cst_16 = arith.constant dense<0.000000e+00> : vector<2x128xf32>
    %16 = tpu.matmul %5, %15, %cst_16 {dimension_numbers = #tpu.dot_dimension_numbers<[1], [1], [0], [0], [0, 0, 1, 0], [], []>} : vector<2x32xf32>, vector<128x32xf32>, vector<2x128xf32> -> vector<2x128xf32>
    %17 = vector.extract_strided_slice %15 {offsets = [0, 0], sizes = [128, 16], strides = [1, 1]} : vector<128x32xf32> to vector<128x16xf32>
    %18 = vector.extract_strided_slice %6 {offsets = [0, 0], sizes = [1, 16], strides = [1, 1]} : vector<1x32xf32> to vector<1x16xf32>
    %19 = vector.broadcast %18 : vector<1x16xf32> to vector<128x16xf32>
    %20 = arith.mulf %17, %19 : vector<128x16xf32>
    %cst_17 = arith.constant dense<0.000000e+00> : vector<128xf32>
    %21 = vector.multi_reduction <add>, %20, %cst_17 [1] : vector<128x16xf32> to vector<128xf32>
    %22 = vector.shape_cast %21 : vector<128xf32> to vector<128x1xf32>
    %23 = vector.extract_strided_slice %16 {offsets = [0, 0], sizes = [1, 128], strides = [1, 1]} : vector<2x128xf32> to vector<1x128xf32>
    %24 = vector.broadcast %22 : vector<128x1xf32> to vector<128x128xf32>
    %25 = vector.broadcast %23 : vector<1x128xf32> to vector<128x128xf32>
    %26 = arith.addf %24, %25 : vector<128x128xf32>
    %cst_18 = arith.constant 0.000000e+00 : f32
    %27 = vector.broadcast %cst_18 : f32 to vector<128x128xf32>
    %28 = arith.cmpf ogt, %26, %27 : vector<128x128xf32>
    %cst_19 = arith.constant 2.000000e-01 : f32
    %29 = vector.broadcast %cst_19 : f32 to vector<128x128xf32>
    %30 = arith.mulf %29, %26 : vector<128x128xf32>
    %31 = arith.select %28, %26, %30 : vector<128x128xi1>, vector<128x128xf32>
    %cst_20 = arith.constant -1.000000e+30 : f32
    %32 = vector.broadcast %cst_20 : f32 to vector<128x128xf32>
    %33 = arith.select %3, %31, %32 : vector<128x128xi1>, vector<128x128xf32>
    %cst_21 = arith.constant dense<0xFF800000> : vector<128xf32>
    %34 = vector.multi_reduction <maximumf>, %33, %cst_21 [1] : vector<128x128xf32> to vector<128xf32>
    %35 = vector.shape_cast %34 : vector<128xf32> to vector<128x1xf32>
    %36 = vector.broadcast %35 : vector<128x1xf32> to vector<128x128xf32>
    %37 = arith.subf %33, %36 : vector<128x128xf32>
    %38 = math.exp %37 : vector<128x128xf32>
    %cst_22 = arith.constant dense<0.000000e+00> : vector<128xf32>
    %39 = vector.multi_reduction <add>, %38, %cst_22 [1] : vector<128x128xf32> to vector<128xf32>
    %40 = vector.shape_cast %39 : vector<128xf32> to vector<128x1xf32>
    %41 = tpu.reciprocal %40 {approx = true} : vector<128x1xf32> -> vector<128x1xf32>
    %42 = vector.broadcast %41 : vector<128x1xf32> to vector<128x128xf32>
    %43 = arith.mulf %38, %42 : vector<128x128xf32>
    %cst_23 = arith.constant dense<0.000000e+00> : vector<128x16xf32>
    %44 = tpu.matmul %43, %17, %cst_23 {dimension_numbers = #tpu.dot_dimension_numbers<[1], [0], [0], [1], [0, 0, 1, 1], [], []>} : vector<128x128xf32>, vector<128x16xf32>, vector<128x16xf32> -> vector<128x16xf32>
    %45 = vector.extract_strided_slice %7 {offsets = [0, 0], sizes = [1, 16], strides = [1, 1]} : vector<1x32xf32> to vector<1x16xf32>
    %46 = vector.broadcast %45 : vector<1x16xf32> to vector<128x16xf32>
    %47 = arith.addf %44, %46 : vector<128x16xf32>
    %cst_24 = arith.constant 0.000000e+00 : f32
    %48 = vector.broadcast %cst_24 : f32 to vector<128x16xf32>
    %49 = arith.cmpf ogt, %47, %48 : vector<128x16xf32>
    %50 = math.exp %47 : vector<128x16xf32>
    %cst_25 = arith.constant 1.000000e+00 : f32
    %51 = vector.broadcast %cst_25 : f32 to vector<128x16xf32>
    %52 = arith.subf %50, %51 : vector<128x16xf32>
    %53 = arith.select %49, %47, %52 : vector<128x16xi1>, vector<128x16xf32>
    %54 = vector.extract_strided_slice %15 {offsets = [0, 16], sizes = [128, 16], strides = [1, 1]} : vector<128x32xf32> to vector<128x16xf32>
    %55 = vector.extract_strided_slice %6 {offsets = [0, 16], sizes = [1, 16], strides = [1, 1]} : vector<1x32xf32> to vector<1x16xf32>
    %56 = vector.broadcast %55 : vector<1x16xf32> to vector<128x16xf32>
    %57 = arith.mulf %54, %56 : vector<128x16xf32>
    %cst_26 = arith.constant dense<0.000000e+00> : vector<128xf32>
    %58 = vector.multi_reduction <add>, %57, %cst_26 [1] : vector<128x16xf32> to vector<128xf32>
    %59 = vector.shape_cast %58 : vector<128xf32> to vector<128x1xf32>
    %60 = vector.extract_strided_slice %16 {offsets = [1, 0], sizes = [1, 128], strides = [1, 1]} : vector<2x128xf32> to vector<1x128xf32>
    %61 = vector.broadcast %59 : vector<128x1xf32> to vector<128x128xf32>
    %62 = vector.broadcast %60 : vector<1x128xf32> to vector<128x128xf32>
    %63 = arith.addf %61, %62 : vector<128x128xf32>
    %cst_27 = arith.constant 0.000000e+00 : f32
    %64 = vector.broadcast %cst_27 : f32 to vector<128x128xf32>
    %65 = arith.cmpf ogt, %63, %64 : vector<128x128xf32>
    %cst_28 = arith.constant 2.000000e-01 : f32
    %66 = vector.broadcast %cst_28 : f32 to vector<128x128xf32>
    %67 = arith.mulf %66, %63 : vector<128x128xf32>
    %68 = arith.select %65, %63, %67 : vector<128x128xi1>, vector<128x128xf32>
    %cst_29 = arith.constant -1.000000e+30 : f32
    %69 = vector.broadcast %cst_29 : f32 to vector<128x128xf32>
    %70 = arith.select %3, %68, %69 : vector<128x128xi1>, vector<128x128xf32>
    %cst_30 = arith.constant dense<0xFF800000> : vector<128xf32>
    %71 = vector.multi_reduction <maximumf>, %70, %cst_30 [1] : vector<128x128xf32> to vector<128xf32>
    %72 = vector.shape_cast %71 : vector<128xf32> to vector<128x1xf32>
    %73 = vector.broadcast %72 : vector<128x1xf32> to vector<128x128xf32>
    %74 = arith.subf %70, %73 : vector<128x128xf32>
    %75 = math.exp %74 : vector<128x128xf32>
    %cst_31 = arith.constant dense<0.000000e+00> : vector<128xf32>
    %76 = vector.multi_reduction <add>, %75, %cst_31 [1] : vector<128x128xf32> to vector<128xf32>
    %77 = vector.shape_cast %76 : vector<128xf32> to vector<128x1xf32>
    %78 = tpu.reciprocal %77 {approx = true} : vector<128x1xf32> -> vector<128x1xf32>
    %79 = vector.broadcast %78 : vector<128x1xf32> to vector<128x128xf32>
    %80 = arith.mulf %75, %79 : vector<128x128xf32>
    %cst_32 = arith.constant dense<0.000000e+00> : vector<128x16xf32>
    %81 = tpu.matmul %80, %54, %cst_32 {dimension_numbers = #tpu.dot_dimension_numbers<[1], [0], [0], [1], [0, 0, 1, 1], [], []>} : vector<128x128xf32>, vector<128x16xf32>, vector<128x16xf32> -> vector<128x16xf32>
    %82 = vector.extract_strided_slice %7 {offsets = [0, 16], sizes = [1, 16], strides = [1, 1]} : vector<1x32xf32> to vector<1x16xf32>
    %83 = vector.broadcast %82 : vector<1x16xf32> to vector<128x16xf32>
    %84 = arith.addf %81, %83 : vector<128x16xf32>
    %cst_33 = arith.constant 0.000000e+00 : f32
    %85 = vector.broadcast %cst_33 : f32 to vector<128x16xf32>
    %86 = arith.cmpf ogt, %84, %85 : vector<128x16xf32>
    %87 = math.exp %84 : vector<128x16xf32>
    %cst_34 = arith.constant 1.000000e+00 : f32
    %88 = vector.broadcast %cst_34 : f32 to vector<128x16xf32>
    %89 = arith.subf %87, %88 : vector<128x16xf32>
    %90 = arith.select %86, %84, %89 : vector<128x16xi1>, vector<128x16xf32>
    %cst_35 = arith.constant dense<0.000000e+00> : vector<128x4xf32>
    %91 = tpu.matmul %53, %8, %cst_35 {dimension_numbers = #tpu.dot_dimension_numbers<[1], [0], [0], [1], [0, 0, 1, 1], [], []>} : vector<128x16xf32>, vector<16x4xf32>, vector<128x4xf32> -> vector<128x4xf32>
    %cst_36 = arith.constant dense<0.000000e+00> : vector<128x4xf32>
    %92 = tpu.matmul %90, %9, %cst_36 {dimension_numbers = #tpu.dot_dimension_numbers<[1], [0], [0], [1], [0, 0, 1, 1], [], []>} : vector<128x16xf32>, vector<16x4xf32>, vector<128x4xf32> -> vector<128x4xf32>
    %93 = arith.addf %91, %92 : vector<128x4xf32>
    %94 = vector.broadcast %11 : vector<1x4xf32> to vector<128x4xf32>
    %95 = arith.mulf %93, %94 : vector<128x4xf32>
    %cst_37 = arith.constant dense<0.000000e+00> : vector<128xf32>
    %96 = vector.multi_reduction <add>, %95, %cst_37 [1] : vector<128x4xf32> to vector<128xf32>
    %97 = vector.shape_cast %96 : vector<128xf32> to vector<128x1xf32>
    %cst_38 = arith.constant dense<0.000000e+00> : vector<1x128xf32>
    %98 = tpu.matmul %10, %93, %cst_38 {dimension_numbers = #tpu.dot_dimension_numbers<[1], [1], [0], [0], [0, 0, 1, 0], [], []>} : vector<1x4xf32>, vector<128x4xf32>, vector<1x128xf32> -> vector<1x128xf32>
    %99 = vector.broadcast %97 : vector<128x1xf32> to vector<128x128xf32>
    %100 = vector.broadcast %98 : vector<1x128xf32> to vector<128x128xf32>
    %101 = arith.addf %99, %100 : vector<128x128xf32>
    %cst_39 = arith.constant 0.000000e+00 : f32
    %102 = vector.broadcast %cst_39 : f32 to vector<128x128xf32>
    %103 = arith.cmpf ogt, %101, %102 : vector<128x128xf32>
    %cst_40 = arith.constant 2.000000e-01 : f32
    %104 = vector.broadcast %cst_40 : f32 to vector<128x128xf32>
    %105 = arith.mulf %104, %101 : vector<128x128xf32>
    %106 = arith.select %103, %101, %105 : vector<128x128xi1>, vector<128x128xf32>
    %cst_41 = arith.constant -1.000000e+30 : f32
    %107 = vector.broadcast %cst_41 : f32 to vector<128x128xf32>
    %108 = arith.select %3, %106, %107 : vector<128x128xi1>, vector<128x128xf32>
    %cst_42 = arith.constant dense<0xFF800000> : vector<128xf32>
    %109 = vector.multi_reduction <maximumf>, %108, %cst_42 [1] : vector<128x128xf32> to vector<128xf32>
    %110 = vector.shape_cast %109 : vector<128xf32> to vector<128x1xf32>
    %111 = vector.broadcast %110 : vector<128x1xf32> to vector<128x128xf32>
    %112 = arith.subf %108, %111 : vector<128x128xf32>
    %113 = math.exp %112 : vector<128x128xf32>
    %cst_43 = arith.constant dense<0.000000e+00> : vector<128xf32>
    %114 = vector.multi_reduction <add>, %113, %cst_43 [1] : vector<128x128xf32> to vector<128xf32>
    %115 = vector.shape_cast %114 : vector<128xf32> to vector<128x1xf32>
    %116 = tpu.reciprocal %115 {approx = true} : vector<128x1xf32> -> vector<128x1xf32>
    %117 = vector.broadcast %116 : vector<128x1xf32> to vector<128x128xf32>
    %118 = arith.mulf %113, %117 : vector<128x128xf32>
    %cst_44 = arith.constant dense<0.000000e+00> : vector<128x4xf32>
    %119 = tpu.matmul %118, %93, %cst_44 {dimension_numbers = #tpu.dot_dimension_numbers<[1], [0], [0], [1], [0, 0, 1, 1], [], []>} : vector<128x128xf32>, vector<128x4xf32>, vector<128x4xf32> -> vector<128x4xf32>
    %120 = vector.broadcast %12 : vector<1x4xf32> to vector<128x4xf32>
    %121 = arith.addf %119, %120 : vector<128x4xf32>
    %cst_45 = arith.constant 0.000000e+00 : f32
    %122 = vector.broadcast %cst_45 : f32 to vector<128x4xf32>
    %123 = arith.cmpf ogt, %121, %122 : vector<128x4xf32>
    %124 = math.exp %121 : vector<128x4xf32>
    %cst_46 = arith.constant 1.000000e+00 : f32
    %125 = vector.broadcast %cst_46 : f32 to vector<128x4xf32>
    %126 = arith.subf %124, %125 : vector<128x4xf32>
    %127 = arith.select %123, %121, %126 : vector<128x4xi1>, vector<128x4xf32>
    %cst_47 = arith.constant dense<0.000000e+00> : vector<128x4xf32>
    %128 = tpu.matmul %127, %14, %cst_47 {dimension_numbers = #tpu.dot_dimension_numbers<[1], [0], [0], [1], [0, 0, 1, 1], [], []>} : vector<128x4xf32>, vector<4x4xf32>, vector<128x4xf32> -> vector<128x4xf32>
    %129 = vector.broadcast %13 : vector<1x4xf32> to vector<128x4xf32>
    %130 = arith.addf %128, %129 : vector<128x4xf32>
    %cst_48 = arith.constant 0.000000e+00 : f32
    %131 = vector.broadcast %cst_48 : f32 to vector<128x4xf32>
    %132 = arith.subf %131, %130 : vector<128x4xf32>
    %133 = math.exp %132 : vector<128x4xf32>
    %cst_49 = arith.constant 1.000000e+00 : f32
    %134 = vector.broadcast %cst_49 : f32 to vector<128x4xf32>
    %135 = arith.addf %134, %133 : vector<128x4xf32>
    %136 = tpu.reciprocal %135 {approx = true} : vector<128x4xf32> -> vector<128x4xf32>
    %137 = tpu.concatenate %136, %127 in 1 : vector<128x4xf32>, vector<128x4xf32> -> vector<128x8xf32>
    %c0_50 = arith.constant 0 : index
    %c0_51 = arith.constant 0 : index
    %138 = vector.load %arg4[%c0_50, %c0_51] : memref<128x8xf32, #tpu.memory_space<vmem>>, vector<128x8xf32>
    tpu.vector_store %arg4[%c0_50, %c0_51], %137 {strides = array<i32>} : memref<128x8xf32, #tpu.memory_space<vmem>>, vector<128x8xf32>,
    return
  }
  func.func @transform_0(%arg0: i32) -> (i32, i32) {
    %c0_i32 = arith.constant 0 : i32
    %c0_i32_0 = arith.constant 0 : i32
    return %arg0, %c0_i32 : i32, i32
  }
  func.func @transform_1(%arg0: i32) -> (i32, i32) {
    %c0_i32 = arith.constant 0 : i32
    %c0_i32_0 = arith.constant 0 : i32
    return %arg0, %c0_i32 : i32, i32
  }
  func.func @transform_2(%arg0: i32) -> (i32, i32) {
    %c0_i32 = arith.constant 0 : i32
    %c0_i32_0 = arith.constant 0 : i32
    %c0_i32_1 = arith.constant 0 : i32
    return %c0_i32, %c0_i32_0 : i32, i32
  }
  func.func @transform_3(%arg0: i32) -> (i32, i32) {
    %c0_i32 = arith.constant 0 : i32
    %c0_i32_0 = arith.constant 0 : i32
    return %arg0, %c0_i32 : i32, i32
  }
}

</mosaic_0001>

<llo_original>
// kernel: gat_forward.1
$region0: #{gat_forward.1}
  #allocation0 [shape = 'u32[]', space=smem, size = 0x4, offset = 0x4, fixed_abs, tag = 'smem constant byte address 0x4 - core index']
  #allocation1 [shape = 'u32[144,128]{1,0:T(1,128)}', space=vmem, size = 0x12000, scoped, tag = 'internal scratch']
  %s0 = inlined_call_operand.vmem [shape: f32[512,8], index: 0, kind: input, shape index: {}]
  %s1 = inlined_call_operand.vmem [shape: f32[512,128], index: 1, kind: input, shape index: {}]
  %s2 = inlined_call_operand.vmem [shape: f32[64,32], index: 2, kind: input, shape index: {}]
  %s3 = inlined_call_operand.vmem [shape: f32[512,8], index: 3, kind: output, shape index: {}]
  %s4 = sld [smem:[#allocation0]]
  $region45: #{gat_forward.1} parent=0
    _
  %s6 = ssub.s32 1, %s4
  %s7 = scalar_select 0, %s6, %s4
  loop: start=0, step=1, limit=6
  $region2: #{gat_forward.1} parent=0 // loop_pre_header
    _
  $region3: #{gat_forward.1} parent=0 // loop_header
    %s9 = sphi 0, %s13
    %p10 = scmp.ge.s32.totalorder %s9, 6
    %s19 = sphi 0, %s21
    %s22 = sphi 0, %s19
    %s23 = sphi 0, %s22
    %s39 = sphi 0, %s23
    %s45 = sphi 0, %s47
    %s48 = sphi 0, %s45
    %s49 = sphi 0, %s48
    %s65 = sphi 0, %s49
    %s69 = sphi 0, %s69
    %s71 = sphi 0, %s69
    %s72 = sphi 0, %s71
    %s86 = sphi 0, %s72
    %s92 = sphi 0, %s94
    %s95 = sphi 0, %s92
    %s96 = sphi 0, %s95
    %s112 = sphi 0, %s96
  $region4: #{gat_forward.1} parent=0 // loop_header_branch
    %12 = sbr.rel (%p10) target = $region8
  $region5: #{gat_forward.1} parent=0 // loop_body
    %s14 = ssub.s32 %s9, 1
    %s15 = ssub.s32 %s9, 2
    %s16 = sadd.s32 %s9, 1
    %s17 = ssub.s32 %s9, %s16
    %p18 = scmp.eq.s32.totalorder %s17, 0
    %s20 = sadd.s32 %s19, 1
    %s21 = scalar_select %p18, %s19, %s20
    %p24 = pneg %p18
    %p25 = scmp.eq.s32.totalorder %s9, 3
    %p26 = por %p24, %p25
    %p27 = scmp.ne.s32.totalorder %s19, %s22
    %p28 = scmp.eq.s32.totalorder %s9, 0
    %p29 = por %p27, %p28
    %p30 = scmp.ne.s32.totalorder %s19, %s22
    %p31 = scmp.eq.s32.totalorder %s14, 3
    %p32 = por %p30, %p31
    %p33 = scmp.ne.s32.totalorder %s22, %s23
    %p34 = scmp.eq.s32.totalorder %s14, 0
    %p35 = por %p33, %p34
    %p36 = scmp.ne.s32.totalorder %s22, %s23
    %p37 = scmp.eq.s32.totalorder %s15, 3
    %p38 = por %p36, %p37
    %p40 = scmp.ne.s32.totalorder %s23, %s39
    %p41 = scmp.eq.s32.totalorder %s15, 0
    %p42 = por %p40, %p41
    %s43 = ssub.s32 %s9, %s16
    %p44 = scmp.eq.s32.totalorder %s43, 0
    %s46 = sadd.s32 %s45, 1
    %s47 = scalar_select %p44, %s45, %s46
    %p50 = pneg %p44
    %p51 = scmp.eq.s32.totalorder %s9, 3
    %p52 = por %p50, %p51
    %p53 = scmp.ne.s32.totalorder %s45, %s48
    %p54 = scmp.eq.s32.totalorder %s9, 0
    %p55 = por %p53, %p54
    %p56 = scmp.ne.s32.totalorder %s45, %s48
    %p57 = scmp.eq.s32.totalorder %s14, 3
    %p58 = por %p56, %p57
    %p59 = scmp.ne.s32.totalorder %s48, %s49
    %p60 = scmp.eq.s32.totalorder %s14, 0
    %p61 = por %p59, %p60
    %p62 = scmp.ne.s32.totalorder %s48, %s49
    %p63 = scmp.eq.s32.totalorder %s15, 3
    %p64 = por %p62, %p63
    %p66 = scmp.ne.s32.totalorder %s49, %s65
    %p67 = scmp.eq.s32.totalorder %s15, 0
    %p68 = por %p66, %p67
    %s70 = sadd.s32 %s69, 1
    %p73 = scmp.eq.s32.totalorder %s9, 3
    %p74 = scmp.ne.s32.totalorder %s69, %s71
    %p75 = scmp.eq.s32.totalorder %s9, 0
    %p76 = por %p74, %p75
    %p77 = scmp.ne.s32.totalorder %s69, %s71
    %p78 = scmp.eq.s32.totalorder %s14, 3
    %p79 = por %p77, %p78
    %p80 = scmp.ne.s32.totalorder %s71, %s72
    %p81 = scmp.eq.s32.totalorder %s14, 0
    %p82 = por %p80, %p81
    %p83 = scmp.ne.s32.totalorder %s71, %s72
    %p84 = scmp.eq.s32.totalorder %s15, 3
    %p85 = por %p83, %p84
    %p87 = scmp.ne.s32.totalorder %s72, %s86
    %p88 = scmp.eq.s32.totalorder %s15, 0
    %p89 = por %p87, %p88
    %s90 = ssub.s32 %s9, %s16
    %p91 = scmp.eq.s32.totalorder %s90, 0
    %s93 = sadd.s32 %s92, 1
    %s94 = scalar_select %p91, %s92, %s93
    %p97 = pneg %p91
    %p98 = scmp.eq.s32.totalorder %s9, 3
    %p99 = por %p97, %p98
    %p100 = scmp.ne.s32.totalorder %s92, %s95
    %p101 = scmp.eq.s32.totalorder %s9, 0
    %p102 = por %p100, %p101
    %p103 = scmp.ne.s32.totalorder %s92, %s95
    %p104 = scmp.eq.s32.totalorder %s14, 3
    %p105 = por %p103, %p104
    %p106 = scmp.ne.s32.totalorder %s95, %s96
    %p107 = scmp.eq.s32.totalorder %s14, 0
    %p108 = por %p106, %p107
    %p109 = scmp.ne.s32.totalorder %s95, %s96
    %p110 = scmp.eq.s32.totalorder %s15, 3
    %p111 = por %p109, %p110
    %p113 = scmp.ne.s32.totalorder %s96, %s112
    %p114 = scmp.eq.s32.totalorder %s15, 0
    %p115 = por %p113, %p114
    %p116 = scmp.le.s32.totalorder 1, %s9
    %p117 = scmp.lt.s32.totalorder %s9, 5
    %p118 = pnand %p116, %p117
    %p119 = pneg %p118
    // Predicated region
    $region9: #{gat_forward.1} parent=5 // pred_check
      _
    $region10: #{gat_forward.1} parent=5 // pred_check_branch
      %121 = sbr.rel (%p118) target = $region12
    $region11: #{gat_forward.1} parent=5 // pred_region
      %s122 = ssub.s32 %s9, 1
      // Predicated region
      $region13: #{gat_forward.1} parent=11 // pred_check
        %p123 = pneg %p82
      $region14: #{gat_forward.1} parent=11 // pred_check_branch
        %125 = sbr.rel (%p123) target = $region16
      $region15: #{gat_forward.1} parent=11 // pred_region
        _
      $region16: #{gat_forward.1} parent=11 // pred_fallthru
        _
    $region12: #{gat_forward.1} parent=5 // pred_fallthru
      _
    %p126 = scmp.lt.s32.totalorder %s9, 4
    // Predicated region
    $region17: #{gat_forward.1} parent=5 // pred_check
      %p127 = pneg %p126
    $region18: #{gat_forward.1} parent=5 // pred_check_branch
      %129 = sbr.rel (%p127) target = $region20
    $region19: #{gat_forward.1} parent=5 // pred_region
      // Predicated region
      $region21: #{gat_forward.1} parent=19 // pred_check
        %p130 = pneg %p29
      $region22: #{gat_forward.1} parent=19 // pred_check_branch
        %132 = sbr.rel (%p130) target = $region24
      $region23: #{gat_forward.1} parent=19 // pred_region
        %s133 = smul.u32 16, %s9
        %p134 = scmp.lt.s32.totalorder %s133, 63
        %s135 = scalar_select %p134, %s133, 63
        %s136 = smul.addr %s135, 8
        %s137 = scalar_lea.vmem %s0, %s136
        %s138 = smul.u32 16, %s9
      $region24: #{gat_forward.1} parent=19 // pred_fallthru
        _
      // Predicated region
      $region25: #{gat_forward.1} parent=19 // pred_check
        %p139 = pneg %p55
      $region26: #{gat_forward.1} parent=19 // pred_check_branch
        %141 = sbr.rel (%p139) target = $region28
      $region27: #{gat_forward.1} parent=19 // pred_region
        %s142 = smul.u32 16, %s9
        %p143 = scmp.lt.s32.totalorder %s142, 63
        %s144 = scalar_select %p143, %s142, 63
        %s145 = smul.addr %s144, 8
        %s146 = scalar_lea.vmem %s1, %s145
        %s147 = smul.u32 16, %s9
      $region28: #{gat_forward.1} parent=19 // pred_fallthru
        _
    $region20: #{gat_forward.1} parent=5 // pred_fallthru
      _
    %p148 = scmp.le.s32.totalorder 1, %s9
    %p149 = scmp.lt.s32.totalorder %s9, 5
    %p150 = pnand %p148, %p149
    %p151 = pneg %p150
    // Predicated region
    $region29: #{gat_forward.1} parent=5 // pred_check
      _
    $region30: #{gat_forward.1} parent=5 // pred_check_branch
      %153 = sbr.rel (%p150) target = $region32
    $region31: #{gat_forward.1} parent=5 // pred_region
      %s154 = ssub.s32 %s9, 1
      %s155 = smul.u32 16, %s14
      %p156 = scmp.lt.s32.totalorder %s155, 63
      %s157 = scalar_select %p156, %s155, 63
      %s158 = smul.addr %s157, 8
      %s159 = scalar_lea.vmem %s0, %s158
      %p160 = pneg %p35
      %p161 = pneg %p32
      %s162 = smul.u32 16, %s14
      %p163 = scmp.lt.s32.totalorder %s162, 63
      %s164 = scalar_select %p163, %s162, 63
      %s165 = smul.addr %s164, 8
      %s166 = scalar_lea.vmem %s1, %s165
      %p167 = pneg %p61
      %p168 = pneg %p58
      %p169 = pneg %p82
      %p170 = pneg %p79
      %p171 = pneg %p108
      %p172 = pneg %p105
      %s173 = smul.u32 16, %s14
      %p174 = scmp.lt.s32.totalorder %s173, 63
      %s175 = scalar_select %p174, %s173, 63
      %s176 = smul.addr %s175, 8
      %s177 = scalar_lea.vmem %s3, %s176
      %s178 = smul.u32 16, %s14
      %p179 = scmp.lt.s32.totalorder %s178, 63
      %s180 = scalar_select %p179, %s178, 63
      %s181 = smul.addr %s180, 8
      %s182 = scalar_lea.vmem %s0, %s181
      %s183 = smul.u32 16, %s14
      %s184 = smul.u32 16, %s14
      %p185 = scmp.lt.s32.totalorder %s184, 63
      %s186 = scalar_select %p185, %s184, 63
      %s187 = smul.addr %s186, 8
      %s188 = scalar_lea.vmem %s1, %s187
      %s189 = smul.u32 16, %s14
      %s190 = smul.u32 16, %s14
      %p191 = scmp.lt.s32.totalorder %s190, 63
      %s192 = scalar_select %p191, %s190, 63
      %s193 = smul.addr %s192, 8
      %s194 = scalar_lea.vmem %s3, %s193
      %s195 = smul.u32 16, %s14
      %v196 = vld [vmem:[%s182] sm:$0xff]
      %v197 = vld [vmem:[%s182 + $0x8] sm:$0xff]
      %v198 = vld [vmem:[%s182 + $0x10] sm:$0xff]
      %v199 = vld [vmem:[%s182 + $0x18] sm:$0xff]
      %v200 = vld [vmem:[%s182 + $0x20] sm:$0xff]
      %v201 = vld [vmem:[%s182 + $0x28] sm:$0xff]
      %v202 = vld [vmem:[%s182 + $0x30] sm:$0xff]
      %v203 = vld [vmem:[%s182 + $0x38] sm:$0xff]
      %v204 = vld [vmem:[%s182 + $0x40] sm:$0xff]
      %v205 = vld [vmem:[%s182 + $0x48] sm:$0xff]
      %v206 = vld [vmem:[%s182 + $0x50] sm:$0xff]
      %v207 = vld [vmem:[%s182 + $0x58] sm:$0xff]
      %v208 = vld [vmem:[%s182 + $0x60] sm:$0xff]
      %v209 = vld [vmem:[%s182 + $0x68] sm:$0xff]
      %v210 = vld [vmem:[%s182 + $0x70] sm:$0xff]
      %v211 = vld [vmem:[%s182 + $0x78] sm:$0xff]
      %v212 = vld [vmem:[%s188] sm:$0xff]
      %v213 = vld [vmem:[%s188 + $0x8] sm:$0xff]
      %v214 = vld [vmem:[%s188 + $0x10] sm:$0xff]
      %v215 = vld [vmem:[%s188 + $0x18] sm:$0xff]
      %v216 = vld [vmem:[%s188 + $0x20] sm:$0xff]
      %v217 = vld [vmem:[%s188 + $0x28] sm:$0xff]
      %v218 = vld [vmem:[%s188 + $0x30] sm:$0xff]
      %v219 = vld [vmem:[%s188 + $0x38] sm:$0xff]
      %v220 = vld [vmem:[%s188 + $0x40] sm:$0xff]
      %v221 = vld [vmem:[%s188 + $0x48] sm:$0xff]
      %v222 = vld [vmem:[%s188 + $0x50] sm:$0xff]
      %v223 = vld [vmem:[%s188 + $0x58] sm:$0xff]
      %v224 = vld [vmem:[%s188 + $0x60] sm:$0xff]
      %v225 = vld [vmem:[%s188 + $0x68] sm:$0xff]
      %v226 = vld [vmem:[%s188 + $0x70] sm:$0xff]
      %v227 = vld [vmem:[%s188 + $0x78] sm:$0xff]
      %vm228 = vcmp.gt.f32.partialorder %v212, 0.5
      %vm229 = vcmp.gt.f32.partialorder %v213, 0.5
      %vm230 = vcmp.gt.f32.partialorder %v214, 0.5
      %vm231 = vcmp.gt.f32.partialorder %v215, 0.5
      %vm232 = vcmp.gt.f32.partialorder %v216, 0.5
      %vm233 = vcmp.gt.f32.partialorder %v217, 0.5
      %vm234 = vcmp.gt.f32.partialorder %v218, 0.5
      %vm235 = vcmp.gt.f32.partialorder %v219, 0.5
      %vm236 = vcmp.gt.f32.partialorder %v220, 0.5
      %vm237 = vcmp.gt.f32.partialorder %v221, 0.5
      %vm238 = vcmp.gt.f32.partialorder %v222, 0.5
      %vm239 = vcmp.gt.f32.partialorder %v223, 0.5
      %vm240 = vcmp.gt.f32.partialorder %v224, 0.5
      %vm241 = vcmp.gt.f32.partialorder %v225, 0.5
      %vm242 = vcmp.gt.f32.partialorder %v226, 0.5
      %vm243 = vcmp.gt.f32.partialorder %v227, 0.5
      %v244 = vld [vmem:[%s2] sm:$0xff]
      %v245 = vld [vmem:[%s2 + $0x8] sm:$0x3]
      %v246 = vld [vmem:[%s2 + $0xa] sm:$0x1]
      %v247 = vld [vmem:[%s2 + $0xb] sm:$0x1]
      %v248 = vld [vmem:[%s2 + $0x10] sm:$0xff]
      %v249 = vld [vmem:[%s2 + $0x18] sm:$0xff]
      %v250 = vld [vmem:[%s2 + $0x20] sm:$0xff]
      %v251 = vld [vmem:[%s2 + $0x28] sm:$0xff]
      %v252 = vld [vmem:[%s2 + $0x30] sm:$0x1]
      %v253 = vld [vmem:[%s2 + $0x31] sm:$0x1]
      %v254 = vld [vmem:[%s2 + $0x32] sm:$0x1]
      %v255 = vld [vmem:[%s2 + $0x33] sm:$0x1]
      %v256 = vld [vmem:[%s2 + $0x38] sm:$0xf]
      %vm257 = vcmask 64512
      %v259 = vsel %vm257, %v196, 0
      %v262 = vsel %vm257, %v197, 0
      %v265 = vsel %vm257, %v198, 0
      %v268 = vsel %vm257, %v199, 0
      %v271 = vsel %vm257, %v200, 0
      %v274 = vsel %vm257, %v201, 0
      %v277 = vsel %vm257, %v202, 0
      %v280 = vsel %vm257, %v203, 0
      %v283 = vsel %vm257, %v204, 0
      %v286 = vsel %vm257, %v205, 0
      %v289 = vsel %vm257, %v206, 0
      %v292 = vsel %vm257, %v207, 0
      %v295 = vsel %vm257, %v208, 0
      %v298 = vsel %vm257, %v209, 0
      %v301 = vsel %vm257, %v210, 0
      %v304 = vsel %vm257, %v211, 0
      %306 = vmatprep.subr.mxu0 0.0
      %307 = vmatpush1.msra.mxu0 %v244
      %308 = vmatprep.subr.mxu0 0.0
      %309 = vmatpush1.msra.mxu0 0.0
      %310 = vmatprep.subr.mxu0 0.0
      %311 = vmatpush1.msra.mxu0 0.0
      %312 = vmatprep.subr.mxu0 0.0
      %313 = vmatpush1.msra.mxu0 0.0
      %314 = vmatprep.subr.mxu0 0.0
      %315 = vmatpush1.msra.mxu0 0.0
      %316 = vmatprep.subr.mxu0 0.0
      %317 = vmatpush1.msra.mxu0 0.0
      %318 = vmatprep.subr.mxu0 0.0
      %319 = vmatpush1.msra.mxu0 0.0
      %320 = vmatprep.subr.mxu0 0.0
      %321 = vmatpush1.msra.mxu0 0.0
      %322 = vmatprep.subr.mxu0 0.0
      %323 = vmatpush1.msra.mxu0 0.0
      %324 = vmatprep.subr.mxu0 0.0
      %325 = vmatpush1.msra.mxu0 0.0
      %326 = vmatprep.subr.mxu0 0.0
      %327 = vmatpush1.msra.mxu0 0.0
      %328 = vmatprep.subr.mxu0 0.0
      %329 = vmatpush1.msra.mxu0 0.0
      %330 = vmatprep.subr.mxu0 0.0
      %331 = vmatpush1.msra.mxu0 0.0
      %332 = vmatprep.subr.mxu0 0.0
      %333 = vmatpush1.msra.mxu0 0.0
      %334 = vmatprep.subr.mxu0 0.0
      %335 = vmatpush1.msra.mxu0 0.0
      %336 = vmatprep.subr.mxu0 0.0
      %337 = vmatpush1.msra.mxu0 0.0
      %338 = vmatprep.subr.mxu0 0.0
      %339 = vmatpush1.msra.mxu0 0.0
      %340 = vmatprep.subr.mxu0 0.0
      %341 = vmatpush1.msra.mxu0 0.0
      %342 = vmatprep.subr.mxu0 0.0
      %343 = vmatpush1.msra.mxu0 0.0
      %344 = vmatprep.subr.mxu0 0.0
      %345 = vmatpush1.msra.mxu0 0.0
      %346 = vmatprep.subr.mxu0 0.0
      %347 = vmatpush1.msra.mxu0 0.0
      %348 = vmatprep.subr.mxu0 0.0
      %349 = vmatpush1.msra.mxu0 0.0
      %350 = vmatprep.subr.mxu0 0.0
      %351 = vmatpush1.msra.mxu0 0.0
      %352 = vmatprep.subr.mxu0 0.0
      %353 = vmatpush1.msra.mxu0 0.0
      %354 = vmatprep.subr.mxu0 0.0
      %355 = vmatpush1.msra.mxu0 0.0
      %356 = vmatprep.subr.mxu0 0.0
      %357 = vmatpush1.msra.mxu0 0.0
      %358 = vmatprep.subr.mxu0 0.0
      %359 = vmatpush1.msra.mxu0 0.0
      %360 = vmatprep.subr.mxu0 0.0
      %361 = vmatpush1.msra.mxu0 0.0
      %362 = vmatprep.subr.mxu0 0.0
      %363 = vmatpush1.msra.mxu0 0.0
      %364 = vmatprep.subr.mxu0 0.0
      %365 = vmatpush1.msra.mxu0 0.0
      %366 = vmatprep.subr.mxu0 0.0
      %367 = vmatpush1.msra.mxu0 0.0
      %368 = vmatprep.subr.mxu0 0.0
      %369 = vmatpush1.msra.mxu0 0.0
      %370 = vmatprep.mubr.f32.mxu0 0.0
      %371 = vmatmul.mubr.f32.gmra.mrb[0].mxu0 %v259
      %v372 = vpop.f32.mrb[0].mxu0
      %v373 = vadd.f32 0.0, %v372
      %v374 = vpop.f32.mrb[0].mxu0
      %375 = vmatprep.mubr.f32.mxu0 0.0
      %376 = vmatmul.mubr.f32.gmra.mrb[0].mxu0 %v262
      %v377 = vpop.f32.mrb[0].mxu0
      %v378 = vadd.f32 0.0, %v377
      %v379 = vpop.f32.mrb[0].mxu0
      %380 = vmatprep.mubr.f32.mxu0 0.0
      %381 = vmatmul.mubr.f32.gmra.mrb[0].mxu0 %v265
      %v382 = vpop.f32.mrb[0].mxu0
      %v383 = vadd.f32 0.0, %v382
      %v384 = vpop.f32.mrb[0].mxu0
      %385 = vmatprep.mubr.f32.mxu0 0.0
      %386 = vmatmul.mubr.f32.gmra.mrb[0].mxu0 %v268
      %v387 = vpop.f32.mrb[0].mxu0
      %v388 = vadd.f32 0.0, %v387
      %v389 = vpop.f32.mrb[0].mxu0
      %390 = vmatprep.mubr.f32.mxu0 0.0
      %391 = vmatmul.mubr.f32.gmra.mrb[0].mxu0 %v271
      %v392 = vpop.f32.mrb[0].mxu0
      %v393 = vadd.f32 0.0, %v392
      %v394 = vpop.f32.mrb[0].mxu0
      %395 = vmatprep.mubr.f32.mxu0 0.0
      %396 = vmatmul.mubr.f32.gmra.mrb[0].mxu0 %v274
      %v397 = vpop.f32.mrb[0].mxu0
      %v398 = vadd.f32 0.0, %v397
      %v399 = vpop.f32.mrb[0].mxu0
      %400 = vmatprep.mubr.f32.mxu0 0.0
      %401 = vmatmul.mubr.f32.gmra.mrb[0].mxu0 %v277
      %v402 = vpop.f32.mrb[0].mxu0
      %v403 = vadd.f32 0.0, %v402
      %v404 = vpop.f32.mrb[0].mxu0
      %405 = vmatprep.mubr.f32.mxu0 0.0
      %406 = vmatmul.mubr.f32.gmra.mrb[0].mxu0 %v280
      %v407 = vpop.f32.mrb[0].mxu0
      %v408 = vadd.f32 0.0, %v407
      %v409 = vpop.f32.mrb[0].mxu0
      %410 = vmatprep.mubr.f32.mxu0 0.0
      %411 = vmatmul.mubr.f32.gmra.mrb[0].mxu0 %v283
      %v412 = vpop.f32.mrb[0].mxu0
      %v413 = vadd.f32 0.0, %v412
      %v414 = vpop.f32.mrb[0].mxu0
      %415 = vmatprep.mubr.f32.mxu0 0.0
      %416 = vmatmul.mubr.f32.gmra.mrb[0].mxu0 %v286
      %v417 = vpop.f32.mrb[0].mxu0
      %v418 = vadd.f32 0.0, %v417
      %v419 = vpop.f32.mrb[0].mxu0
      %420 = vmatprep.mubr.f32.mxu0 0.0
      %421 = vmatmul.mubr.f32.gmra.mrb[0].mxu0 %v289
      %v422 = vpop.f32.mrb[0].mxu0
      %v423 = vadd.f32 0.0, %v422
      %v424 = vpop.f32.mrb[0].mxu0
      %425 = vmatprep.mubr.f32.mxu0 0.0
      %426 = vmatmul.mubr.f32.gmra.mrb[0].mxu0 %v292
      %v427 = vpop.f32.mrb[0].mxu0
      %v428 = vadd.f32 0.0, %v427
      %v429 = vpop.f32.mrb[0].mxu0
      %430 = vmatprep.mubr.f32.mxu0 0.0
      %431 = vmatmul.mubr.f32.gmra.mrb[0].mxu0 %v295
      %v432 = vpop.f32.mrb[0].mxu0
      %v433 = vadd.f32 0.0, %v432
      %v434 = vpop.f32.mrb[0].mxu0
      %435 = vmatprep.mubr.f32.mxu0 0.0
      %436 = vmatmul.mubr.f32.gmra.mrb[0].mxu0 %v298
      %v437 = vpop.f32.mrb[0].mxu0
      %v438 = vadd.f32 0.0, %v437
      %v439 = vpop.f32.mrb[0].mxu0
      %440 = vmatprep.mubr.f32.mxu0 0.0
      %441 = vmatmul.mubr.f32.gmra.mrb[0].mxu0 %v301
      %v442 = vpop.f32.mrb[0].mxu0
      %v443 = vadd.f32 0.0, %v442
      %v444 = vpop.f32.mrb[0].mxu0
      %445 = vmatprep.mubr.f32.mxu0 0.0
      %446 = vmatmul.mubr.f32.gmra.mrb[0].mxu0 %v304
      %v447 = vpop.f32.mrb[0].mxu0
      %v448 = vadd.f32 0.0, %v447
      %v449 = vpop.f32.mrb[0].mxu0
      %450 = vdwg.mxu0
      %vm451 = vcmask 261120
      %v453 = vsel %vm451, %v245, 0
      %v456 = vsel %vm451, %v373, 0
      %v459 = vsel %vm451, %v378, 0
      %v462 = vsel %vm451, %v383, 0
      %v465 = vsel %vm451, %v388, 0
      %v468 = vsel %vm451, %v393, 0
      %v471 = vsel %vm451, %v398, 0
      %v474 = vsel %vm451, %v403, 0
      %v477 = vsel %vm451, %v408, 0
      %v480 = vsel %vm451, %v413, 0
      %v483 = vsel %vm451, %v418, 0
      %v486 = vsel %vm451, %v423, 0
      %v489 = vsel %vm451, %v428, 0
      %v492 = vsel %vm451, %v433, 0
      %v495 = vsel %vm451, %v438, 0
      %v498 = vsel %vm451, %v443, 0
      %v501 = vsel %vm451, %v448, 0
      %503 = vmatprep.subr.mxu0 0.0
      %504 = vmatpush1.xpose.msra.mxu0 %v456
      %505 = vmatprep.subr.mxu0 0.0
      %506 = vmatpush1.xpose.msra.mxu0 %v459
      %507 = vmatprep.subr.mxu0 0.0
      %508 = vmatpush1.xpose.msra.mxu0 %v462
      %509 = vmatprep.subr.mxu0 0.0
      %510 = vmatpush1.xpose.msra.mxu0 %v465
      %511 = vmatprep.subr.mxu0 0.0
      %512 = vmatpush1.xpose.msra.mxu0 %v468
      %513 = vmatprep.subr.mxu0 0.0
      %514 = vmatpush1.xpose.msra.mxu0 %v471
      %515 = vmatprep.subr.mxu0 0.0
      %516 = vmatpush1.xpose.msra.mxu0 %v474
      %517 = vmatprep.subr.mxu0 0.0
      %518 = vmatpush1.xpose.msra.mxu0 %v477
      %519 = vmatprep.subr.mxu0 0.0
      %520 = vmatpush1.xpose.msra.mxu0 %v480
      %521 = vmatprep.subr.mxu0 0.0
      %522 = vmatpush1.xpose.msra.mxu0 %v483
      %523 = vmatprep.subr.mxu0 0.0
      %524 = vmatpush1.xpose.msra.mxu0 %v486
      %525 = vmatprep.subr.mxu0 0.0
      %526 = vmatpush1.xpose.msra.mxu0 %v489
      %527 = vmatprep.subr.mxu0 0.0
      %528 = vmatpush1.xpose.msra.mxu0 %v492
      %529 = vmatprep.subr.mxu0 0.0
      %530 = vmatpush1.xpose.msra.mxu0 %v495
      %531 = vmatprep.subr.mxu0 0.0
      %532 = vmatpush1.xpose.msra.mxu0 %v498
      %533 = vmatprep.subr.mxu0 0.0
      %534 = vmatpush1.xpose.msra.mxu0 %v501
      %535 = vmatprep.subr.mxu0 0.0
      %536 = vmatpush1.xpose.msra.mxu0 0.0
      %537 = vmatprep.subr.mxu0 0.0
      %538 = vmatpush1.xpose.msra.mxu0 0.0
      %539 = vmatprep.subr.mxu0 0.0
      %540 = vmatpush1.xpose.msra.mxu0 0.0
      %541 = vmatprep.subr.mxu0 0.0
      %542 = vmatpush1.xpose.msra.mxu0 0.0
      %543 = vmatprep.subr.mxu0 0.0
      %544 = vmatpush1.xpose.msra.mxu0 0.0
      %545 = vmatprep.subr.mxu0 0.0
      %546 = vmatpush1.xpose.msra.mxu0 0.0
      %547 = vmatprep.subr.mxu0 0.0
      %548 = vmatpush1.xpose.msra.mxu0 0.0
      %549 = vmatprep.subr.mxu0 0.0
      %550 = vmatpush1.xpose.msra.mxu0 0.0
      %551 = vmatprep.subr.mxu0 0.0
      %552 = vmatpush1.xpose.msra.mxu0 0.0
      %553 = vmatprep.subr.mxu0 0.0
      %554 = vmatpush1.xpose.msra.mxu0 0.0
      %555 = vmatprep.subr.mxu0 0.0
      %556 = vmatpush1.xpose.msra.mxu0 0.0
      %557 = vmatprep.subr.mxu0 0.0
      %558 = vmatpush1.xpose.msra.mxu0 0.0
      %559 = vmatprep.subr.mxu0 0.0
      %560 = vmatpush1.xpose.msra.mxu0 0.0
      %561 = vmatprep.subr.mxu0 0.0
      %562 = vmatpush1.xpose.msra.mxu0 0.0
      %563 = vmatprep.subr.mxu0 0.0
      %564 = vmatpush1.xpose.msra.mxu0 0.0
      %565 = vmatprep.subr.mxu0 0.0
      %566 = vmatpush1.xpose.msra.mxu0 0.0
      %567 = vmatprep.mubr.f32.mxu0 0.0
      %568 = vmatmul.mubr.f32.gmra.mrb[0].mxu0 %v453
      %v569 = vpop.f32.mrb[0].mxu0
      %v570 = vadd.f32 0.0, %v569
      %v571 = vpop.f32.mrb[0].mxu0
      %572 = vdwg.mxu0
      %v573 = vlaneseq
      %v574 = vshrl.u32 %v573, 7
      %v575 = vsub.s32 0, %v574
      %v576 = vrot.slane %v246, %v575
      %v577 = vmul.f32 %v373, %v576
      %v578 = vmul.f32 %v378, %v576
      %v579 = vmul.f32 %v383, %v576
      %v580 = vmul.f32 %v388, %v576
      %v581 = vmul.f32 %v393, %v576
      %v582 = vmul.f32 %v398, %v576
      %v583 = vmul.f32 %v403, %v576
      %v584 = vmul.f32 %v408, %v576
      %v585 = vmul.f32 %v413, %v576
      %v586 = vmul.f32 %v418, %v576
      %v587 = vmul.f32 %v423, %v576
      %v588 = vmul.f32 %v428, %v576
      %v589 = vmul.f32 %v433, %v576
      %v590 = vmul.f32 %v438, %v576
      %v591 = vmul.f32 %v443, %v576
      %v592 = vmul.f32 %v448, %v576
      %vm593 = vcmask 130048
      %v594 = vsel %vm593, %v577, 0.0
      %595 = vadd.xlane.f32.xlu0 %v594
      %v596 = vpop.xlane.xlu0 %595
      %v597 = vsel %vm593, %v578, 0.0
      %598 = vadd.xlane.f32.xlu0 %v597
      %v599 = vpop.xlane.xlu0 %598
      %v600 = vsel %vm593, %v579, 0.0
      %601 = vadd.xlane.f32.xlu0 %v600
      %v602 = vpop.xlane.xlu0 %601
      %v603 = vsel %vm593, %v580, 0.0
      %604 = vadd.xlane.f32.xlu0 %v603
      %v605 = vpop.xlane.xlu0 %604
      %v606 = vsel %vm593, %v581, 0.0
      %607 = vadd.xlane.f32.xlu0 %v606
      %v608 = vpop.xlane.xlu0 %607
      %v609 = vsel %vm593, %v582, 0.0
      %610 = vadd.xlane.f32.xlu0 %v609
      %v611 = vpop.xlane.xlu0 %610
      %v612 = vsel %vm593, %v583, 0.0
      %613 = vadd.xlane.f32.xlu0 %v612
      %v614 = vpop.xlane.xlu0 %613
      %v615 = vsel %vm593, %v584, 0.0
      %616 = vadd.xlane.f32.xlu0 %v615
      %v617 = vpop.xlane.xlu0 %616
      %v618 = vsel %vm593, %v585, 0.0
      %619 = vadd.xlane.f32.xlu0 %v618
      %v620 = vpop.xlane.xlu0 %619
      %v621 = vsel %vm593, %v586, 0.0
      %622 = vadd.xlane.f32.xlu0 %v621
      %v623 = vpop.xlane.xlu0 %622
      %v624 = vsel %vm593, %v587, 0.0
      %625 = vadd.xlane.f32.xlu0 %v624
      %v626 = vpop.xlane.xlu0 %625
      %v627 = vsel %vm593, %v588, 0.0
      %628 = vadd.xlane.f32.xlu0 %v627
      %v629 = vpop.xlane.xlu0 %628
      %v630 = vsel %vm593, %v589, 0.0
      %631 = vadd.xlane.f32.xlu0 %v630
      %v632 = vpop.xlane.xlu0 %631
      %v633 = vsel %vm593, %v590, 0.0
      %634 = vadd.xlane.f32.xlu0 %v633
      %v635 = vpop.xlane.xlu0 %634
      %v636 = vsel %vm593, %v591, 0.0
      %637 = vadd.xlane.f32.xlu0 %v636
      %v638 = vpop.xlane.xlu0 %637
      %v639 = vsel %vm593, %v592, 0.0
      %640 = vadd.xlane.f32.xlu0 %v639
      %v641 = vpop.xlane.xlu0 %640
      %v642 = vlaneseq
      %v643 = vshrl.u32 %v642, 7
      %v644 = vsub.s32 0, %v643
      %v645 = vrot.slane %v570, %v644
      %v646 = vadd.f32 %v596, %v645
      %v647 = vadd.f32 %v599, %v645
      %v648 = vadd.f32 %v602, %v645
      %v649 = vadd.f32 %v605, %v645
      %v650 = vadd.f32 %v608, %v645
      %v651 = vadd.f32 %v611, %v645
      %v652 = vadd.f32 %v614, %v645
      %v653 = vadd.f32 %v617, %v645
      %v654 = vadd.f32 %v620, %v645
      %v655 = vadd.f32 %v623, %v645
      %v656 = vadd.f32 %v626, %v645
      %v657 = vadd.f32 %v629, %v645
      %v658 = vadd.f32 %v632, %v645
      %v659 = vadd.f32 %v635, %v645
      %v660 = vadd.f32 %v638, %v645
      %v661 = vadd.f32 %v641, %v645
      %vm662 = vcmp.gt.f32.partialorder %v646, 0.0
      %vm663 = vcmp.gt.f32.partialorder %v647, 0.0
      %vm664 = vcmp.gt.f32.partialorder %v648, 0.0
      %vm665 = vcmp.gt.f32.partialorder %v649, 0.0
      %vm666 = vcmp.gt.f32.partialorder %v650, 0.0
      %vm667 = vcmp.gt.f32.partialorder %v651, 0.0
      %vm668 = vcmp.gt.f32.partialorder %v652, 0.0
      %vm669 = vcmp.gt.f32.partialorder %v653, 0.0
      %vm670 = vcmp.gt.f32.partialorder %v654, 0.0
      %vm671 = vcmp.gt.f32.partialorder %v655, 0.0
      %vm672 = vcmp.gt.f32.partialorder %v656, 0.0
      %vm673 = vcmp.gt.f32.partialorder %v657, 0.0
      %vm674 = vcmp.gt.f32.partialorder %v658, 0.0
      %vm675 = vcmp.gt.f32.partialorder %v659, 0.0
      %vm676 = vcmp.gt.f32.partialorder %v660, 0.0
      %vm677 = vcmp.gt.f32.partialorder %v661, 0.0
      %v678 = vmul.f32 %v646, 0.2
      %v679 = vmul.f32 %v647, 0.2
      %v680 = vmul.f32 %v648, 0.2
      %v681 = vmul.f32 %v649, 0.2
      %v682 = vmul.f32 %v650, 0.2
      %v683 = vmul.f32 %v651, 0.2
      %v684 = vmul.f32 %v652, 0.2
      %v685 = vmul.f32 %v653, 0.2
      %v686 = vmul.f32 %v654, 0.2
      %v687 = vmul.f32 %v655, 0.2
      %v688 = vmul.f32 %v656, 0.2
      %v689 = vmul.f32 %v657, 0.2
      %v690 = vmul.f32 %v658, 0.2
      %v691 = vmul.f32 %v659, 0.2
      %v692 = vmul.f32 %v660, 0.2
      %v693 = vmul.f32 %v661, 0.2
      %v694 = vsel %vm662, %v646, %v678
      %v695 = vsel %vm663, %v647, %v679
      %v696 = vsel %vm664, %v648, %v680
      %v697 = vsel %vm665, %v649, %v681
      %v698 = vsel %vm666, %v650, %v682
      %v699 = vsel %vm667, %v651, %v683
      %v700 = vsel %vm668, %v652, %v684
      %v701 = vsel %vm669, %v653, %v685
      %v702 = vsel %vm670, %v654, %v686
      %v703 = vsel %vm671, %v655, %v687
      %v704 = vsel %vm672, %v656, %v688
      %v705 = vsel %vm673, %v657, %v689
      %v706 = vsel %vm674, %v658, %v690
      %v707 = vsel %vm675, %v659, %v691
      %v708 = vsel %vm676, %v660, %v692
      %v709 = vsel %vm677, %v661, %v693
      %v710 = vsel %vm228, %v694, -1e+30
      %v711 = vsel %vm229, %v695, -1e+30
      %v712 = vsel %vm230, %v696, -1e+30
      %v713 = vsel %vm231, %v697, -1e+30
      %v714 = vsel %vm232, %v698, -1e+30
      %v715 = vsel %vm233, %v699, -1e+30
      %v716 = vsel %vm234, %v700, -1e+30
      %v717 = vsel %vm235, %v701, -1e+30
      %v718 = vsel %vm236, %v702, -1e+30
      %v719 = vsel %vm237, %v703, -1e+30
      %v720 = vsel %vm238, %v704, -1e+30
      %v721 = vsel %vm239, %v705, -1e+30
      %v722 = vsel %vm240, %v706, -1e+30
      %v723 = vsel %vm241, %v707, -1e+30
      %v724 = vsel %vm242, %v708, -1e+30
      %v725 = vsel %vm243, %v709, -1e+30
      %726 = vmax.xlane.f32.xlu0 %v710
      %v727 = vpop.xlane.xlu0 %726
      %728 = vmax.xlane.f32.xlu0 %v711
      %v729 = vpop.xlane.xlu0 %728
      %730 = vmax.xlane.f32.xlu0 %v712
      %v731 = vpop.xlane.xlu0 %730
      %732 = vmax.xlane.f32.xlu0 %v713
      %v733 = vpop.xlane.xlu0 %732
      %734 = vmax.xlane.f32.xlu0 %v714
      %v735 = vpop.xlane.xlu0 %734
      %736 = vmax.xlane.f32.xlu0 %v715
      %v737 = vpop.xlane.xlu0 %736
      %738 = vmax.xlane.f32.xlu0 %v716
      %v739 = vpop.xlane.xlu0 %738
      %740 = vmax.xlane.f32.xlu0 %v717
      %v741 = vpop.xlane.xlu0 %740
      %742 = vmax.xlane.f32.xlu0 %v718
      %v743 = vpop.xlane.xlu0 %742
      %744 = vmax.xlane.f32.xlu0 %v719
      %v745 = vpop.xlane.xlu0 %744
      %746 = vmax.xlane.f32.xlu0 %v720
      %v747 = vpop.xlane.xlu0 %746
      %748 = vmax.xlane.f32.xlu0 %v721
      %v749 = vpop.xlane.xlu0 %748
      %750 = vmax.xlane.f32.xlu0 %v722
      %v751 = vpop.xlane.xlu0 %750
      %752 = vmax.xlane.f32.xlu0 %v723
      %v753 = vpop.xlane.xlu0 %752
      %754 = vmax.xlane.f32.xlu0 %v724
      %v755 = vpop.xlane.xlu0 %754
      %756 = vmax.xlane.f32.xlu0 %v725
      %v757 = vpop.xlane.xlu0 %756
      %v758 = vsub.f32 %v710, %v727
      %v759 = vsub.f32 %v711, %v729
      %v760 = vsub.f32 %v712, %v731
      %v761 = vsub.f32 %v713, %v733
      %v762 = vsub.f32 %v714, %v735
      %v763 = vsub.f32 %v715, %v737
      %v764 = vsub.f32 %v716, %v739
      %v765 = vsub.f32 %v717, %v741
      %v766 = vsub.f32 %v718, %v743
      %v767 = vsub.f32 %v719, %v745
      %v768 = vsub.f32 %v720, %v747
      %v769 = vsub.f32 %v721, %v749
      %v770 = vsub.f32 %v722, %v751
      %v771 = vsub.f32 %v723, %v753
      %v772 = vsub.f32 %v724, %v755
      %v773 = vsub.f32 %v725, %v757
      %v774 = vmul.f32 %v758, 1.442695
      %v775 = vpow.pop %v774
      %v776 = vmul.f32 %v759, 1.442695
      %v777 = vpow.pop %v776
      %v778 = vmul.f32 %v760, 1.442695
      %v779 = vpow.pop %v778
      %v780 = vmul.f32 %v761, 1.442695
      %v781 = vpow.pop %v780
      %v782 = vmul.f32 %v762, 1.442695
      %v783 = vpow.pop %v782
      %v784 = vmul.f32 %v763, 1.442695
      %v785 = vpow.pop %v784
      %v786 = vmul.f32 %v764, 1.442695
      %v787 = vpow.pop %v786
      %v788 = vmul.f32 %v765, 1.442695
      %v789 = vpow.pop %v788
      %v790 = vmul.f32 %v766, 1.442695
      %v791 = vpow.pop %v790
      %v792 = vmul.f32 %v767, 1.442695
      %v793 = vpow.pop %v792
      %v794 = vmul.f32 %v768, 1.442695
      %v795 = vpow.pop %v794
      %v796 = vmul.f32 %v769, 1.442695
      %v797 = vpow.pop %v796
      %v798 = vmul.f32 %v770, 1.442695
      %v799 = vpow.pop %v798
      %v800 = vmul.f32 %v771, 1.442695
      %v801 = vpow.pop %v800
      %v802 = vmul.f32 %v772, 1.442695
      %v803 = vpow.pop %v802
      %v804 = vmul.f32 %v773, 1.442695
      %v805 = vpow.pop %v804
      %806 = vadd.xlane.f32.xlu0 %v775
      %v807 = vpop.xlane.xlu0 %806
      %808 = vadd.xlane.f32.xlu0 %v777
      %v809 = vpop.xlane.xlu0 %808
      %810 = vadd.xlane.f32.xlu0 %v779
      %v811 = vpop.xlane.xlu0 %810
      %812 = vadd.xlane.f32.xlu0 %v781
      %v813 = vpop.xlane.xlu0 %812
      %814 = vadd.xlane.f32.xlu0 %v783
      %v815 = vpop.xlane.xlu0 %814
      %816 = vadd.xlane.f32.xlu0 %v785
      %v817 = vpop.xlane.xlu0 %816
      %818 = vadd.xlane.f32.xlu0 %v787
      %v819 = vpop.xlane.xlu0 %818
      %820 = vadd.xlane.f32.xlu0 %v789
      %v821 = vpop.xlane.xlu0 %820
      %822 = vadd.xlane.f32.xlu0 %v791
      %v823 = vpop.xlane.xlu0 %822
      %824 = vadd.xlane.f32.xlu0 %v793
      %v825 = vpop.xlane.xlu0 %824
      %826 = vadd.xlane.f32.xlu0 %v795
      %v827 = vpop.xlane.xlu0 %826
      %828 = vadd.xlane.f32.xlu0 %v797
      %v829 = vpop.xlane.xlu0 %828
      %830 = vadd.xlane.f32.xlu0 %v799
      %v831 = vpop.xlane.xlu0 %830
      %832 = vadd.xlane.f32.xlu0 %v801
      %v833 = vpop.xlane.xlu0 %832
      %834 = vadd.xlane.f32.xlu0 %v803
      %v835 = vpop.xlane.xlu0 %834
      %836 = vadd.xlane.f32.xlu0 %v805
      %v837 = vpop.xlane.xlu0 %836
      %v838 = vrcp.pop %v807
      %v839 = vrcp.pop %v809
      %v840 = vrcp.pop %v811
      %v841 = vrcp.pop %v813
      %v842 = vrcp.pop %v815
      %v843 = vrcp.pop %v817
      %v844 = vrcp.pop %v819
      %v845 = vrcp.pop %v821
      %v846 = vrcp.pop %v823
      %v847 = vrcp.pop %v825
      %v848 = vrcp.pop %v827
      %v849 = vrcp.pop %v829
      %v850 = vrcp.pop %v831
      %v851 = vrcp.pop %v833
      %v852 = vrcp.pop %v835
      %v853 = vrcp.pop %v837
      %v854 = vmul.f32 %v775, %v838
      %v855 = vmul.f32 %v777, %v839
      %v856 = vmul.f32 %v779, %v840
      %v857 = vmul.f32 %v781, %v841
      %v858 = vmul.f32 %v783, %v842
      %v859 = vmul.f32 %v785, %v843
      %v860 = vmul.f32 %v787, %v844
      %v861 = vmul.f32 %v789, %v845
      %v862 = vmul.f32 %v791, %v846
      %v863 = vmul.f32 %v793, %v847
      %v864 = vmul.f32 %v795, %v848
      %v865 = vmul.f32 %v797, %v849
      %v866 = vmul.f32 %v799, %v850
      %v867 = vmul.f32 %v801, %v851
      %v868 = vmul.f32 %v803, %v852
      %v869 = vmul.f32 %v805, %v853
      %v870 = vlaneseq
      %v871 = vshrl.u32 %v870, 7
      %v872 = vsub.s32 0, %v871
      %v873 = vrot.slane %v247, %v872
      %874 = vmatprep.subr.mxu0 0.0
      %875 = vmatpush1.msra.mxu0 %v373
      %876 = vmatprep.subr.mxu0 0.0
      %877 = vmatpush1.msra.mxu0 %v378
      %878 = vmatprep.subr.mxu0 0.0
      %879 = vmatpush1.msra.mxu0 %v383
      %880 = vmatprep.subr.mxu0 0.0
      %881 = vmatpush1.msra.mxu0 %v388
      %882 = vmatprep.subr.mxu0 0.0
      %883 = vmatpush1.msra.mxu0 %v393
      %884 = vmatprep.subr.mxu0 0.0
      %885 = vmatpush1.msra.mxu0 %v398
      %886 = vmatprep.subr.mxu0 0.0
      %887 = vmatpush1.msra.mxu0 %v403
      %888 = vmatprep.subr.mxu0 0.0
      %889 = vmatpush1.msra.mxu0 %v408
      %890 = vmatprep.subr.mxu0 0.0
      %891 = vmatpush1.msra.mxu0 %v413
      %892 = vmatprep.subr.mxu0 0.0
      %893 = vmatpush1.msra.mxu0 %v418
      %894 = vmatprep.subr.mxu0 0.0
      %895 = vmatpush1.msra.mxu0 %v423
      %896 = vmatprep.subr.mxu0 0.0
      %897 = vmatpush1.msra.mxu0 %v428
      %898 = vmatprep.subr.mxu0 0.0
      %899 = vmatpush1.msra.mxu0 %v433
      %900 = vmatprep.subr.mxu0 0.0
      %901 = vmatpush1.msra.mxu0 %v438
      %902 = vmatprep.subr.mxu0 0.0
      %903 = vmatpush1.msra.mxu0 %v443
      %904 = vmatprep.subr.mxu0 0.0
      %905 = vmatpush1.msra.mxu0 %v448
      %906 = vmatprep.subr.mxu0 0.0
      %907 = vmatpush1.msra.mxu0 0.0
      %908 = vmatprep.subr.mxu0 0.0
      %909 = vmatpush1.msra.mxu0 0.0
      %910 = vmatprep.subr.mxu0 0.0
      %911 = vmatpush1.msra.mxu0 0.0
      %912 = vmatprep.subr.mxu0 0.0
      %913 = vmatpush1.msra.mxu0 0.0
      %914 = vmatprep.subr.mxu0 0.0
      %915 = vmatpush1.msra.mxu0 0.0
      %916 = vmatprep.subr.mxu0 0.0
      %917 = vmatpush1.msra.mxu0 0.0
      %918 = vmatprep.subr.mxu0 0.0
      %919 = vmatpush1.msra.mxu0 0.0
      %920 = vmatprep.subr.mxu0 0.0
      %921 = vmatpush1.msra.mxu0 0.0
      %922 = vmatprep.subr.mxu0 0.0
      %923 = vmatpush1.msra.mxu0 0.0
      %924 = vmatprep.subr.mxu0 0.0
      %925 = vmatpush1.msra.mxu0 0.0
      %926 = vmatprep.subr.mxu0 0.0
      %927 = vmatpush1.msra.mxu0 0.0
      %928 = vmatprep.subr.mxu0 0.0
      %929 = vmatpush1.msra.mxu0 0.0
      %930 = vmatprep.subr.mxu0 0.0
      %931 = vmatpush1.msra.mxu0 0.0
      %932 = vmatprep.subr.mxu0 0.0
      %933 = vmatpush1.msra.mxu0 0.0
      %934 = vmatprep.subr.mxu0 0.0
      %935 = vmatpush1.msra.mxu0 0.0
      %936 = vmatprep.subr.mxu0 0.0
      %937 = vmatpush1.msra.mxu0 0.0
      %938 = vmatprep.mubr.f32.mxu0 0.0
      %939 = vmatmul.mubr.f32.gmra.mrb[0].mxu0 %v854
      %v940 = vpop.f32.mrb[0].mxu0
      %v941 = vadd.f32 %v873, %v940
      %v942 = vpop.f32.mrb[0].mxu0
      %943 = vmatprep.mubr.f32.mxu0 0.0
      %944 = vmatmul.mubr.f32.gmra.mrb[0].mxu0 %v855
      %v945 = vpop.f32.mrb[0].mxu0
      %v946 = vadd.f32 %v873, %v945
      %v947 = vpop.f32.mrb[0].mxu0
      %948 = vmatprep.mubr.f32.mxu0 0.0
      %949 = vmatmul.mubr.f32.gmra.mrb[0].mxu0 %v856
      %v950 = vpop.f32.mrb[0].mxu0
      %v951 = vadd.f32 %v873, %v950
      %v952 = vpop.f32.mrb[0].mxu0
      %953 = vmatprep.mubr.f32.mxu0 0.0
      %954 = vmatmul.mubr.f32.gmra.mrb[0].mxu0 %v857
      %v955 = vpop.f32.mrb[0].mxu0
      %v956 = vadd.f32 %v873, %v955
      %v957 = vpop.f32.mrb[0].mxu0
      %958 = vmatprep.mubr.f32.mxu0 0.0
      %959 = vmatmul.mubr.f32.gmra.mrb[0].mxu0 %v858
      %v960 = vpop.f32.mrb[0].mxu0
      %v961 = vadd.f32 %v873, %v960
      %v962 = vpop.f32.mrb[0].mxu0
      %963 = vmatprep.mubr.f32.mxu0 0.0
      %964 = vmatmul.mubr.f32.gmra.mrb[0].mxu0 %v859
      %v965 = vpop.f32.mrb[0].mxu0
      %v966 = vadd.f32 %v873, %v965
      %v967 = vpop.f32.mrb[0].mxu0
      %968 = vmatprep.mubr.f32.mxu0 0.0
      %969 = vmatmul.mubr.f32.gmra.mrb[0].mxu0 %v860
      %v970 = vpop.f32.mrb[0].mxu0
      %v971 = vadd.f32 %v873, %v970
      %v972 = vpop.f32.mrb[0].mxu0
      %973 = vmatprep.mubr.f32.mxu0 0.0
      %974 = vmatmul.mubr.f32.gmra.mrb[0].mxu0 %v861
      %v975 = vpop.f32.mrb[0].mxu0
      %v976 = vadd.f32 %v873, %v975
      %v977 = vpop.f32.mrb[0].mxu0
      %978 = vmatprep.mubr.f32.mxu0 0.0
      %979 = vmatmul.mubr.f32.gmra.mrb[0].mxu0 %v862
      %v980 = vpop.f32.mrb[0].mxu0
      %v981 = vadd.f32 %v873, %v980
      %v982 = vpop.f32.mrb[0].mxu0
      %983 = vmatprep.mubr.f32.mxu0 0.0
      %984 = vmatmul.mubr.f32.gmra.mrb[0].mxu0 %v863
      %v985 = vpop.f32.mrb[0].mxu0
      %v986 = vadd.f32 %v873, %v985
      %v987 = vpop.f32.mrb[0].mxu0
      %988 = vmatprep.mubr.f32.mxu0 0.0
      %989 = vmatmul.mubr.f32.gmra.mrb[0].mxu0 %v864
      %v990 = vpop.f32.mrb[0].mxu0
      %v991 = vadd.f32 %v873, %v990
      %v992 = vpop.f32.mrb[0].mxu0
      %993 = vmatprep.mubr.f32.mxu0 0.0
      %994 = vmatmul.mubr.f32.gmra.mrb[0].mxu0 %v865
      %v995 = vpop.f32.mrb[0].mxu0
      %v996 = vadd.f32 %v873, %v995
      %v997 = vpop.f32.mrb[0].mxu0
      %998 = vmatprep.mubr.f32.mxu0 0.0
      %999 = vmatmul.mubr.f32.gmra.mrb[0].mxu0 %v866
      %v1000 = vpop.f32.mrb[0].mxu0
      %v1001 = vadd.f32 %v873, %v1000
      %v1002 = vpop.f32.mrb[0].mxu0
      %1003 = vmatprep.mubr.f32.mxu0 0.0
      %1004 = vmatmul.mubr.f32.gmra.mrb[0].mxu0 %v867
      %v1005 = vpop.f32.mrb[0].mxu0
      %v1006 = vadd.f32 %v873, %v1005
      %v1007 = vpop.f32.mrb[0].mxu0
      %1008 = vmatprep.mubr.f32.mxu0 0.0
      %1009 = vmatmul.mubr.f32.gmra.mrb[0].mxu0 %v868
      %v1010 = vpop.f32.mrb[0].mxu0
      %v1011 = vadd.f32 %v873, %v1010
      %v1012 = vpop.f32.mrb[0].mxu0
      %1013 = vmatprep.mubr.f32.mxu0 0.0
      %1014 = vmatmul.mubr.f32.gmra.mrb[0].mxu0 %v869
      %v1015 = vpop.f32.mrb[0].mxu0
      %v1016 = vadd.f32 %v873, %v1015
      %v1017 = vpop.f32.mrb[0].mxu0
      %1018 = vdwg.mxu0
      %vm1019 = vcmp.gt.f32.partialorder %v941, 0.0
      %vm1020 = vcmp.gt.f32.partialorder %v946, 0.0
      %vm1021 = vcmp.gt.f32.partialorder %v951, 0.0
      %vm1022 = vcmp.gt.f32.partialorder %v956, 0.0
      %vm1023 = vcmp.gt.f32.partialorder %v961, 0.0
      %vm1024 = vcmp.gt.f32.partialorder %v966, 0.0
      %vm1025 = vcmp.gt.f32.partialorder %v971, 0.0
      %vm1026 = vcmp.gt.f32.partialorder %v976, 0.0
      %vm1027 = vcmp.gt.f32.partialorder %v981, 0.0
      %vm1028 = vcmp.gt.f32.partialorder %v986, 0.0
      %vm1029 = vcmp.gt.f32.partialorder %v991, 0.0
      %vm1030 = vcmp.gt.f32.partialorder %v996, 0.0
      %vm1031 = vcmp.gt.f32.partialorder %v1001, 0.0
      %vm1032 = vcmp.gt.f32.partialorder %v1006, 0.0
      %vm1033 = vcmp.gt.f32.partialorder %v1011, 0.0
      %vm1034 = vcmp.gt.f32.partialorder %v1016, 0.0
      %v1035 = vmul.f32 %v941, 1.442695
      %v1036 = vpow.pop %v1035
      %v1037 = vmul.f32 %v946, 1.442695
      %v1038 = vpow.pop %v1037
      %v1039 = vmul.f32 %v951, 1.442695
      %v1040 = vpow.pop %v1039
      %v1041 = vmul.f32 %v956, 1.442695
      %v1042 = vpow.pop %v1041
      %v1043 = vmul.f32 %v961, 1.442695
      %v1044 = vpow.pop %v1043
      %v1045 = vmul.f32 %v966, 1.442695
      %v1046 = vpow.pop %v1045
      %v1047 = vmul.f32 %v971, 1.442695
      %v1048 = vpow.pop %v1047
      %v1049 = vmul.f32 %v976, 1.442695
      %v1050 = vpow.pop %v1049
      %v1051 = vmul.f32 %v981, 1.442695
      %v1052 = vpow.pop %v1051
      %v1053 = vmul.f32 %v986, 1.442695
      %v1054 = vpow.pop %v1053
      %v1055 = vmul.f32 %v991, 1.442695
      %v1056 = vpow.pop %v1055
      %v1057 = vmul.f32 %v996, 1.442695
      %v1058 = vpow.pop %v1057
      %v1059 = vmul.f32 %v1001, 1.442695
      %v1060 = vpow.pop %v1059
      %v1061 = vmul.f32 %v1006, 1.442695
      %v1062 = vpow.pop %v1061
      %v1063 = vmul.f32 %v1011, 1.442695
      %v1064 = vpow.pop %v1063
      %v1065 = vmul.f32 %v1016, 1.442695
      %v1066 = vpow.pop %v1065
      %v1067 = vsub.f32 %v1036, 1.0
      %v1068 = vsub.f32 %v1038, 1.0
      %v1069 = vsub.f32 %v1040, 1.0
      %v1070 = vsub.f32 %v1042, 1.0
      %v1071 = vsub.f32 %v1044, 1.0
      %v1072 = vsub.f32 %v1046, 1.0
      %v1073 = vsub.f32 %v1048, 1.0
      %v1074 = vsub.f32 %v1050, 1.0
      %v1075 = vsub.f32 %v1052, 1.0
      %v1076 = vsub.f32 %v1054, 1.0
      %v1077 = vsub.f32 %v1056, 1.0
      %v1078 = vsub.f32 %v1058, 1.0
      %v1079 = vsub.f32 %v1060, 1.0
      %v1080 = vsub.f32 %v1062, 1.0
      %v1081 = vsub.f32 %v1064, 1.0
      %v1082 = vsub.f32 %v1066, 1.0
      %v1083 = vsel %vm1019, %v941, %v1067
      %v1084 = vsel %vm1020, %v946, %v1068
      %v1085 = vsel %vm1021, %v951, %v1069
      %v1086 = vsel %vm1022, %v956, %v1070
      %v1087 = vsel %vm1023, %v961, %v1071
      %v1088 = vsel %vm1024, %v966, %v1072
      %v1089 = vsel %vm1025, %v971, %v1073
      %v1090 = vsel %vm1026, %v976, %v1074
      %v1091 = vsel %vm1027, %v981, %v1075
      %v1092 = vsel %vm1028, %v986, %v1076
      %v1093 = vsel %vm1029, %v991, %v1077
      %v1094 = vsel %vm1030, %v996, %v1078
      %v1095 = vsel %vm1031, %v1001, %v1079
      %v1096 = vsel %vm1032, %v1006, %v1080
      %v1097 = vsel %vm1033, %v1011, %v1081
      %v1098 = vsel %vm1034, %v1016, %v1082
      %1115 = vrot.lane.b32.xlu0 %v577, 112
      %v1116 = vpop.permute.xlu0 %1115
      %1117 = vrot.lane.b32.xlu0 %v578, 112
      %v1118 = vpop.permute.xlu0 %1117
      %1119 = vrot.lane.b32.xlu0 %v579, 112
      %v1120 = vpop.permute.xlu0 %1119
      %1121 = vrot.lane.b32.xlu0 %v580, 112
      %v1122 = vpop.permute.xlu0 %1121
      %1123 = vrot.lane.b32.xlu0 %v581, 112
      %v1124 = vpop.permute.xlu0 %1123
      %1125 = vrot.lane.b32.xlu0 %v582, 112
      %v1126 = vpop.permute.xlu0 %1125
      %1127 = vrot.lane.b32.xlu0 %v583, 112
      %v1128 = vpop.permute.xlu0 %1127
      %1129 = vrot.lane.b32.xlu0 %v584, 112
      %v1130 = vpop.permute.xlu0 %1129
      %1131 = vrot.lane.b32.xlu0 %v585, 112
      %v1132 = vpop.permute.xlu0 %1131
      %1133 = vrot.lane.b32.xlu0 %v586, 112
      %v1134 = vpop.permute.xlu0 %1133
      %1135 = vrot.lane.b32.xlu0 %v587, 112
      %v1136 = vpop.permute.xlu0 %1135
      %1137 = vrot.lane.b32.xlu0 %v588, 112
      %v1138 = vpop.permute.xlu0 %1137
      %1139 = vrot.lane.b32.xlu0 %v589, 112
      %v1140 = vpop.permute.xlu0 %1139
      %1141 = vrot.lane.b32.xlu0 %v590, 112
      %v1142 = vpop.permute.xlu0 %1141
      %1143 = vrot.lane.b32.xlu0 %v591, 112
      %v1144 = vpop.permute.xlu0 %1143
      %1145 = vrot.lane.b32.xlu0 %v592, 112
      %v1146 = vpop.permute.xlu0 %1145
      %v1163 = vsel %vm593, %v1116, 0.0
      %1164 = vadd.xlane.f32.xlu0 %v1163
      %v1165 = vpop.xlane.xlu0 %1164
      %v1166 = vsel %vm593, %v1118, 0.0
      %1167 = vadd.xlane.f32.xlu0 %v1166
      %v1168 = vpop.xlane.xlu0 %1167
      %v1169 = vsel %vm593, %v1120, 0.0
      %1170 = vadd.xlane.f32.xlu0 %v1169
      %v1171 = vpop.xlane.xlu0 %1170
      %v1172 = vsel %vm593, %v1122, 0.0
      %1173 = vadd.xlane.f32.xlu0 %v1172
      %v1174 = vpop.xlane.xlu0 %1173
      %v1175 = vsel %vm593, %v1124, 0.0
      %1176 = vadd.xlane.f32.xlu0 %v1175
      %v1177 = vpop.xlane.xlu0 %1176
      %v1178 = vsel %vm593, %v1126, 0.0
      %1179 = vadd.xlane.f32.xlu0 %v1178
      %v1180 = vpop.xlane.xlu0 %1179
      %v1181 = vsel %vm593, %v1128, 0.0
      %1182 = vadd.xlane.f32.xlu0 %v1181
      %v1183 = vpop.xlane.xlu0 %1182
      %v1184 = vsel %vm593, %v1130, 0.0
      %1185 = vadd.xlane.f32.xlu0 %v1184
      %v1186 = vpop.xlane.xlu0 %1185
      %v1187 = vsel %vm593, %v1132, 0.0
      %1188 = vadd.xlane.f32.xlu0 %v1187
      %v1189 = vpop.xlane.xlu0 %1188
      %v1190 = vsel %vm593, %v1134, 0.0
      %1191 = vadd.xlane.f32.xlu0 %v1190
      %v1192 = vpop.xlane.xlu0 %1191
      %v1193 = vsel %vm593, %v1136, 0.0
      %1194 = vadd.xlane.f32.xlu0 %v1193
      %v1195 = vpop.xlane.xlu0 %1194
      %v1196 = vsel %vm593, %v1138, 0.0
      %1197 = vadd.xlane.f32.xlu0 %v1196
      %v1198 = vpop.xlane.xlu0 %1197
      %v1199 = vsel %vm593, %v1140, 0.0
      %1200 = vadd.xlane.f32.xlu0 %v1199
      %v1201 = vpop.xlane.xlu0 %1200
      %v1202 = vsel %vm593, %v1142, 0.0
      %1203 = vadd.xlane.f32.xlu0 %v1202
      %v1204 = vpop.xlane.xlu0 %1203
      %v1205 = vsel %vm593, %v1144, 0.0
      %1206 = vadd.xlane.f32.xlu0 %v1205
      %v1207 = vpop.xlane.xlu0 %1206
      %v1208 = vsel %vm593, %v1146, 0.0
      %1209 = vadd.xlane.f32.xlu0 %v1208
      %v1210 = vpop.xlane.xlu0 %1209
      %v1211 = vlaneseq
      %v1212 = vshrl.u32 %v1211, 7
      %v1213 = vsub.s32 1, %v1212
      %v1214 = vrot.slane %v570, %v1213
      %v1215 = vadd.f32 %v1165, %v1214
      %v1216 = vadd.f32 %v1168, %v1214
      %v1217 = vadd.f32 %v1171, %v1214
      %v1218 = vadd.f32 %v1174, %v1214
      %v1219 = vadd.f32 %v1177, %v1214
      %v1220 = vadd.f32 %v1180, %v1214
      %v1221 = vadd.f32 %v1183, %v1214
      %v1222 = vadd.f32 %v1186, %v1214
      %v1223 = vadd.f32 %v1189, %v1214
      %v1224 = vadd.f32 %v1192, %v1214
      %v1225 = vadd.f32 %v1195, %v1214
      %v1226 = vadd.f32 %v1198, %v1214
      %v1227 = vadd.f32 %v1201, %v1214
      %v1228 = vadd.f32 %v1204, %v1214
      %v1229 = vadd.f32 %v1207, %v1214
      %v1230 = vadd.f32 %v1210, %v1214
      %vm1231 = vcmp.gt.f32.partialorder %v1215, 0.0
      %vm1232 = vcmp.gt.f32.partialorder %v1216, 0.0
      %vm1233 = vcmp.gt.f32.partialorder %v1217, 0.0
      %vm1234 = vcmp.gt.f32.partialorder %v1218, 0.0
      %vm1235 = vcmp.gt.f32.partialorder %v1219, 0.0
      %vm1236 = vcmp.gt.f32.partialorder %v1220, 0.0
      %vm1237 = vcmp.gt.f32.partialorder %v1221, 0.0
      %vm1238 = vcmp.gt.f32.partialorder %v1222, 0.0
      %vm1239 = vcmp.gt.f32.partialorder %v1223, 0.0
      %vm1240 = vcmp.gt.f32.partialorder %v1224, 0.0
      %vm1241 = vcmp.gt.f32.partialorder %v1225, 0.0
      %vm1242 = vcmp.gt.f32.partialorder %v1226, 0.0
      %vm1243 = vcmp.gt.f32.partialorder %v1227, 0.0
      %vm1244 = vcmp.gt.f32.partialorder %v1228, 0.0
      %vm1245 = vcmp.gt.f32.partialorder %v1229, 0.0
      %vm1246 = vcmp.gt.f32.partialorder %v1230, 0.0
      %v1247 = vmul.f32 %v1215, 0.2
      %v1248 = vmul.f32 %v1216, 0.2
      %v1249 = vmul.f32 %v1217, 0.2
      %v1250 = vmul.f32 %v1218, 0.2
      %v1251 = vmul.f32 %v1219, 0.2
      %v1252 = vmul.f32 %v1220, 0.2
      %v1253 = vmul.f32 %v1221, 0.2
      %v1254 = vmul.f32 %v1222, 0.2
      %v1255 = vmul.f32 %v1223, 0.2
      %v1256 = vmul.f32 %v1224, 0.2
      %v1257 = vmul.f32 %v1225, 0.2
      %v1258 = vmul.f32 %v1226, 0.2
      %v1259 = vmul.f32 %v1227, 0.2
      %v1260 = vmul.f32 %v1228, 0.2
      %v1261 = vmul.f32 %v1229, 0.2
      %v1262 = vmul.f32 %v1230, 0.2
      %v1263 = vsel %vm1231, %v1215, %v1247
      %v1264 = vsel %vm1232, %v1216, %v1248
      %v1265 = vsel %vm1233, %v1217, %v1249
      %v1266 = vsel %vm1234, %v1218, %v1250
      %v1267 = vsel %vm1235, %v1219, %v1251
      %v1268 = vsel %vm1236, %v1220, %v1252
      %v1269 = vsel %vm1237, %v1221, %v1253
      %v1270 = vsel %vm1238, %v1222, %v1254
      %v1271 = vsel %vm1239, %v1223, %v1255
      %v1272 = vsel %vm1240, %v1224, %v1256
      %v1273 = vsel %vm1241, %v1225, %v1257
      %v1274 = vsel %vm1242, %v1226, %v1258
      %v1275 = vsel %vm1243, %v1227, %v1259
      %v1276 = vsel %vm1244, %v1228, %v1260
      %v1277 = vsel %vm1245, %v1229, %v1261
      %v1278 = vsel %vm1246, %v1230, %v1262
      %v1279 = vsel %vm228, %v1263, -1e+30
      %v1280 = vsel %vm229, %v1264, -1e+30
      %v1281 = vsel %vm230, %v1265, -1e+30
      %v1282 = vsel %vm231, %v1266, -1e+30
      %v1283 = vsel %vm232, %v1267, -1e+30
      %v1284 = vsel %vm233, %v1268, -1e+30
      %v1285 = vsel %vm234, %v1269, -1e+30
      %v1286 = vsel %vm235, %v1270, -1e+30
      %v1287 = vsel %vm236, %v1271, -1e+30
      %v1288 = vsel %vm237, %v1272, -1e+30
      %v1289 = vsel %vm238, %v1273, -1e+30
      %v1290 = vsel %vm239, %v1274, -1e+30
      %v1291 = vsel %vm240, %v1275, -1e+30
      %v1292 = vsel %vm241, %v1276, -1e+30
      %v1293 = vsel %vm242, %v1277, -1e+30
      %v1294 = vsel %vm243, %v1278, -1e+30
      %1295 = vmax.xlane.f32.xlu0 %v1279
      %v1296 = vpop.xlane.xlu0 %1295
      %1297 = vmax.xlane.f32.xlu0 %v1280
      %v1298 = vpop.xlane.xlu0 %1297
      %1299 = vmax.xlane.f32.xlu0 %v1281
      %v1300 = vpop.xlane.xlu0 %1299
      %1301 = vmax.xlane.f32.xlu0 %v1282
      %v1302 = vpop.xlane.xlu0 %1301
      %1303 = vmax.xlane.f32.xlu0 %v1283
      %v1304 = vpop.xlane.xlu0 %1303
      %1305 = vmax.xlane.f32.xlu0 %v1284
      %v1306 = vpop.xlane.xlu0 %1305
      %1307 = vmax.xlane.f32.xlu0 %v1285
      %v1308 = vpop.xlane.xlu0 %1307
      %1309 = vmax.xlane.f32.xlu0 %v1286
      %v1310 = vpop.xlane.xlu0 %1309
      %1311 = vmax.xlane.f32.xlu0 %v1287
      %v1312 = vpop.xlane.xlu0 %1311
      %1313 = vmax.xlane.f32.xlu0 %v1288
      %v1314 = vpop.xlane.xlu0 %1313
      %1315 = vmax.xlane.f32.xlu0 %v1289
      %v1316 = vpop.xlane.xlu0 %1315
      %1317 = vmax.xlane.f32.xlu0 %v1290
      %v1318 = vpop.xlane.xlu0 %1317
      %1319 = vmax.xlane.f32.xlu0 %v1291
      %v1320 = vpop.xlane.xlu0 %1319
      %1321 = vmax.xlane.f32.xlu0 %v1292
      %v1322 = vpop.xlane.xlu0 %1321
      %1323 = vmax.xlane.f32.xlu0 %v1293
      %v1324 = vpop.xlane.xlu0 %1323
      %1325 = vmax.xlane.f32.xlu0 %v1294
      %v1326 = vpop.xlane.xlu0 %1325
      %v1327 = vsub.f32 %v1279, %v1296
      %v1328 = vsub.f32 %v1280, %v1298
      %v1329 = vsub.f32 %v1281, %v1300
      %v1330 = vsub.f32 %v1282, %v1302
      %v1331 = vsub.f32 %v1283, %v1304
      %v1332 = vsub.f32 %v1284, %v1306
      %v1333 = vsub.f32 %v1285, %v1308
      %v1334 = vsub.f32 %v1286, %v1310
      %v1335 = vsub.f32 %v1287, %v1312
      %v1336 = vsub.f32 %v1288, %v1314
      %v1337 = vsub.f32 %v1289, %v1316
      %v1338 = vsub.f32 %v1290, %v1318
      %v1339 = vsub.f32 %v1291, %v1320
      %v1340 = vsub.f32 %v1292, %v1322
      %v1341 = vsub.f32 %v1293, %v1324
      %v1342 = vsub.f32 %v1294, %v1326
      %v1343 = vmul.f32 %v1327, 1.442695
      %v1344 = vpow.pop %v1343
      %v1345 = vmul.f32 %v1328, 1.442695
      %v1346 = vpow.pop %v1345
      %v1347 = vmul.f32 %v1329, 1.442695
      %v1348 = vpow.pop %v1347
      %v1349 = vmul.f32 %v1330, 1.442695
      %v1350 = vpow.pop %v1349
      %v1351 = vmul.f32 %v1331, 1.442695
      %v1352 = vpow.pop %v1351
      %v1353 = vmul.f32 %v1332, 1.442695
      %v1354 = vpow.pop %v1353
      %v1355 = vmul.f32 %v1333, 1.442695
      %v1356 = vpow.pop %v1355
      %v1357 = vmul.f32 %v1334, 1.442695
      %v1358 = vpow.pop %v1357
      %v1359 = vmul.f32 %v1335, 1.442695
      %v1360 = vpow.pop %v1359
      %v1361 = vmul.f32 %v1336, 1.442695
      %v1362 = vpow.pop %v1361
      %v1363 = vmul.f32 %v1337, 1.442695
      %v1364 = vpow.pop %v1363
      %v1365 = vmul.f32 %v1338, 1.442695
      %v1366 = vpow.pop %v1365
      %v1367 = vmul.f32 %v1339, 1.442695
      %v1368 = vpow.pop %v1367
      %v1369 = vmul.f32 %v1340, 1.442695
      %v1370 = vpow.pop %v1369
      %v1371 = vmul.f32 %v1341, 1.442695
      %v1372 = vpow.pop %v1371
      %v1373 = vmul.f32 %v1342, 1.442695
      %v1374 = vpow.pop %v1373
      %1375 = vadd.xlane.f32.xlu0 %v1344
      %v1376 = vpop.xlane.xlu0 %1375
      %1377 = vadd.xlane.f32.xlu0 %v1346
      %v1378 = vpop.xlane.xlu0 %1377
      %1379 = vadd.xlane.f32.xlu0 %v1348
      %v1380 = vpop.xlane.xlu0 %1379
      %1381 = vadd.xlane.f32.xlu0 %v1350
      %v1382 = vpop.xlane.xlu0 %1381
      %1383 = vadd.xlane.f32.xlu0 %v1352
      %v1384 = vpop.xlane.xlu0 %1383
      %1385 = vadd.xlane.f32.xlu0 %v1354
      %v1386 = vpop.xlane.xlu0 %1385
      %1387 = vadd.xlane.f32.xlu0 %v1356
      %v1388 = vpop.xlane.xlu0 %1387
      %1389 = vadd.xlane.f32.xlu0 %v1358
      %v1390 = vpop.xlane.xlu0 %1389
      %1391 = vadd.xlane.f32.xlu0 %v1360
      %v1392 = vpop.xlane.xlu0 %1391
      %1393 = vadd.xlane.f32.xlu0 %v1362
      %v1394 = vpop.xlane.xlu0 %1393
      %1395 = vadd.xlane.f32.xlu0 %v1364
      %v1396 = vpop.xlane.xlu0 %1395
      %1397 = vadd.xlane.f32.xlu0 %v1366
      %v1398 = vpop.xlane.xlu0 %1397
      %1399 = vadd.xlane.f32.xlu0 %v1368
      %v1400 = vpop.xlane.xlu0 %1399
      %1401 = vadd.xlane.f32.xlu0 %v1370
      %v1402 = vpop.xlane.xlu0 %1401
      %1403 = vadd.xlane.f32.xlu0 %v1372
      %v1404 = vpop.xlane.xlu0 %1403
      %1405 = vadd.xlane.f32.xlu0 %v1374
      %v1406 = vpop.xlane.xlu0 %1405
      %v1407 = vrcp.pop %v1376
      %v1408 = vrcp.pop %v1378
      %v1409 = vrcp.pop %v1380
      %v1410 = vrcp.pop %v1382
      %v1411 = vrcp.pop %v1384
      %v1412 = vrcp.pop %v1386
      %v1413 = vrcp.pop %v1388
      %v1414 = vrcp.pop %v1390
      %v1415 = vrcp.pop %v1392
      %v1416 = vrcp.pop %v1394
      %v1417 = vrcp.pop %v1396
      %v1418 = vrcp.pop %v1398
      %v1419 = vrcp.pop %v1400
      %v1420 = vrcp.pop %v1402
      %v1421 = vrcp.pop %v1404
      %v1422 = vrcp.pop %v1406
      %v1423 = vmul.f32 %v1344, %v1407
      %v1424 = vmul.f32 %v1346, %v1408
      %v1425 = vmul.f32 %v1348, %v1409
      %v1426 = vmul.f32 %v1350, %v1410
      %v1427 = vmul.f32 %v1352, %v1411
      %v1428 = vmul.f32 %v1354, %v1412
      %v1429 = vmul.f32 %v1356, %v1413
      %v1430 = vmul.f32 %v1358, %v1414
      %v1431 = vmul.f32 %v1360, %v1415
      %v1432 = vmul.f32 %v1362, %v1416
      %v1433 = vmul.f32 %v1364, %v1417
      %v1434 = vmul.f32 %v1366, %v1418
      %v1435 = vmul.f32 %v1368, %v1419
      %v1436 = vmul.f32 %v1370, %v1420
      %v1437 = vmul.f32 %v1372, %v1421
      %v1438 = vmul.f32 %v1374, %v1422
      %1439 = vrot.lane.b32.xlu0 %v373, 112
      %v1440 = vpop.permute.xlu0 %1439
      %1441 = vrot.lane.b32.xlu0 %v378, 112
      %v1442 = vpop.permute.xlu0 %1441
      %1443 = vrot.lane.b32.xlu0 %v383, 112
      %v1444 = vpop.permute.xlu0 %1443
      %1445 = vrot.lane.b32.xlu0 %v388, 112
      %v1446 = vpop.permute.xlu0 %1445
      %1447 = vrot.lane.b32.xlu0 %v393, 112
      %v1448 = vpop.permute.xlu0 %1447
      %1449 = vrot.lane.b32.xlu0 %v398, 112
      %v1450 = vpop.permute.xlu0 %1449
      %1451 = vrot.lane.b32.xlu0 %v403, 112
      %v1452 = vpop.permute.xlu0 %1451
      %1453 = vrot.lane.b32.xlu0 %v408, 112
      %v1454 = vpop.permute.xlu0 %1453
      %1455 = vrot.lane.b32.xlu0 %v413, 112
      %v1456 = vpop.permute.xlu0 %1455
      %1457 = vrot.lane.b32.xlu0 %v418, 112
      %v1458 = vpop.permute.xlu0 %1457
      %1459 = vrot.lane.b32.xlu0 %v423, 112
      %v1460 = vpop.permute.xlu0 %1459
      %1461 = vrot.lane.b32.xlu0 %v428, 112
      %v1462 = vpop.permute.xlu0 %1461
      %1463 = vrot.lane.b32.xlu0 %v433, 112
      %v1464 = vpop.permute.xlu0 %1463
      %1465 = vrot.lane.b32.xlu0 %v438, 112
      %v1466 = vpop.permute.xlu0 %1465
      %1467 = vrot.lane.b32.xlu0 %v443, 112
      %v1468 = vpop.permute.xlu0 %1467
      %1469 = vrot.lane.b32.xlu0 %v448, 112
      %v1470 = vpop.permute.xlu0 %1469
      %1488 = vrot.lane.b32.xlu0 %v873, 112
      %v1489 = vpop.permute.xlu0 %1488
      %1491 = vmatprep.subr.mxu0 0.0
      %1492 = vmatpush1.msra.mxu0 %v1440
      %1493 = vmatprep.subr.mxu0 0.0
      %1494 = vmatpush1.msra.mxu0 %v1442
      %1495 = vmatprep.subr.mxu0 0.0
      %1496 = vmatpush1.msra.mxu0 %v1444
      %1497 = vmatprep.subr.mxu0 0.0
      %1498 = vmatpush1.msra.mxu0 %v1446
      %1499 = vmatprep.subr.mxu0 0.0
      %1500 = vmatpush1.msra.mxu0 %v1448
      %1501 = vmatprep.subr.mxu0 0.0
      %1502 = vmatpush1.msra.mxu0 %v1450
      %1503 = vmatprep.subr.mxu0 0.0
      %1504 = vmatpush1.msra.mxu0 %v1452
      %1505 = vmatprep.subr.mxu0 0.0
      %1506 = vmatpush1.msra.mxu0 %v1454
      %1507 = vmatprep.subr.mxu0 0.0
      %1508 = vmatpush1.msra.mxu0 %v1456
      %1509 = vmatprep.subr.mxu0 0.0
      %1510 = vmatpush1.msra.mxu0 %v1458
      %1511 = vmatprep.subr.mxu0 0.0
      %1512 = vmatpush1.msra.mxu0 %v1460
      %1513 = vmatprep.subr.mxu0 0.0
      %1514 = vmatpush1.msra.mxu0 %v1462
      %1515 = vmatprep.subr.mxu0 0.0
      %1516 = vmatpush1.msra.mxu0 %v1464
      %1517 = vmatprep.subr.mxu0 0.0
      %1518 = vmatpush1.msra.mxu0 %v1466
      %1519 = vmatprep.subr.mxu0 0.0
      %1520 = vmatpush1.msra.mxu0 %v1468
      %1521 = vmatprep.subr.mxu0 0.0
      %1522 = vmatpush1.msra.mxu0 %v1470
      %1523 = vmatprep.subr.mxu0 0.0
      %1524 = vmatpush1.msra.mxu0 0.0
      %1525 = vmatprep.subr.mxu0 0.0
      %1526 = vmatpush1.msra.mxu0 0.0
      %1527 = vmatprep.subr.mxu0 0.0
      %1528 = vmatpush1.msra.mxu0 0.0
      %1529 = vmatprep.subr.mxu0 0.0
      %1530 = vmatpush1.msra.mxu0 0.0
      %1531 = vmatprep.subr.mxu0 0.0
      %1532 = vmatpush1.msra.mxu0 0.0
      %1533 = vmatprep.subr.mxu0 0.0
      %1534 = vmatpush1.msra.mxu0 0.0
      %1535 = vmatprep.subr.mxu0 0.0
      %1536 = vmatpush1.msra.mxu0 0.0
      %1537 = vmatprep.subr.mxu0 0.0
      %1538 = vmatpush1.msra.mxu0 0.0
      %1539 = vmatprep.subr.mxu0 0.0
      %1540 = vmatpush1.msra.mxu0 0.0
      %1541 = vmatprep.subr.mxu0 0.0
      %1542 = vmatpush1.msra.mxu0 0.0
      %1543 = vmatprep.subr.mxu0 0.0
      %1544 = vmatpush1.msra.mxu0 0.0
      %1545 = vmatprep.subr.mxu0 0.0
      %1546 = vmatpush1.msra.mxu0 0.0
      %1547 = vmatprep.subr.mxu0 0.0
      %1548 = vmatpush1.msra.mxu0 0.0
      %1549 = vmatprep.subr.mxu0 0.0
      %1550 = vmatpush1.msra.mxu0 0.0
      %1551 = vmatprep.subr.mxu0 0.0
      %1552 = vmatpush1.msra.mxu0 0.0
      %1553 = vmatprep.subr.mxu0 0.0
      %1554 = vmatpush1.msra.mxu0 0.0
      %1555 = vmatprep.mubr.f32.mxu0 0.0
      %1556 = vmatmul.mubr.f32.gmra.mrb[0].mxu0 %v1423
      %v1557 = vpop.f32.mrb[0].mxu0
      %v1558 = vadd.f32 %v1489, %v1557
      %v1559 = vpop.f32.mrb[0].mxu0
      %1560 = vmatprep.mubr.f32.mxu0 0.0
      %1561 = vmatmul.mubr.f32.gmra.mrb[0].mxu0 %v1424
      %v1562 = vpop.f32.mrb[0].mxu0
      %v1563 = vadd.f32 %v1489, %v1562
      %v1564 = vpop.f32.mrb[0].mxu0
      %1565 = vmatprep.mubr.f32.mxu0 0.0
      %1566 = vmatmul.mubr.f32.gmra.mrb[0].mxu0 %v1425
      %v1567 = vpop.f32.mrb[0].mxu0
      %v1568 = vadd.f32 %v1489, %v1567
      %v1569 = vpop.f32.mrb[0].mxu0
      %1570 = vmatprep.mubr.f32.mxu0 0.0
      %1571 = vmatmul.mubr.f32.gmra.mrb[0].mxu0 %v1426
      %v1572 = vpop.f32.mrb[0].mxu0
      %v1573 = vadd.f32 %v1489, %v1572
      %v1574 = vpop.f32.mrb[0].mxu0
      %1575 = vmatprep.mubr.f32.mxu0 0.0
      %1576 = vmatmul.mubr.f32.gmra.mrb[0].mxu0 %v1427
      %v1577 = vpop.f32.mrb[0].mxu0
      %v1578 = vadd.f32 %v1489, %v1577
      %v1579 = vpop.f32.mrb[0].mxu0
      %1580 = vmatprep.mubr.f32.mxu0 0.0
      %1581 = vmatmul.mubr.f32.gmra.mrb[0].mxu0 %v1428
      %v1582 = vpop.f32.mrb[0].mxu0
      %v1583 = vadd.f32 %v1489, %v1582
      %v1584 = vpop.f32.mrb[0].mxu0
      %1585 = vmatprep.mubr.f32.mxu0 0.0
      %1586 = vmatmul.mubr.f32.gmra.mrb[0].mxu0 %v1429
      %v1587 = vpop.f32.mrb[0].mxu0
      %v1588 = vadd.f32 %v1489, %v1587
      %v1589 = vpop.f32.mrb[0].mxu0
      %1590 = vmatprep.mubr.f32.mxu0 0.0
      %1591 = vmatmul.mubr.f32.gmra.mrb[0].mxu0 %v1430
      %v1592 = vpop.f32.mrb[0].mxu0
      %v1593 = vadd.f32 %v1489, %v1592
      %v1594 = vpop.f32.mrb[0].mxu0
      %1595 = vmatprep.mubr.f32.mxu0 0.0
      %1596 = vmatmul.mubr.f32.gmra.mrb[0].mxu0 %v1431
      %v1597 = vpop.f32.mrb[0].mxu0
      %v1598 = vadd.f32 %v1489, %v1597
      %v1599 = vpop.f32.mrb[0].mxu0
      %1600 = vmatprep.mubr.f32.mxu0 0.0
      %1601 = vmatmul.mubr.f32.gmra.mrb[0].mxu0 %v1432
      %v1602 = vpop.f32.mrb[0].mxu0
      %v1603 = vadd.f32 %v1489, %v1602
      %v1604 = vpop.f32.mrb[0].mxu0
      %1605 = vmatprep.mubr.f32.mxu0 0.0
      %1606 = vmatmul.mubr.f32.gmra.mrb[0].mxu0 %v1433
      %v1607 = vpop.f32.mrb[0].mxu0
      %v1608 = vadd.f32 %v1489, %v1607
      %v1609 = vpop.f32.mrb[0].mxu0
      %1610 = vmatprep.mubr.f32.mxu0 0.0
      %1611 = vmatmul.mubr.f32.gmra.mrb[0].mxu0 %v1434
      %v1612 = vpop.f32.mrb[0].mxu0
      %v1613 = vadd.f32 %v1489, %v1612
      %v1614 = vpop.f32.mrb[0].mxu0
      %1615 = vmatprep.mubr.f32.mxu0 0.0
      %1616 = vmatmul.mubr.f32.gmra.mrb[0].mxu0 %v1435
      %v1617 = vpop.f32.mrb[0].mxu0
      %v1618 = vadd.f32 %v1489, %v1617
      %v1619 = vpop.f32.mrb[0].mxu0
      %1620 = vmatprep.mubr.f32.mxu0 0.0
      %1621 = vmatmul.mubr.f32.gmra.mrb[0].mxu0 %v1436
      %v1622 = vpop.f32.mrb[0].mxu0
      %v1623 = vadd.f32 %v1489, %v1622
      %v1624 = vpop.f32.mrb[0].mxu0
      %1625 = vmatprep.mubr.f32.mxu0 0.0
      %1626 = vmatmul.mubr.f32.gmra.mrb[0].mxu0 %v1437
      %v1627 = vpop.f32.mrb[0].mxu0
      %v1628 = vadd.f32 %v1489, %v1627
      %v1629 = vpop.f32.mrb[0].mxu0
      %1630 = vmatprep.mubr.f32.mxu0 0.0
      %1631 = vmatmul.mubr.f32.gmra.mrb[0].mxu0 %v1438
      %v1632 = vpop.f32.mrb[0].mxu0
      %v1633 = vadd.f32 %v1489, %v1632
      %v1634 = vpop.f32.mrb[0].mxu0
      %1635 = vdwg.mxu0
      %vm1636 = vcmp.gt.f32.partialorder %v1558, 0.0
      %vm1637 = vcmp.gt.f32.partialorder %v1563, 0.0
      %vm1638 = vcmp.gt.f32.partialorder %v1568, 0.0
      %vm1639 = vcmp.gt.f32.partialorder %v1573, 0.0
      %vm1640 = vcmp.gt.f32.partialorder %v1578, 0.0
      %vm1641 = vcmp.gt.f32.partialorder %v1583, 0.0
      %vm1642 = vcmp.gt.f32.partialorder %v1588, 0.0
      %vm1643 = vcmp.gt.f32.partialorder %v1593, 0.0
      %vm1644 = vcmp.gt.f32.partialorder %v1598, 0.0
      %vm1645 = vcmp.gt.f32.partialorder %v1603, 0.0
      %vm1646 = vcmp.gt.f32.partialorder %v1608, 0.0
      %vm1647 = vcmp.gt.f32.partialorder %v1613, 0.0
      %vm1648 = vcmp.gt.f32.partialorder %v1618, 0.0
      %vm1649 = vcmp.gt.f32.partialorder %v1623, 0.0
      %vm1650 = vcmp.gt.f32.partialorder %v1628, 0.0
      %vm1651 = vcmp.gt.f32.partialorder %v1633, 0.0
      %v1652 = vmul.f32 %v1558, 1.442695
      %v1653 = vpow.pop %v1652
      %v1654 = vmul.f32 %v1563, 1.442695
      %v1655 = vpow.pop %v1654
      %v1656 = vmul.f32 %v1568, 1.442695
      %v1657 = vpow.pop %v1656
      %v1658 = vmul.f32 %v1573, 1.442695
      %v1659 = vpow.pop %v1658
      %v1660 = vmul.f32 %v1578, 1.442695
      %v1661 = vpow.pop %v1660
      %v1662 = vmul.f32 %v1583, 1.442695
      %v1663 = vpow.pop %v1662
      %v1664 = vmul.f32 %v1588, 1.442695
      %v1665 = vpow.pop %v1664
      %v1666 = vmul.f32 %v1593, 1.442695
      %v1667 = vpow.pop %v1666
      %v1668 = vmul.f32 %v1598, 1.442695
      %v1669 = vpow.pop %v1668
      %v1670 = vmul.f32 %v1603, 1.442695
      %v1671 = vpow.pop %v1670
      %v1672 = vmul.f32 %v1608, 1.442695
      %v1673 = vpow.pop %v1672
      %v1674 = vmul.f32 %v1613, 1.442695
      %v1675 = vpow.pop %v1674
      %v1676 = vmul.f32 %v1618, 1.442695
      %v1677 = vpow.pop %v1676
      %v1678 = vmul.f32 %v1623, 1.442695
      %v1679 = vpow.pop %v1678
      %v1680 = vmul.f32 %v1628, 1.442695
      %v1681 = vpow.pop %v1680
      %v1682 = vmul.f32 %v1633, 1.442695
      %v1683 = vpow.pop %v1682
      %v1684 = vsub.f32 %v1653, 1.0
      %v1685 = vsub.f32 %v1655, 1.0
      %v1686 = vsub.f32 %v1657, 1.0
      %v1687 = vsub.f32 %v1659, 1.0
      %v1688 = vsub.f32 %v1661, 1.0
      %v1689 = vsub.f32 %v1663, 1.0
      %v1690 = vsub.f32 %v1665, 1.0
      %v1691 = vsub.f32 %v1667, 1.0
      %v1692 = vsub.f32 %v1669, 1.0
      %v1693 = vsub.f32 %v1671, 1.0
      %v1694 = vsub.f32 %v1673, 1.0
      %v1695 = vsub.f32 %v1675, 1.0
      %v1696 = vsub.f32 %v1677, 1.0
      %v1697 = vsub.f32 %v1679, 1.0
      %v1698 = vsub.f32 %v1681, 1.0
      %v1699 = vsub.f32 %v1683, 1.0
      %v1700 = vsel %vm1636, %v1558, %v1684
      %v1701 = vsel %vm1637, %v1563, %v1685
      %v1702 = vsel %vm1638, %v1568, %v1686
      %v1703 = vsel %vm1639, %v1573, %v1687
      %v1704 = vsel %vm1640, %v1578, %v1688
      %v1705 = vsel %vm1641, %v1583, %v1689
      %v1706 = vsel %vm1642, %v1588, %v1690
      %v1707 = vsel %vm1643, %v1593, %v1691
      %v1708 = vsel %vm1644, %v1598, %v1692
      %v1709 = vsel %vm1645, %v1603, %v1693
      %v1710 = vsel %vm1646, %v1608, %v1694
      %v1711 = vsel %vm1647, %v1613, %v1695
      %v1712 = vsel %vm1648, %v1618, %v1696
      %v1713 = vsel %vm1649, %v1623, %v1697
      %v1714 = vsel %vm1650, %v1628, %v1698
      %v1715 = vsel %vm1651, %v1633, %v1699
      %v1717 = vsel %vm593, %v1700, 0
      %v1720 = vsel %vm593, %v1701, 0
      %v1723 = vsel %vm593, %v1702, 0
      %v1726 = vsel %vm593, %v1703, 0
      %v1729 = vsel %vm593, %v1704, 0
      %v1732 = vsel %vm593, %v1705, 0
      %v1735 = vsel %vm593, %v1706, 0
      %v1738 = vsel %vm593, %v1707, 0
      %v1741 = vsel %vm593, %v1708, 0
      %v1744 = vsel %vm593, %v1709, 0
      %v1747 = vsel %vm593, %v1710, 0
      %v1750 = vsel %vm593, %v1711, 0
      %v1753 = vsel %vm593, %v1712, 0
      %v1756 = vsel %vm593, %v1713, 0
      %v1759 = vsel %vm593, %v1714, 0
      %v1762 = vsel %vm593, %v1715, 0
      %1764 = vmatprep.subr.mxu0 0.0
      %1765 = vmatpush1.msra.mxu0 %v250
      %1766 = vmatprep.subr.mxu0 0.0
      %1767 = vmatpush1.msra.mxu0 %v251
      %1768 = vmatprep.subr.mxu0 0.0
      %1769 = vmatpush1.msra.mxu0 0.0
      %1770 = vmatprep.subr.mxu0 0.0
      %1771 = vmatpush1.msra.mxu0 0.0
      %1772 = vmatprep.subr.mxu0 0.0
      %1773 = vmatpush1.msra.mxu0 0.0
      %1774 = vmatprep.subr.mxu0 0.0
      %1775 = vmatpush1.msra.mxu0 0.0
      %1776 = vmatprep.subr.mxu0 0.0
      %1777 = vmatpush1.msra.mxu0 0.0
      %1778 = vmatprep.subr.mxu0 0.0
      %1779 = vmatpush1.msra.mxu0 0.0
      %1780 = vmatprep.subr.mxu0 0.0
      %1781 = vmatpush1.msra.mxu0 0.0
      %1782 = vmatprep.subr.mxu0 0.0
      %1783 = vmatpush1.msra.mxu0 0.0
      %1784 = vmatprep.subr.mxu0 0.0
      %1785 = vmatpush1.msra.mxu0 0.0
      %1786 = vmatprep.subr.mxu0 0.0
      %1787 = vmatpush1.msra.mxu0 0.0
      %1788 = vmatprep.subr.mxu0 0.0
      %1789 = vmatpush1.msra.mxu0 0.0
      %1790 = vmatprep.subr.mxu0 0.0
      %1791 = vmatpush1.msra.mxu0 0.0
      %1792 = vmatprep.subr.mxu0 0.0
      %1793 = vmatpush1.msra.mxu0 0.0
      %1794 = vmatprep.subr.mxu0 0.0
      %1795 = vmatpush1.msra.mxu0 0.0
      %1796 = vmatprep.subr.mxu0 0.0
      %1797 = vmatpush1.msra.mxu0 0.0
      %1798 = vmatprep.subr.mxu0 0.0
      %1799 = vmatpush1.msra.mxu0 0.0
      %1800 = vmatprep.subr.mxu0 0.0
      %1801 = vmatpush1.msra.mxu0 0.0
      %1802 = vmatprep.subr.mxu0 0.0
      %1803 = vmatpush1.msra.mxu0 0.0
      %1804 = vmatprep.subr.mxu0 0.0
      %1805 = vmatpush1.msra.mxu0 0.0
      %1806 = vmatprep.subr.mxu0 0.0
      %1807 = vmatpush1.msra.mxu0 0.0
      %1808 = vmatprep.subr.mxu0 0.0
      %1809 = vmatpush1.msra.mxu0 0.0
      %1810 = vmatprep.subr.mxu0 0.0
      %1811 = vmatpush1.msra.mxu0 0.0
      %1812 = vmatprep.subr.mxu0 0.0
      %1813 = vmatpush1.msra.mxu0 0.0
      %1814 = vmatprep.subr.mxu0 0.0
      %1815 = vmatpush1.msra.mxu0 0.0
      %1816 = vmatprep.subr.mxu0 0.0
      %1817 = vmatpush1.msra.mxu0 0.0
      %1818 = vmatprep.subr.mxu0 0.0
      %1819 = vmatpush1.msra.mxu0 0.0
      %1820 = vmatprep.subr.mxu0 0.0
      %1821 = vmatpush1.msra.mxu0 0.0
      %1822 = vmatprep.subr.mxu0 0.0
      %1823 = vmatpush1.msra.mxu0 0.0
      %1824 = vmatprep.subr.mxu0 0.0
      %1825 = vmatpush1.msra.mxu0 0.0
      %1826 = vmatprep.subr.mxu0 0.0
      %1827 = vmatpush1.msra.mxu0 0.0
      %1828 = vmatprep.mubr.f32.mxu0 0.0
      %1829 = vmatmul.mubr.f32.gmra.mrb[0].mxu0 %v1717
      %v1830 = vpop.f32.mrb[0].mxu0
      %v1831 = vadd.f32 0.0, %v1830
      %v1832 = vpop.f32.mrb[0].mxu0
      %1833 = vmatprep.mubr.f32.mxu0 0.0
      %1834 = vmatmul.mubr.f32.gmra.mrb[0].mxu0 %v1720
      %v1835 = vpop.f32.mrb[0].mxu0
      %v1836 = vadd.f32 0.0, %v1835
      %v1837 = vpop.f32.mrb[0].mxu0
      %1838 = vmatprep.mubr.f32.mxu0 0.0
      %1839 = vmatmul.mubr.f32.gmra.mrb[0].mxu0 %v1723
      %v1840 = vpop.f32.mrb[0].mxu0
      %v1841 = vadd.f32 0.0, %v1840
      %v1842 = vpop.f32.mrb[0].mxu0
      %1843 = vmatprep.mubr.f32.mxu0 0.0
      %1844 = vmatmul.mubr.f32.gmra.mrb[0].mxu0 %v1726
      %v1845 = vpop.f32.mrb[0].mxu0
      %v1846 = vadd.f32 0.0, %v1845
      %v1847 = vpop.f32.mrb[0].mxu0
      %1848 = vmatprep.mubr.f32.mxu0 0.0
      %1849 = vmatmul.mubr.f32.gmra.mrb[0].mxu0 %v1729
      %v1850 = vpop.f32.mrb[0].mxu0
      %v1851 = vadd.f32 0.0, %v1850
      %v1852 = vpop.f32.mrb[0].mxu0
      %1853 = vmatprep.mubr.f32.mxu0 0.0
      %1854 = vmatmul.mubr.f32.gmra.mrb[0].mxu0 %v1732
      %v1855 = vpop.f32.mrb[0].mxu0
      %v1856 = vadd.f32 0.0, %v1855
      %v1857 = vpop.f32.mrb[0].mxu0
      %1858 = vmatprep.mubr.f32.mxu0 0.0
      %1859 = vmatmul.mubr.f32.gmra.mrb[0].mxu0 %v1735
      %v1860 = vpop.f32.mrb[0].mxu0
      %v1861 = vadd.f32 0.0, %v1860
      %v1862 = vpop.f32.mrb[0].mxu0
      %1863 = vmatprep.mubr.f32.mxu0 0.0
      %1864 = vmatmul.mubr.f32.gmra.mrb[0].mxu0 %v1738
      %v1865 = vpop.f32.mrb[0].mxu0
      %v1866 = vadd.f32 0.0, %v1865
      %v1867 = vpop.f32.mrb[0].mxu0
      %1868 = vmatprep.mubr.f32.mxu0 0.0
      %1869 = vmatmul.mubr.f32.gmra.mrb[0].mxu0 %v1741
      %v1870 = vpop.f32.mrb[0].mxu0
      %v1871 = vadd.f32 0.0, %v1870
      %v1872 = vpop.f32.mrb[0].mxu0
      %1873 = vmatprep.mubr.f32.mxu0 0.0
      %1874 = vmatmul.mubr.f32.gmra.mrb[0].mxu0 %v1744
      %v1875 = vpop.f32.mrb[0].mxu0
      %v1876 = vadd.f32 0.0, %v1875
      %v1877 = vpop.f32.mrb[0].mxu0
      %1878 = vmatprep.mubr.f32.mxu0 0.0
      %1879 = vmatmul.mubr.f32.gmra.mrb[0].mxu0 %v1747
      %v1880 = vpop.f32.mrb[0].mxu0
      %v1881 = vadd.f32 0.0, %v1880
      %v1882 = vpop.f32.mrb[0].mxu0
      %1883 = vmatprep.mubr.f32.mxu0 0.0
      %1884 = vmatmul.mubr.f32.gmra.mrb[0].mxu0 %v1750
      %v1885 = vpop.f32.mrb[0].mxu0
      %v1886 = vadd.f32 0.0, %v1885
      %v1887 = vpop.f32.mrb[0].mxu0
      %1888 = vmatprep.mubr.f32.mxu0 0.0
      %1889 = vmatmul.mubr.f32.gmra.mrb[0].mxu0 %v1753
      %v1890 = vpop.f32.mrb[0].mxu0
      %v1891 = vadd.f32 0.0, %v1890
      %v1892 = vpop.f32.mrb[0].mxu0
      %1893 = vmatprep.mubr.f32.mxu0 0.0
      %1894 = vmatmul.mubr.f32.gmra.mrb[0].mxu0 %v1756
      %v1895 = vpop.f32.mrb[0].mxu0
      %v1896 = vadd.f32 0.0, %v1895
      %v1897 = vpop.f32.mrb[0].mxu0
      %1898 = vmatprep.mubr.f32.mxu0 0.0
      %1899 = vmatmul.mubr.f32.gmra.mrb[0].mxu0 %v1759
      %v1900 = vpop.f32.mrb[0].mxu0
      %v1901 = vadd.f32 0.0, %v1900
      %v1902 = vpop.f32.mrb[0].mxu0
      %1903 = vmatprep.mubr.f32.mxu0 0.0
      %1904 = vmatmul.mubr.f32.gmra.mrb[0].mxu0 %v1762
      %v1905 = vpop.f32.mrb[0].mxu0
      %v1906 = vadd.f32 0.0, %v1905
      %v1907 = vpop.f32.mrb[0].mxu0
      %1908 = vdwg.mxu0
      %v1910 = vsel %vm593, %v1083, 0
      %v1913 = vsel %vm593, %v1084, 0
      %v1916 = vsel %vm593, %v1085, 0
      %v1919 = vsel %vm593, %v1086, 0
      %v1922 = vsel %vm593, %v1087, 0
      %v1925 = vsel %vm593, %v1088, 0
      %v1928 = vsel %vm593, %v1089, 0
      %v1931 = vsel %vm593, %v1090, 0
      %v1934 = vsel %vm593, %v1091, 0
      %v1937 = vsel %vm593, %v1092, 0
      %v1940 = vsel %vm593, %v1093, 0
      %v1943 = vsel %vm593, %v1094, 0
      %v1946 = vsel %vm593, %v1095, 0
      %v1949 = vsel %vm593, %v1096, 0
      %v1952 = vsel %vm593, %v1097, 0
      %v1955 = vsel %vm593, %v1098, 0
      %1957 = vmatprep.subr.mxu0 0.0
      %1958 = vmatpush1.msra.mxu0 %v248
      %1959 = vmatprep.subr.mxu0 0.0
      %1960 = vmatpush1.msra.mxu0 %v249
      %1961 = vmatprep.subr.mxu0 0.0
      %1962 = vmatpush1.msra.mxu0 0.0
      %1963 = vmatprep.subr.mxu0 0.0
      %1964 = vmatpush1.msra.mxu0 0.0
      %1965 = vmatprep.subr.mxu0 0.0
      %1966 = vmatpush1.msra.mxu0 0.0
      %1967 = vmatprep.subr.mxu0 0.0
      %1968 = vmatpush1.msra.mxu0 0.0
      %1969 = vmatprep.subr.mxu0 0.0
      %1970 = vmatpush1.msra.mxu0 0.0
      %1971 = vmatprep.subr.mxu0 0.0
      %1972 = vmatpush1.msra.mxu0 0.0
      %1973 = vmatprep.subr.mxu0 0.0
      %1974 = vmatpush1.msra.mxu0 0.0
      %1975 = vmatprep.subr.mxu0 0.0
      %1976 = vmatpush1.msra.mxu0 0.0
      %1977 = vmatprep.subr.mxu0 0.0
      %1978 = vmatpush1.msra.mxu0 0.0
      %1979 = vmatprep.subr.mxu0 0.0
      %1980 = vmatpush1.msra.mxu0 0.0
      %1981 = vmatprep.subr.mxu0 0.0
      %1982 = vmatpush1.msra.mxu0 0.0
      %1983 = vmatprep.subr.mxu0 0.0
      %1984 = vmatpush1.msra.mxu0 0.0
      %1985 = vmatprep.subr.mxu0 0.0
      %1986 = vmatpush1.msra.mxu0 0.0
      %1987 = vmatprep.subr.mxu0 0.0
      %1988 = vmatpush1.msra.mxu0 0.0
      %1989 = vmatprep.subr.mxu0 0.0
      %1990 = vmatpush1.msra.mxu0 0.0
      %1991 = vmatprep.subr.mxu0 0.0
      %1992 = vmatpush1.msra.mxu0 0.0
      %1993 = vmatprep.subr.mxu0 0.0
      %1994 = vmatpush1.msra.mxu0 0.0
      %1995 = vmatprep.subr.mxu0 0.0
      %1996 = vmatpush1.msra.mxu0 0.0
      %1997 = vmatprep.subr.mxu0 0.0
      %1998 = vmatpush1.msra.mxu0 0.0
      %1999 = vmatprep.subr.mxu0 0.0
      %2000 = vmatpush1.msra.mxu0 0.0
      %2001 = vmatprep.subr.mxu0 0.0
      %2002 = vmatpush1.msra.mxu0 0.0
      %2003 = vmatprep.subr.mxu0 0.0
      %2004 = vmatpush1.msra.mxu0 0.0
      %2005 = vmatprep.subr.mxu0 0.0
      %2006 = vmatpush1.msra.mxu0 0.0
      %2007 = vmatprep.subr.mxu0 0.0
      %2008 = vmatpush1.msra.mxu0 0.0
      %2009 = vmatprep.subr.mxu0 0.0
      %2010 = vmatpush1.msra.mxu0 0.0
      %2011 = vmatprep.subr.mxu0 0.0
      %2012 = vmatpush1.msra.mxu0 0.0
      %2013 = vmatprep.subr.mxu0 0.0
      %2014 = vmatpush1.msra.mxu0 0.0
      %2015 = vmatprep.subr.mxu0 0.0
      %2016 = vmatpush1.msra.mxu0 0.0
      %2017 = vmatprep.subr.mxu0 0.0
      %2018 = vmatpush1.msra.mxu0 0.0
      %2019 = vmatprep.subr.mxu0 0.0
      %2020 = vmatpush1.msra.mxu0 0.0
      %2021 = vmatprep.mubr.f32.mxu0 0.0
      %2022 = vmatmul.mubr.f32.gmra.mrb[0].mxu0 %v1910
      %v2023 = vpop.f32.mrb[0].mxu0
      %v2024 = vadd.f32 %v1831, %v2023
      %v2025 = vpop.f32.mrb[0].mxu0
      %2026 = vmatprep.mubr.f32.mxu0 0.0
      %2027 = vmatmul.mubr.f32.gmra.mrb[0].mxu0 %v1913
      %v2028 = vpop.f32.mrb[0].mxu0
      %v2029 = vadd.f32 %v1836, %v2028
      %v2030 = vpop.f32.mrb[0].mxu0
      %2031 = vmatprep.mubr.f32.mxu0 0.0
      %2032 = vmatmul.mubr.f32.gmra.mrb[0].mxu0 %v1916
      %v2033 = vpop.f32.mrb[0].mxu0
      %v2034 = vadd.f32 %v1841, %v2033
      %v2035 = vpop.f32.mrb[0].mxu0
      %2036 = vmatprep.mubr.f32.mxu0 0.0
      %2037 = vmatmul.mubr.f32.gmra.mrb[0].mxu0 %v1919
      %v2038 = vpop.f32.mrb[0].mxu0
      %v2039 = vadd.f32 %v1846, %v2038
      %v2040 = vpop.f32.mrb[0].mxu0
      %2041 = vmatprep.mubr.f32.mxu0 0.0
      %2042 = vmatmul.mubr.f32.gmra.mrb[0].mxu0 %v1922
      %v2043 = vpop.f32.mrb[0].mxu0
      %v2044 = vadd.f32 %v1851, %v2043
      %v2045 = vpop.f32.mrb[0].mxu0
      %2046 = vmatprep.mubr.f32.mxu0 0.0
      %2047 = vmatmul.mubr.f32.gmra.mrb[0].mxu0 %v1925
      %v2048 = vpop.f32.mrb[0].mxu0
      %v2049 = vadd.f32 %v1856, %v2048
      %v2050 = vpop.f32.mrb[0].mxu0
      %2051 = vmatprep.mubr.f32.mxu0 0.0
      %2052 = vmatmul.mubr.f32.gmra.mrb[0].mxu0 %v1928
      %v2053 = vpop.f32.mrb[0].mxu0
      %v2054 = vadd.f32 %v1861, %v2053
      %v2055 = vpop.f32.mrb[0].mxu0
      %2056 = vmatprep.mubr.f32.mxu0 0.0
      %2057 = vmatmul.mubr.f32.gmra.mrb[0].mxu0 %v1931
      %v2058 = vpop.f32.mrb[0].mxu0
      %v2059 = vadd.f32 %v1866, %v2058
      %v2060 = vpop.f32.mrb[0].mxu0
      %2061 = vmatprep.mubr.f32.mxu0 0.0
      %2062 = vmatmul.mubr.f32.gmra.mrb[0].mxu0 %v1934
      %v2063 = vpop.f32.mrb[0].mxu0
      %v2064 = vadd.f32 %v1871, %v2063
      %v2065 = vpop.f32.mrb[0].mxu0
      %2066 = vmatprep.mubr.f32.mxu0 0.0
      %2067 = vmatmul.mubr.f32.gmra.mrb[0].mxu0 %v1937
      %v2068 = vpop.f32.mrb[0].mxu0
      %v2069 = vadd.f32 %v1876, %v2068
      %v2070 = vpop.f32.mrb[0].mxu0
      %2071 = vmatprep.mubr.f32.mxu0 0.0
      %2072 = vmatmul.mubr.f32.gmra.mrb[0].mxu0 %v1940
      %v2073 = vpop.f32.mrb[0].mxu0
      %v2074 = vadd.f32 %v1881, %v2073
      %v2075 = vpop.f32.mrb[0].mxu0
      %2076 = vmatprep.mubr.f32.mxu0 0.0
      %2077 = vmatmul.mubr.f32.gmra.mrb[0].mxu0 %v1943
      %v2078 = vpop.f32.mrb[0].mxu0
      %v2079 = vadd.f32 %v1886, %v2078
      %v2080 = vpop.f32.mrb[0].mxu0
      %2081 = vmatprep.mubr.f32.mxu0 0.0
      %2082 = vmatmul.mubr.f32.gmra.mrb[0].mxu0 %v1946
      %v2083 = vpop.f32.mrb[0].mxu0
      %v2084 = vadd.f32 %v1891, %v2083
      %v2085 = vpop.f32.mrb[0].mxu0
      %2086 = vmatprep.mubr.f32.mxu0 0.0
      %2087 = vmatmul.mubr.f32.gmra.mrb[0].mxu0 %v1949
      %v2088 = vpop.f32.mrb[0].mxu0
      %v2089 = vadd.f32 %v1896, %v2088
      %v2090 = vpop.f32.mrb[0].mxu0
      %2091 = vmatprep.mubr.f32.mxu0 0.0
      %2092 = vmatmul.mubr.f32.gmra.mrb[0].mxu0 %v1952
      %v2093 = vpop.f32.mrb[0].mxu0
      %v2094 = vadd.f32 %v1901, %v2093
      %v2095 = vpop.f32.mrb[0].mxu0
      %2096 = vmatprep.mubr.f32.mxu0 0.0
      %2097 = vmatmul.mubr.f32.gmra.mrb[0].mxu0 %v1955
      %v2098 = vpop.f32.mrb[0].mxu0
      %v2099 = vadd.f32 %v1906, %v2098
      %v2100 = vpop.f32.mrb[0].mxu0
      %2101 = vdwg.mxu0
      %v2102 = vlaneseq
      %v2103 = vshrl.u32 %v2102, 7
      %v2104 = vsub.s32 0, %v2103
      %v2105 = vrot.slane %v253, %v2104
      %v2106 = vmul.f32 %v2024, %v2105
      %v2107 = vmul.f32 %v2029, %v2105
      %v2108 = vmul.f32 %v2034, %v2105
      %v2109 = vmul.f32 %v2039, %v2105
      %v2110 = vmul.f32 %v2044, %v2105
      %v2111 = vmul.f32 %v2049, %v2105
      %v2112 = vmul.f32 %v2054, %v2105
      %v2113 = vmul.f32 %v2059, %v2105
      %v2114 = vmul.f32 %v2064, %v2105
      %v2115 = vmul.f32 %v2069, %v2105
      %v2116 = vmul.f32 %v2074, %v2105
      %v2117 = vmul.f32 %v2079, %v2105
      %v2118 = vmul.f32 %v2084, %v2105
      %v2119 = vmul.f32 %v2089, %v2105
      %v2120 = vmul.f32 %v2094, %v2105
      %v2121 = vmul.f32 %v2099, %v2105
      %vm2122 = vcmask 31744
      %v2123 = vsel %vm2122, %v2106, 0.0
      %2124 = vadd.xlane.f32.xlu0 %v2123
      %v2125 = vpop.xlane.xlu0 %2124
      %v2126 = vsel %vm2122, %v2107, 0.0
      %2127 = vadd.xlane.f32.xlu0 %v2126
      %v2128 = vpop.xlane.xlu0 %2127
      %v2129 = vsel %vm2122, %v2108, 0.0
      %2130 = vadd.xlane.f32.xlu0 %v2129
      %v2131 = vpop.xlane.xlu0 %2130
      %v2132 = vsel %vm2122, %v2109, 0.0
      %2133 = vadd.xlane.f32.xlu0 %v2132
      %v2134 = vpop.xlane.xlu0 %2133
      %v2135 = vsel %vm2122, %v2110, 0.0
      %2136 = vadd.xlane.f32.xlu0 %v2135
      %v2137 = vpop.xlane.xlu0 %2136
      %v2138 = vsel %vm2122, %v2111, 0.0
      %2139 = vadd.xlane.f32.xlu0 %v2138
      %v2140 = vpop.xlane.xlu0 %2139
      %v2141 = vsel %vm2122, %v2112, 0.0
      %2142 = vadd.xlane.f32.xlu0 %v2141
      %v2143 = vpop.xlane.xlu0 %2142
      %v2144 = vsel %vm2122, %v2113, 0.0
      %2145 = vadd.xlane.f32.xlu0 %v2144
      %v2146 = vpop.xlane.xlu0 %2145
      %v2147 = vsel %vm2122, %v2114, 0.0
      %2148 = vadd.xlane.f32.xlu0 %v2147
      %v2149 = vpop.xlane.xlu0 %2148
      %v2150 = vsel %vm2122, %v2115, 0.0
      %2151 = vadd.xlane.f32.xlu0 %v2150
      %v2152 = vpop.xlane.xlu0 %2151
      %v2153 = vsel %vm2122, %v2116, 0.0
      %2154 = vadd.xlane.f32.xlu0 %v2153
      %v2155 = vpop.xlane.xlu0 %2154
      %v2156 = vsel %vm2122, %v2117, 0.0
      %2157 = vadd.xlane.f32.xlu0 %v2156
      %v2158 = vpop.xlane.xlu0 %2157
      %v2159 = vsel %vm2122, %v2118, 0.0
      %2160 = vadd.xlane.f32.xlu0 %v2159
      %v2161 = vpop.xlane.xlu0 %2160
      %v2162 = vsel %vm2122, %v2119, 0.0
      %2163 = vadd.xlane.f32.xlu0 %v2162
      %v2164 = vpop.xlane.xlu0 %2163
      %v2165 = vsel %vm2122, %v2120, 0.0
      %2166 = vadd.xlane.f32.xlu0 %v2165
      %v2167 = vpop.xlane.xlu0 %2166
      %v2168 = vsel %vm2122, %v2121, 0.0
      %2169 = vadd.xlane.f32.xlu0 %v2168
      %v2170 = vpop.xlane.xlu0 %2169
      %v2172 = vsel %vm2122, %v252, 0
      %v2175 = vsel %vm2122, %v2024, 0
      %v2178 = vsel %vm2122, %v2029, 0
      %v2181 = vsel %vm2122, %v2034, 0
      %v2184 = vsel %vm2122, %v2039, 0
      %v2187 = vsel %vm2122, %v2044, 0
      %v2190 = vsel %vm2122, %v2049, 0
      %v2193 = vsel %vm2122, %v2054, 0
      %v2196 = vsel %vm2122, %v2059, 0
      %v2199 = vsel %vm2122, %v2064, 0
      %v2202 = vsel %vm2122, %v2069, 0
      %v2205 = vsel %vm2122, %v2074, 0
      %v2208 = vsel %vm2122, %v2079, 0
      %v2211 = vsel %vm2122, %v2084, 0
      %v2214 = vsel %vm2122, %v2089, 0
      %v2217 = vsel %vm2122, %v2094, 0
      %v2220 = vsel %vm2122, %v2099, 0
      %2222 = vmatprep.subr.mxu0 0.0
      %2223 = vmatpush1.xpose.msra.mxu0 %v2175
      %2224 = vmatprep.subr.mxu0 0.0
      %2225 = vmatpush1.xpose.msra.mxu0 %v2178
      %2226 = vmatprep.subr.mxu0 0.0
      %2227 = vmatpush1.xpose.msra.mxu0 %v2181
      %2228 = vmatprep.subr.mxu0 0.0
      %2229 = vmatpush1.xpose.msra.mxu0 %v2184
      %2230 = vmatprep.subr.mxu0 0.0
      %2231 = vmatpush1.xpose.msra.mxu0 %v2187
      %2232 = vmatprep.subr.mxu0 0.0
      %2233 = vmatpush1.xpose.msra.mxu0 %v2190
      %2234 = vmatprep.subr.mxu0 0.0
      %2235 = vmatpush1.xpose.msra.mxu0 %v2193
      %2236 = vmatprep.subr.mxu0 0.0
      %2237 = vmatpush1.xpose.msra.mxu0 %v2196
      %2238 = vmatprep.subr.mxu0 0.0
      %2239 = vmatpush1.xpose.msra.mxu0 %v2199
      %2240 = vmatprep.subr.mxu0 0.0
      %2241 = vmatpush1.xpose.msra.mxu0 %v2202
      %2242 = vmatprep.subr.mxu0 0.0
      %2243 = vmatpush1.xpose.msra.mxu0 %v2205
      %2244 = vmatprep.subr.mxu0 0.0
      %2245 = vmatpush1.xpose.msra.mxu0 %v2208
      %2246 = vmatprep.subr.mxu0 0.0
      %2247 = vmatpush1.xpose.msra.mxu0 %v2211
      %2248 = vmatprep.subr.mxu0 0.0
      %2249 = vmatpush1.xpose.msra.mxu0 %v2214
      %2250 = vmatprep.subr.mxu0 0.0
      %2251 = vmatpush1.xpose.msra.mxu0 %v2217
      %2252 = vmatprep.subr.mxu0 0.0
      %2253 = vmatpush1.xpose.msra.mxu0 %v2220
      %2254 = vmatprep.subr.mxu0 0.0
      %2255 = vmatpush1.xpose.msra.mxu0 0.0
      %2256 = vmatprep.subr.mxu0 0.0
      %2257 = vmatpush1.xpose.msra.mxu0 0.0
      %2258 = vmatprep.subr.mxu0 0.0
      %2259 = vmatpush1.xpose.msra.mxu0 0.0
      %2260 = vmatprep.subr.mxu0 0.0
      %2261 = vmatpush1.xpose.msra.mxu0 0.0
      %2262 = vmatprep.subr.mxu0 0.0
      %2263 = vmatpush1.xpose.msra.mxu0 0.0
      %2264 = vmatprep.subr.mxu0 0.0
      %2265 = vmatpush1.xpose.msra.mxu0 0.0
      %2266 = vmatprep.subr.mxu0 0.0
      %2267 = vmatpush1.xpose.msra.mxu0 0.0
      %2268 = vmatprep.subr.mxu0 0.0
      %2269 = vmatpush1.xpose.msra.mxu0 0.0
      %2270 = vmatprep.subr.mxu0 0.0
      %2271 = vmatpush1.xpose.msra.mxu0 0.0
      %2272 = vmatprep.subr.mxu0 0.0
      %2273 = vmatpush1.xpose.msra.mxu0 0.0
      %2274 = vmatprep.subr.mxu0 0.0
      %2275 = vmatpush1.xpose.msra.mxu0 0.0
      %2276 = vmatprep.subr.mxu0 0.0
      %2277 = vmatpush1.xpose.msra.mxu0 0.0
      %2278 = vmatprep.subr.mxu0 0.0
      %2279 = vmatpush1.xpose.msra.mxu0 0.0
      %2280 = vmatprep.subr.mxu0 0.0
      %2281 = vmatpush1.xpose.msra.mxu0 0.0
      %2282 = vmatprep.subr.mxu0 0.0
      %2283 = vmatpush1.xpose.msra.mxu0 0.0
      %2284 = vmatprep.subr.mxu0 0.0
      %2285 = vmatpush1.xpose.msra.mxu0 0.0
      %2286 = vmatprep.mubr.f32.mxu0 0.0
      %2287 = vmatmul.mubr.f32.gmra.mrb[0].mxu0 %v2172
      %v2288 = vpop.f32.mrb[0].mxu0
      %v2289 = vadd.f32 0.0, %v2288
      %v2290 = vpop.f32.mrb[0].mxu0
      %2291 = vdwg.mxu0
      %v2292 = vlaneseq
      %v2293 = vshrl.u32 %v2292, 7
      %v2294 = vsub.s32 0, %v2293
      %v2295 = vrot.slane %v2289, %v2294
      %v2296 = vadd.f32 %v2125, %v2295
      %v2297 = vadd.f32 %v2128, %v2295
      %v2298 = vadd.f32 %v2131, %v2295
      %v2299 = vadd.f32 %v2134, %v2295
      %v2300 = vadd.f32 %v2137, %v2295
      %v2301 = vadd.f32 %v2140, %v2295
      %v2302 = vadd.f32 %v2143, %v2295
      %v2303 = vadd.f32 %v2146, %v2295
      %v2304 = vadd.f32 %v2149, %v2295
      %v2305 = vadd.f32 %v2152, %v2295
      %v2306 = vadd.f32 %v2155, %v2295
      %v2307 = vadd.f32 %v2158, %v2295
      %v2308 = vadd.f32 %v2161, %v2295
      %v2309 = vadd.f32 %v2164, %v2295
      %v2310 = vadd.f32 %v2167, %v2295
      %v2311 = vadd.f32 %v2170, %v2295
      %vm2312 = vcmp.gt.f32.partialorder %v2296, 0.0
      %vm2313 = vcmp.gt.f32.partialorder %v2297, 0.0
      %vm2314 = vcmp.gt.f32.partialorder %v2298, 0.0
      %vm2315 = vcmp.gt.f32.partialorder %v2299, 0.0
      %vm2316 = vcmp.gt.f32.partialorder %v2300, 0.0
      %vm2317 = vcmp.gt.f32.partialorder %v2301, 0.0
      %vm2318 = vcmp.gt.f32.partialorder %v2302, 0.0
      %vm2319 = vcmp.gt.f32.partialorder %v2303, 0.0
      %vm2320 = vcmp.gt.f32.partialorder %v2304, 0.0
      %vm2321 = vcmp.gt.f32.partialorder %v2305, 0.0
      %vm2322 = vcmp.gt.f32.partialorder %v2306, 0.0
      %vm2323 = vcmp.gt.f32.partialorder %v2307, 0.0
      %vm2324 = vcmp.gt.f32.partialorder %v2308, 0.0
      %vm2325 = vcmp.gt.f32.partialorder %v2309, 0.0
      %vm2326 = vcmp.gt.f32.partialorder %v2310, 0.0
      %vm2327 = vcmp.gt.f32.partialorder %v2311, 0.0
      %v2328 = vmul.f32 %v2296, 0.2
      %v2329 = vmul.f32 %v2297, 0.2
      %v2330 = vmul.f32 %v2298, 0.2
      %v2331 = vmul.f32 %v2299, 0.2
      %v2332 = vmul.f32 %v2300, 0.2
      %v2333 = vmul.f32 %v2301, 0.2
      %v2334 = vmul.f32 %v2302, 0.2
      %v2335 = vmul.f32 %v2303, 0.2
      %v2336 = vmul.f32 %v2304, 0.2
      %v2337 = vmul.f32 %v2305, 0.2
      %v2338 = vmul.f32 %v2306, 0.2
      %v2339 = vmul.f32 %v2307, 0.2
      %v2340 = vmul.f32 %v2308, 0.2
      %v2341 = vmul.f32 %v2309, 0.2
      %v2342 = vmul.f32 %v2310, 0.2
      %v2343 = vmul.f32 %v2311, 0.2
      %v2344 = vsel %vm2312, %v2296, %v2328
      %v2345 = vsel %vm2313, %v2297, %v2329
      %v2346 = vsel %vm2314, %v2298, %v2330
      %v2347 = vsel %vm2315, %v2299, %v2331
      %v2348 = vsel %vm2316, %v2300, %v2332
      %v2349 = vsel %vm2317, %v2301, %v2333
      %v2350 = vsel %vm2318, %v2302, %v2334
      %v2351 = vsel %vm2319, %v2303, %v2335
      %v2352 = vsel %vm2320, %v2304, %v2336
      %v2353 = vsel %vm2321, %v2305, %v2337
      %v2354 = vsel %vm2322, %v2306, %v2338
      %v2355 = vsel %vm2323, %v2307, %v2339
      %v2356 = vsel %vm2324, %v2308, %v2340
      %v2357 = vsel %vm2325, %v2309, %v2341
      %v2358 = vsel %vm2326, %v2310, %v2342
      %v2359 = vsel %vm2327, %v2311, %v2343
      %v2360 = vsel %vm228, %v2344, -1e+30
      %v2361 = vsel %vm229, %v2345, -1e+30
      %v2362 = vsel %vm230, %v2346, -1e+30
      %v2363 = vsel %vm231, %v2347, -1e+30
      %v2364 = vsel %vm232, %v2348, -1e+30
      %v2365 = vsel %vm233, %v2349, -1e+30
      %v2366 = vsel %vm234, %v2350, -1e+30
      %v2367 = vsel %vm235, %v2351, -1e+30
      %v2368 = vsel %vm236, %v2352, -1e+30
      %v2369 = vsel %vm237, %v2353, -1e+30
      %v2370 = vsel %vm238, %v2354, -1e+30
      %v2371 = vsel %vm239, %v2355, -1e+30
      %v2372 = vsel %vm240, %v2356, -1e+30
      %v2373 = vsel %vm241, %v2357, -1e+30
      %v2374 = vsel %vm242, %v2358, -1e+30
      %v2375 = vsel %vm243, %v2359, -1e+30
      %2376 = vmax.xlane.f32.xlu0 %v2360
      %v2377 = vpop.xlane.xlu0 %2376
      %2378 = vmax.xlane.f32.xlu0 %v2361
      %v2379 = vpop.xlane.xlu0 %2378
      %2380 = vmax.xlane.f32.xlu0 %v2362
      %v2381 = vpop.xlane.xlu0 %2380
      %2382 = vmax.xlane.f32.xlu0 %v2363
      %v2383 = vpop.xlane.xlu0 %2382
      %2384 = vmax.xlane.f32.xlu0 %v2364
      %v2385 = vpop.xlane.xlu0 %2384
      %2386 = vmax.xlane.f32.xlu0 %v2365
      %v2387 = vpop.xlane.xlu0 %2386
      %2388 = vmax.xlane.f32.xlu0 %v2366
      %v2389 = vpop.xlane.xlu0 %2388
      %2390 = vmax.xlane.f32.xlu0 %v2367
      %v2391 = vpop.xlane.xlu0 %2390
      %2392 = vmax.xlane.f32.xlu0 %v2368
      %v2393 = vpop.xlane.xlu0 %2392
      %2394 = vmax.xlane.f32.xlu0 %v2369
      %v2395 = vpop.xlane.xlu0 %2394
      %2396 = vmax.xlane.f32.xlu0 %v2370
      %v2397 = vpop.xlane.xlu0 %2396
      %2398 = vmax.xlane.f32.xlu0 %v2371
      %v2399 = vpop.xlane.xlu0 %2398
      %2400 = vmax.xlane.f32.xlu0 %v2372
      %v2401 = vpop.xlane.xlu0 %2400
      %2402 = vmax.xlane.f32.xlu0 %v2373
      %v2403 = vpop.xlane.xlu0 %2402
      %2404 = vmax.xlane.f32.xlu0 %v2374
      %v2405 = vpop.xlane.xlu0 %2404
      %2406 = vmax.xlane.f32.xlu0 %v2375
      %v2407 = vpop.xlane.xlu0 %2406
      %v2408 = vsub.f32 %v2360, %v2377
      %v2409 = vsub.f32 %v2361, %v2379
      %v2410 = vsub.f32 %v2362, %v2381
      %v2411 = vsub.f32 %v2363, %v2383
      %v2412 = vsub.f32 %v2364, %v2385
      %v2413 = vsub.f32 %v2365, %v2387
      %v2414 = vsub.f32 %v2366, %v2389
      %v2415 = vsub.f32 %v2367, %v2391
      %v2416 = vsub.f32 %v2368, %v2393
      %v2417 = vsub.f32 %v2369, %v2395
      %v2418 = vsub.f32 %v2370, %v2397
      %v2419 = vsub.f32 %v2371, %v2399
      %v2420 = vsub.f32 %v2372, %v2401
      %v2421 = vsub.f32 %v2373, %v2403
      %v2422 = vsub.f32 %v2374, %v2405
      %v2423 = vsub.f32 %v2375, %v2407
      %v2424 = vmul.f32 %v2408, 1.442695
      %v2425 = vpow.pop %v2424
      %v2426 = vmul.f32 %v2409, 1.442695
      %v2427 = vpow.pop %v2426
      %v2428 = vmul.f32 %v2410, 1.442695
      %v2429 = vpow.pop %v2428
      %v2430 = vmul.f32 %v2411, 1.442695
      %v2431 = vpow.pop %v2430
      %v2432 = vmul.f32 %v2412, 1.442695
      %v2433 = vpow.pop %v2432
      %v2434 = vmul.f32 %v2413, 1.442695
      %v2435 = vpow.pop %v2434
      %v2436 = vmul.f32 %v2414, 1.442695
      %v2437 = vpow.pop %v2436
      %v2438 = vmul.f32 %v2415, 1.442695
      %v2439 = vpow.pop %v2438
      %v2440 = vmul.f32 %v2416, 1.442695
      %v2441 = vpow.pop %v2440
      %v2442 = vmul.f32 %v2417, 1.442695
      %v2443 = vpow.pop %v2442
      %v2444 = vmul.f32 %v2418, 1.442695
      %v2445 = vpow.pop %v2444
      %v2446 = vmul.f32 %v2419, 1.442695
      %v2447 = vpow.pop %v2446
      %v2448 = vmul.f32 %v2420, 1.442695
      %v2449 = vpow.pop %v2448
      %v2450 = vmul.f32 %v2421, 1.442695
      %v2451 = vpow.pop %v2450
      %v2452 = vmul.f32 %v2422, 1.442695
      %v2453 = vpow.pop %v2452
      %v2454 = vmul.f32 %v2423, 1.442695
      %v2455 = vpow.pop %v2454
      %2456 = vadd.xlane.f32.xlu0 %v2425
      %v2457 = vpop.xlane.xlu0 %2456
      %2458 = vadd.xlane.f32.xlu0 %v2427
      %v2459 = vpop.xlane.xlu0 %2458
      %2460 = vadd.xlane.f32.xlu0 %v2429
      %v2461 = vpop.xlane.xlu0 %2460
      %2462 = vadd.xlane.f32.xlu0 %v2431
      %v2463 = vpop.xlane.xlu0 %2462
      %2464 = vadd.xlane.f32.xlu0 %v2433
      %v2465 = vpop.xlane.xlu0 %2464
      %2466 = vadd.xlane.f32.xlu0 %v2435
      %v2467 = vpop.xlane.xlu0 %2466
      %2468 = vadd.xlane.f32.xlu0 %v2437
      %v2469 = vpop.xlane.xlu0 %2468
      %2470 = vadd.xlane.f32.xlu0 %v2439
      %v2471 = vpop.xlane.xlu0 %2470
      %2472 = vadd.xlane.f32.xlu0 %v2441
      %v2473 = vpop.xlane.xlu0 %2472
      %2474 = vadd.xlane.f32.xlu0 %v2443
      %v2475 = vpop.xlane.xlu0 %2474
      %2476 = vadd.xlane.f32.xlu0 %v2445
      %v2477 = vpop.xlane.xlu0 %2476
      %2478 = vadd.xlane.f32.xlu0 %v2447
      %v2479 = vpop.xlane.xlu0 %2478
      %2480 = vadd.xlane.f32.xlu0 %v2449
      %v2481 = vpop.xlane.xlu0 %2480
      %2482 = vadd.xlane.f32.xlu0 %v2451
      %v2483 = vpop.xlane.xlu0 %2482
      %2484 = vadd.xlane.f32.xlu0 %v2453
      %v2485 = vpop.xlane.xlu0 %2484
      %2486 = vadd.xlane.f32.xlu0 %v2455
      %v2487 = vpop.xlane.xlu0 %2486
      %v2488 = vrcp.pop %v2457
      %v2489 = vrcp.pop %v2459
      %v2490 = vrcp.pop %v2461
      %v2491 = vrcp.pop %v2463
      %v2492 = vrcp.pop %v2465
      %v2493 = vrcp.pop %v2467
      %v2494 = vrcp.pop %v2469
      %v2495 = vrcp.pop %v2471
      %v2496 = vrcp.pop %v2473
      %v2497 = vrcp.pop %v2475
      %v2498 = vrcp.pop %v2477
      %v2499 = vrcp.pop %v2479
      %v2500 = vrcp.pop %v2481
      %v2501 = vrcp.pop %v2483
      %v2502 = vrcp.pop %v2485
      %v2503 = vrcp.pop %v2487
      %v2504 = vmul.f32 %v2425, %v2488
      %v2505 = vmul.f32 %v2427, %v2489
      %v2506 = vmul.f32 %v2429, %v2490
      %v2507 = vmul.f32 %v2431, %v2491
      %v2508 = vmul.f32 %v2433, %v2492
      %v2509 = vmul.f32 %v2435, %v2493
      %v2510 = vmul.f32 %v2437, %v2494
      %v2511 = vmul.f32 %v2439, %v2495
      %v2512 = vmul.f32 %v2441, %v2496
      %v2513 = vmul.f32 %v2443, %v2497
      %v2514 = vmul.f32 %v2445, %v2498
      %v2515 = vmul.f32 %v2447, %v2499
      %v2516 = vmul.f32 %v2449, %v2500
      %v2517 = vmul.f32 %v2451, %v2501
      %v2518 = vmul.f32 %v2453, %v2502
      %v2519 = vmul.f32 %v2455, %v2503
      %v2520 = vlaneseq
      %v2521 = vshrl.u32 %v2520, 7
      %v2522 = vsub.s32 0, %v2521
      %v2523 = vrot.slane %v254, %v2522
      %2524 = vmatprep.subr.mxu0 0.0
      %2525 = vmatpush1.msra.mxu0 %v2024
      %2526 = vmatprep.subr.mxu0 0.0
      %2527 = vmatpush1.msra.mxu0 %v2029
      %2528 = vmatprep.subr.mxu0 0.0
      %2529 = vmatpush1.msra.mxu0 %v2034
      %2530 = vmatprep.subr.mxu0 0.0
      %2531 = vmatpush1.msra.mxu0 %v2039
      %2532 = vmatprep.subr.mxu0 0.0
      %2533 = vmatpush1.msra.mxu0 %v2044
      %2534 = vmatprep.subr.mxu0 0.0
      %2535 = vmatpush1.msra.mxu0 %v2049
      %2536 = vmatprep.subr.mxu0 0.0
      %2537 = vmatpush1.msra.mxu0 %v2054
      %2538 = vmatprep.subr.mxu0 0.0
      %2539 = vmatpush1.msra.mxu0 %v2059
      %2540 = vmatprep.subr.mxu0 0.0
      %2541 = vmatpush1.msra.mxu0 %v2064
      %2542 = vmatprep.subr.mxu0 0.0
      %2543 = vmatpush1.msra.mxu0 %v2069
      %2544 = vmatprep.subr.mxu0 0.0
      %2545 = vmatpush1.msra.mxu0 %v2074
      %2546 = vmatprep.subr.mxu0 0.0
      %2547 = vmatpush1.msra.mxu0 %v2079
      %2548 = vmatprep.subr.mxu0 0.0
      %2549 = vmatpush1.msra.mxu0 %v2084
      %2550 = vmatprep.subr.mxu0 0.0
      %2551 = vmatpush1.msra.mxu0 %v2089
      %2552 = vmatprep.subr.mxu0 0.0
      %2553 = vmatpush1.msra.mxu0 %v2094
      %2554 = vmatprep.subr.mxu0 0.0
      %2555 = vmatpush1.msra.mxu0 %v2099
      %2556 = vmatprep.subr.mxu0 0.0
      %2557 = vmatpush1.msra.mxu0 0.0
      %2558 = vmatprep.subr.mxu0 0.0
      %2559 = vmatpush1.msra.mxu0 0.0
      %2560 = vmatprep.subr.mxu0 0.0
      %2561 = vmatpush1.msra.mxu0 0.0
      %2562 = vmatprep.subr.mxu0 0.0
      %2563 = vmatpush1.msra.mxu0 0.0
      %2564 = vmatprep.subr.mxu0 0.0
      %2565 = vmatpush1.msra.mxu0 0.0
      %2566 = vmatprep.subr.mxu0 0.0
      %2567 = vmatpush1.msra.mxu0 0.0
      %2568 = vmatprep.subr.mxu0 0.0
      %2569 = vmatpush1.msra.mxu0 0.0
      %2570 = vmatprep.subr.mxu0 0.0
      %2571 = vmatpush1.msra.mxu0 0.0
      %2572 = vmatprep.subr.mxu0 0.0
      %2573 = vmatpush1.msra.mxu0 0.0
      %2574 = vmatprep.subr.mxu0 0.0
      %2575 = vmatpush1.msra.mxu0 0.0
      %2576 = vmatprep.subr.mxu0 0.0
      %2577 = vmatpush1.msra.mxu0 0.0
      %2578 = vmatprep.subr.mxu0 0.0
      %2579 = vmatpush1.msra.mxu0 0.0
      %2580 = vmatprep.subr.mxu0 0.0
      %2581 = vmatpush1.msra.mxu0 0.0
      %2582 = vmatprep.subr.mxu0 0.0
      %2583 = vmatpush1.msra.mxu0 0.0
      %2584 = vmatprep.subr.mxu0 0.0
      %2585 = vmatpush1.msra.mxu0 0.0
      %2586 = vmatprep.subr.mxu0 0.0
      %2587 = vmatpush1.msra.mxu0 0.0
      %2588 = vmatprep.mubr.f32.mxu0 0.0
      %2589 = vmatmul.mubr.f32.gmra.mrb[0].mxu0 %v2504
      %v2590 = vpop.f32.mrb[0].mxu0
      %v2591 = vadd.f32 %v2523, %v2590
      %v2592 = vpop.f32.mrb[0].mxu0
      %2593 = vmatprep.mubr.f32.mxu0 0.0
      %2594 = vmatmul.mubr.f32.gmra.mrb[0].mxu0 %v2505
      %v2595 = vpop.f32.mrb[0].mxu0
      %v2596 = vadd.f32 %v2523, %v2595
      %v2597 = vpop.f32.mrb[0].mxu0
      %2598 = vmatprep.mubr.f32.mxu0 0.0
      %2599 = vmatmul.mubr.f32.gmra.mrb[0].mxu0 %v2506
      %v2600 = vpop.f32.mrb[0].mxu0
      %v2601 = vadd.f32 %v2523, %v2600
      %v2602 = vpop.f32.mrb[0].mxu0
      %2603 = vmatprep.mubr.f32.mxu0 0.0
      %2604 = vmatmul.mubr.f32.gmra.mrb[0].mxu0 %v2507
      %v2605 = vpop.f32.mrb[0].mxu0
      %v2606 = vadd.f32 %v2523, %v2605
      %v2607 = vpop.f32.mrb[0].mxu0
      %2608 = vmatprep.mubr.f32.mxu0 0.0
      %2609 = vmatmul.mubr.f32.gmra.mrb[0].mxu0 %v2508
      %v2610 = vpop.f32.mrb[0].mxu0
      %v2611 = vadd.f32 %v2523, %v2610
      %v2612 = vpop.f32.mrb[0].mxu0
      %2613 = vmatprep.mubr.f32.mxu0 0.0
      %2614 = vmatmul.mubr.f32.gmra.mrb[0].mxu0 %v2509
      %v2615 = vpop.f32.mrb[0].mxu0
      %v2616 = vadd.f32 %v2523, %v2615
      %v2617 = vpop.f32.mrb[0].mxu0
      %2618 = vmatprep.mubr.f32.mxu0 0.0
      %2619 = vmatmul.mubr.f32.gmra.mrb[0].mxu0 %v2510
      %v2620 = vpop.f32.mrb[0].mxu0
      %v2621 = vadd.f32 %v2523, %v2620
      %v2622 = vpop.f32.mrb[0].mxu0
      %2623 = vmatprep.mubr.f32.mxu0 0.0
      %2624 = vmatmul.mubr.f32.gmra.mrb[0].mxu0 %v2511
      %v2625 = vpop.f32.mrb[0].mxu0
      %v2626 = vadd.f32 %v2523, %v2625
      %v2627 = vpop.f32.mrb[0].mxu0
      %2628 = vmatprep.mubr.f32.mxu0 0.0
      %2629 = vmatmul.mubr.f32.gmra.mrb[0].mxu0 %v2512
      %v2630 = vpop.f32.mrb[0].mxu0
      %v2631 = vadd.f32 %v2523, %v2630
      %v2632 = vpop.f32.mrb[0].mxu0
      %2633 = vmatprep.mubr.f32.mxu0 0.0
      %2634 = vmatmul.mubr.f32.gmra.mrb[0].mxu0 %v2513
      %v2635 = vpop.f32.mrb[0].mxu0
      %v2636 = vadd.f32 %v2523, %v2635
      %v2637 = vpop.f32.mrb[0].mxu0
      %2638 = vmatprep.mubr.f32.mxu0 0.0
      %2639 = vmatmul.mubr.f32.gmra.mrb[0].mxu0 %v2514
      %v2640 = vpop.f32.mrb[0].mxu0
      %v2641 = vadd.f32 %v2523, %v2640
      %v2642 = vpop.f32.mrb[0].mxu0
      %2643 = vmatprep.mubr.f32.mxu0 0.0
      %2644 = vmatmul.mubr.f32.gmra.mrb[0].mxu0 %v2515
      %v2645 = vpop.f32.mrb[0].mxu0
      %v2646 = vadd.f32 %v2523, %v2645
      %v2647 = vpop.f32.mrb[0].mxu0
      %2648 = vmatprep.mubr.f32.mxu0 0.0
      %2649 = vmatmul.mubr.f32.gmra.mrb[0].mxu0 %v2516
      %v2650 = vpop.f32.mrb[0].mxu0
      %v2651 = vadd.f32 %v2523, %v2650
      %v2652 = vpop.f32.mrb[0].mxu0
      %2653 = vmatprep.mubr.f32.mxu0 0.0
      %2654 = vmatmul.mubr.f32.gmra.mrb[0].mxu0 %v2517
      %v2655 = vpop.f32.mrb[0].mxu0
      %v2656 = vadd.f32 %v2523, %v2655
      %v2657 = vpop.f32.mrb[0].mxu0
      %2658 = vmatprep.mubr.f32.mxu0 0.0
      %2659 = vmatmul.mubr.f32.gmra.mrb[0].mxu0 %v2518
      %v2660 = vpop.f32.mrb[0].mxu0
      %v2661 = vadd.f32 %v2523, %v2660
      %v2662 = vpop.f32.mrb[0].mxu0
      %2663 = vmatprep.mubr.f32.mxu0 0.0
      %2664 = vmatmul.mubr.f32.gmra.mrb[0].mxu0 %v2519
      %v2665 = vpop.f32.mrb[0].mxu0
      %v2666 = vadd.f32 %v2523, %v2665
      %v2667 = vpop.f32.mrb[0].mxu0
      %2668 = vdwg.mxu0
      %vm2669 = vcmp.gt.f32.partialorder %v2591, 0.0
      %vm2670 = vcmp.gt.f32.partialorder %v2596, 0.0
      %vm2671 = vcmp.gt.f32.partialorder %v2601, 0.0
      %vm2672 = vcmp.gt.f32.partialorder %v2606, 0.0
      %vm2673 = vcmp.gt.f32.partialorder %v2611, 0.0
      %vm2674 = vcmp.gt.f32.partialorder %v2616, 0.0
      %vm2675 = vcmp.gt.f32.partialorder %v2621, 0.0
      %vm2676 = vcmp.gt.f32.partialorder %v2626, 0.0
      %vm2677 = vcmp.gt.f32.partialorder %v2631, 0.0
      %vm2678 = vcmp.gt.f32.partialorder %v2636, 0.0
      %vm2679 = vcmp.gt.f32.partialorder %v2641, 0.0
      %vm2680 = vcmp.gt.f32.partialorder %v2646, 0.0
      %vm2681 = vcmp.gt.f32.partialorder %v2651, 0.0
      %vm2682 = vcmp.gt.f32.partialorder %v2656, 0.0
      %vm2683 = vcmp.gt.f32.partialorder %v2661, 0.0
      %vm2684 = vcmp.gt.f32.partialorder %v2666, 0.0
      %v2685 = vmul.f32 %v2591, 1.442695
      %v2686 = vpow.pop %v2685
      %v2687 = vmul.f32 %v2596, 1.442695
      %v2688 = vpow.pop %v2687
      %v2689 = vmul.f32 %v2601, 1.442695
      %v2690 = vpow.pop %v2689
      %v2691 = vmul.f32 %v2606, 1.442695
      %v2692 = vpow.pop %v2691
      %v2693 = vmul.f32 %v2611, 1.442695
      %v2694 = vpow.pop %v2693
      %v2695 = vmul.f32 %v2616, 1.442695
      %v2696 = vpow.pop %v2695
      %v2697 = vmul.f32 %v2621, 1.442695
      %v2698 = vpow.pop %v2697
      %v2699 = vmul.f32 %v2626, 1.442695
      %v2700 = vpow.pop %v2699
      %v2701 = vmul.f32 %v2631, 1.442695
      %v2702 = vpow.pop %v2701
      %v2703 = vmul.f32 %v2636, 1.442695
      %v2704 = vpow.pop %v2703
      %v2705 = vmul.f32 %v2641, 1.442695
      %v2706 = vpow.pop %v2705
      %v2707 = vmul.f32 %v2646, 1.442695
      %v2708 = vpow.pop %v2707
      %v2709 = vmul.f32 %v2651, 1.442695
      %v2710 = vpow.pop %v2709
      %v2711 = vmul.f32 %v2656, 1.442695
      %v2712 = vpow.pop %v2711
      %v2713 = vmul.f32 %v2661, 1.442695
      %v2714 = vpow.pop %v2713
      %v2715 = vmul.f32 %v2666, 1.442695
      %v2716 = vpow.pop %v2715
      %v2717 = vsub.f32 %v2686, 1.0
      %v2718 = vsub.f32 %v2688, 1.0
      %v2719 = vsub.f32 %v2690, 1.0
      %v2720 = vsub.f32 %v2692, 1.0
      %v2721 = vsub.f32 %v2694, 1.0
      %v2722 = vsub.f32 %v2696, 1.0
      %v2723 = vsub.f32 %v2698, 1.0
      %v2724 = vsub.f32 %v2700, 1.0
      %v2725 = vsub.f32 %v2702, 1.0
      %v2726 = vsub.f32 %v2704, 1.0
      %v2727 = vsub.f32 %v2706, 1.0
      %v2728 = vsub.f32 %v2708, 1.0
      %v2729 = vsub.f32 %v2710, 1.0
      %v2730 = vsub.f32 %v2712, 1.0
      %v2731 = vsub.f32 %v2714, 1.0
      %v2732 = vsub.f32 %v2716, 1.0
      %v2733 = vsel %vm2669, %v2591, %v2717
      %v2734 = vsel %vm2670, %v2596, %v2718
      %v2735 = vsel %vm2671, %v2601, %v2719
      %v2736 = vsel %vm2672, %v2606, %v2720
      %v2737 = vsel %vm2673, %v2611, %v2721
      %v2738 = vsel %vm2674, %v2616, %v2722
      %v2739 = vsel %vm2675, %v2621, %v2723
      %v2740 = vsel %vm2676, %v2626, %v2724
      %v2741 = vsel %vm2677, %v2631, %v2725
      %v2742 = vsel %vm2678, %v2636, %v2726
      %v2743 = vsel %vm2679, %v2641, %v2727
      %v2744 = vsel %vm2680, %v2646, %v2728
      %v2745 = vsel %vm2681, %v2651, %v2729
      %v2746 = vsel %vm2682, %v2656, %v2730
      %v2747 = vsel %vm2683, %v2661, %v2731
      %v2748 = vsel %vm2684, %v2666, %v2732
      %v2749 = vlaneseq
      %v2750 = vshrl.u32 %v2749, 7
      %v2751 = vsub.s32 0, %v2750
      %v2752 = vrot.slane %v255, %v2751
      %v2754 = vsel %vm2122, %v2733, 0
      %v2757 = vsel %vm2122, %v2734, 0
      %v2760 = vsel %vm2122, %v2735, 0
      %v2763 = vsel %vm2122, %v2736, 0
      %v2766 = vsel %vm2122, %v2737, 0
      %v2769 = vsel %vm2122, %v2738, 0
      %v2772 = vsel %vm2122, %v2739, 0
      %v2775 = vsel %vm2122, %v2740, 0
      %v2778 = vsel %vm2122, %v2741, 0
      %v2781 = vsel %vm2122, %v2742, 0
      %v2784 = vsel %vm2122, %v2743, 0
      %v2787 = vsel %vm2122, %v2744, 0
      %v2790 = vsel %vm2122, %v2745, 0
      %v2793 = vsel %vm2122, %v2746, 0
      %v2796 = vsel %vm2122, %v2747, 0
      %v2799 = vsel %vm2122, %v2748, 0
      %vm2801 = vcmask 1043456
      %v2803 = vsel %vm2801, %v256, 0
      %2805 = vmatprep.subr.mxu0 0.0
      %2806 = vmatpush1.msra.mxu0 %v2803
      %2807 = vmatprep.subr.mxu0 0.0
      %2808 = vmatpush1.msra.mxu0 0.0
      %2809 = vmatprep.subr.mxu0 0.0
      %2810 = vmatpush1.msra.mxu0 0.0
      %2811 = vmatprep.subr.mxu0 0.0
      %2812 = vmatpush1.msra.mxu0 0.0
      %2813 = vmatprep.subr.mxu0 0.0
      %2814 = vmatpush1.msra.mxu0 0.0
      %2815 = vmatprep.subr.mxu0 0.0
      %2816 = vmatpush1.msra.mxu0 0.0
      %2817 = vmatprep.subr.mxu0 0.0
      %2818 = vmatpush1.msra.mxu0 0.0
      %2819 = vmatprep.subr.mxu0 0.0
      %2820 = vmatpush1.msra.mxu0 0.0
      %2821 = vmatprep.subr.mxu0 0.0
      %2822 = vmatpush1.msra.mxu0 0.0
      %2823 = vmatprep.subr.mxu0 0.0
      %2824 = vmatpush1.msra.mxu0 0.0
      %2825 = vmatprep.subr.mxu0 0.0
      %2826 = vmatpush1.msra.mxu0 0.0
      %2827 = vmatprep.subr.mxu0 0.0
      %2828 = vmatpush1.msra.mxu0 0.0
      %2829 = vmatprep.subr.mxu0 0.0
      %2830 = vmatpush1.msra.mxu0 0.0
      %2831 = vmatprep.subr.mxu0 0.0
      %2832 = vmatpush1.msra.mxu0 0.0
      %2833 = vmatprep.subr.mxu0 0.0
      %2834 = vmatpush1.msra.mxu0 0.0
      %2835 = vmatprep.subr.mxu0 0.0
      %2836 = vmatpush1.msra.mxu0 0.0
      %2837 = vmatprep.subr.mxu0 0.0
      %2838 = vmatpush1.msra.mxu0 0.0
      %2839 = vmatprep.subr.mxu0 0.0
      %2840 = vmatpush1.msra.mxu0 0.0
      %2841 = vmatprep.subr.mxu0 0.0
      %2842 = vmatpush1.msra.mxu0 0.0
      %2843 = vmatprep.subr.mxu0 0.0
      %2844 = vmatpush1.msra.mxu0 0.0
      %2845 = vmatprep.subr.mxu0 0.0
      %2846 = vmatpush1.msra.mxu0 0.0
      %2847 = vmatprep.subr.mxu0 0.0
      %2848 = vmatpush1.msra.mxu0 0.0
      %2849 = vmatprep.subr.mxu0 0.0
      %2850 = vmatpush1.msra.mxu0 0.0
      %2851 = vmatprep.subr.mxu0 0.0
      %2852 = vmatpush1.msra.mxu0 0.0
      %2853 = vmatprep.subr.mxu0 0.0
      %2854 = vmatpush1.msra.mxu0 0.0
      %2855 = vmatprep.subr.mxu0 0.0
      %2856 = vmatpush1.msra.mxu0 0.0
      %2857 = vmatprep.subr.mxu0 0.0
      %2858 = vmatpush1.msra.mxu0 0.0
      %2859 = vmatprep.subr.mxu0 0.0
      %2860 = vmatpush1.msra.mxu0 0.0
      %2861 = vmatprep.subr.mxu0 0.0
      %2862 = vmatpush1.msra.mxu0 0.0
      %2863 = vmatprep.subr.mxu0 0.0
      %2864 = vmatpush1.msra.mxu0 0.0
      %2865 = vmatprep.subr.mxu0 0.0
      %2866 = vmatpush1.msra.mxu0 0.0
      %2867 = vmatprep.subr.mxu0 0.0
      %2868 = vmatpush1.msra.mxu0 0.0
      %2869 = vmatprep.mubr.f32.mxu0 0.0
      %2870 = vmatmul.mubr.f32.gmra.mrb[0].mxu0 %v2754
      %v2871 = vpop.f32.mrb[0].mxu0
      %v2872 = vadd.f32 %v2752, %v2871
      %v2873 = vpop.f32.mrb[0].mxu0
      %2874 = vmatprep.mubr.f32.mxu0 0.0
      %2875 = vmatmul.mubr.f32.gmra.mrb[0].mxu0 %v2757
      %v2876 = vpop.f32.mrb[0].mxu0
      %v2877 = vadd.f32 %v2752, %v2876
      %v2878 = vpop.f32.mrb[0].mxu0
      %2879 = vmatprep.mubr.f32.mxu0 0.0
      %2880 = vmatmul.mubr.f32.gmra.mrb[0].mxu0 %v2760
      %v2881 = vpop.f32.mrb[0].mxu0
      %v2882 = vadd.f32 %v2752, %v2881
      %v2883 = vpop.f32.mrb[0].mxu0
      %2884 = vmatprep.mubr.f32.mxu0 0.0
      %2885 = vmatmul.mubr.f32.gmra.mrb[0].mxu0 %v2763
      %v2886 = vpop.f32.mrb[0].mxu0
      %v2887 = vadd.f32 %v2752, %v2886
      %v2888 = vpop.f32.mrb[0].mxu0
      %2889 = vmatprep.mubr.f32.mxu0 0.0
      %2890 = vmatmul.mubr.f32.gmra.mrb[0].mxu0 %v2766
      %v2891 = vpop.f32.mrb[0].mxu0
      %v2892 = vadd.f32 %v2752, %v2891
      %v2893 = vpop.f32.mrb[0].mxu0
      %2894 = vmatprep.mubr.f32.mxu0 0.0
      %2895 = vmatmul.mubr.f32.gmra.mrb[0].mxu0 %v2769
      %v2896 = vpop.f32.mrb[0].mxu0
      %v2897 = vadd.f32 %v2752, %v2896
      %v2898 = vpop.f32.mrb[0].mxu0
      %2899 = vmatprep.mubr.f32.mxu0 0.0
      %2900 = vmatmul.mubr.f32.gmra.mrb[0].mxu0 %v2772
      %v2901 = vpop.f32.mrb[0].mxu0
      %v2902 = vadd.f32 %v2752, %v2901
      %v2903 = vpop.f32.mrb[0].mxu0
      %2904 = vmatprep.mubr.f32.mxu0 0.0
      %2905 = vmatmul.mubr.f32.gmra.mrb[0].mxu0 %v2775
      %v2906 = vpop.f32.mrb[0].mxu0
      %v2907 = vadd.f32 %v2752, %v2906
      %v2908 = vpop.f32.mrb[0].mxu0
      %2909 = vmatprep.mubr.f32.mxu0 0.0
      %2910 = vmatmul.mubr.f32.gmra.mrb[0].mxu0 %v2778
      %v2911 = vpop.f32.mrb[0].mxu0
      %v2912 = vadd.f32 %v2752, %v2911
      %v2913 = vpop.f32.mrb[0].mxu0
      %2914 = vmatprep.mubr.f32.mxu0 0.0
      %2915 = vmatmul.mubr.f32.gmra.mrb[0].mxu0 %v2781
      %v2916 = vpop.f32.mrb[0].mxu0
      %v2917 = vadd.f32 %v2752, %v2916
      %v2918 = vpop.f32.mrb[0].mxu0
      %2919 = vmatprep.mubr.f32.mxu0 0.0
      %2920 = vmatmul.mubr.f32.gmra.mrb[0].mxu0 %v2784
      %v2921 = vpop.f32.mrb[0].mxu0
      %v2922 = vadd.f32 %v2752, %v2921
      %v2923 = vpop.f32.mrb[0].mxu0
      %2924 = vmatprep.mubr.f32.mxu0 0.0
      %2925 = vmatmul.mubr.f32.gmra.mrb[0].mxu0 %v2787
      %v2926 = vpop.f32.mrb[0].mxu0
      %v2927 = vadd.f32 %v2752, %v2926
      %v2928 = vpop.f32.mrb[0].mxu0
      %2929 = vmatprep.mubr.f32.mxu0 0.0
      %2930 = vmatmul.mubr.f32.gmra.mrb[0].mxu0 %v2790
      %v2931 = vpop.f32.mrb[0].mxu0
      %v2932 = vadd.f32 %v2752, %v2931
      %v2933 = vpop.f32.mrb[0].mxu0
      %2934 = vmatprep.mubr.f32.mxu0 0.0
      %2935 = vmatmul.mubr.f32.gmra.mrb[0].mxu0 %v2793
      %v2936 = vpop.f32.mrb[0].mxu0
      %v2937 = vadd.f32 %v2752, %v2936
      %v2938 = vpop.f32.mrb[0].mxu0
      %2939 = vmatprep.mubr.f32.mxu0 0.0
      %2940 = vmatmul.mubr.f32.gmra.mrb[0].mxu0 %v2796
      %v2941 = vpop.f32.mrb[0].mxu0
      %v2942 = vadd.f32 %v2752, %v2941
      %v2943 = vpop.f32.mrb[0].mxu0
      %2944 = vmatprep.mubr.f32.mxu0 0.0
      %2945 = vmatmul.mubr.f32.gmra.mrb[0].mxu0 %v2799
      %v2946 = vpop.f32.mrb[0].mxu0
      %v2947 = vadd.f32 %v2752, %v2946
      %v2948 = vpop.f32.mrb[0].mxu0
      %2949 = vdwg.mxu0
      %v2950 = vsub.f32 0.0, %v2872
      %v2951 = vsub.f32 0.0, %v2877
      %v2952 = vsub.f32 0.0, %v2882
      %v2953 = vsub.f32 0.0, %v2887
      %v2954 = vsub.f32 0.0, %v2892
      %v2955 = vsub.f32 0.0, %v2897
      %v2956 = vsub.f32 0.0, %v2902
      %v2957 = vsub.f32 0.0, %v2907
      %v2958 = vsub.f32 0.0, %v2912
      %v2959 = vsub.f32 0.0, %v2917
      %v2960 = vsub.f32 0.0, %v2922
      %v2961 = vsub.f32 0.0, %v2927
      %v2962 = vsub.f32 0.0, %v2932
      %v2963 = vsub.f32 0.0, %v2937
      %v2964 = vsub.f32 0.0, %v2942
      %v2965 = vsub.f32 0.0, %v2947
      %v2966 = vmul.f32 %v2950, 1.442695
      %v2967 = vpow.pop %v2966
      %v2968 = vmul.f32 %v2951, 1.442695
      %v2969 = vpow.pop %v2968
      %v2970 = vmul.f32 %v2952, 1.442695
      %v2971 = vpow.pop %v2970
      %v2972 = vmul.f32 %v2953, 1.442695
      %v2973 = vpow.pop %v2972
      %v2974 = vmul.f32 %v2954, 1.442695
      %v2975 = vpow.pop %v2974
      %v2976 = vmul.f32 %v2955, 1.442695
      %v2977 = vpow.pop %v2976
      %v2978 = vmul.f32 %v2956, 1.442695
      %v2979 = vpow.pop %v2978
      %v2980 = vmul.f32 %v2957, 1.442695
      %v2981 = vpow.pop %v2980
      %v2982 = vmul.f32 %v2958, 1.442695
      %v2983 = vpow.pop %v2982
      %v2984 = vmul.f32 %v2959, 1.442695
      %v2985 = vpow.pop %v2984
      %v2986 = vmul.f32 %v2960, 1.442695
      %v2987 = vpow.pop %v2986
      %v2988 = vmul.f32 %v2961, 1.442695
      %v2989 = vpow.pop %v2988
      %v2990 = vmul.f32 %v2962, 1.442695
      %v2991 = vpow.pop %v2990
      %v2992 = vmul.f32 %v2963, 1.442695
      %v2993 = vpow.pop %v2992
      %v2994 = vmul.f32 %v2964, 1.442695
      %v2995 = vpow.pop %v2994
      %v2996 = vmul.f32 %v2965, 1.442695
      %v2997 = vpow.pop %v2996
      %v2998 = vadd.f32 %v2967, 1.0
      %v2999 = vadd.f32 %v2969, 1.0
      %v3000 = vadd.f32 %v2971, 1.0
      %v3001 = vadd.f32 %v2973, 1.0
      %v3002 = vadd.f32 %v2975, 1.0
      %v3003 = vadd.f32 %v2977, 1.0
      %v3004 = vadd.f32 %v2979, 1.0
      %v3005 = vadd.f32 %v2981, 1.0
      %v3006 = vadd.f32 %v2983, 1.0
      %v3007 = vadd.f32 %v2985, 1.0
      %v3008 = vadd.f32 %v2987, 1.0
      %v3009 = vadd.f32 %v2989, 1.0
      %v3010 = vadd.f32 %v2991, 1.0
      %v3011 = vadd.f32 %v2993, 1.0
      %v3012 = vadd.f32 %v2995, 1.0
      %v3013 = vadd.f32 %v2997, 1.0
      %v3014 = vrcp.pop %v2998
      %v3015 = vrcp.pop %v2999
      %v3016 = vrcp.pop %v3000
      %v3017 = vrcp.pop %v3001
      %v3018 = vrcp.pop %v3002
      %v3019 = vrcp.pop %v3003
      %v3020 = vrcp.pop %v3004
      %v3021 = vrcp.pop %v3005
      %v3022 = vrcp.pop %v3006
      %v3023 = vrcp.pop %v3007
      %v3024 = vrcp.pop %v3008
      %v3025 = vrcp.pop %v3009
      %v3026 = vrcp.pop %v3010
      %v3027 = vrcp.pop %v3011
      %v3028 = vrcp.pop %v3012
      %v3029 = vrcp.pop %v3013
      %3030 = vrot.lane.b32.xlu0 %v2733, 4
      %v3031 = vpop.permute.xlu0 %3030
      %3032 = vrot.lane.b32.xlu0 %v2734, 4
      %v3033 = vpop.permute.xlu0 %3032
      %3034 = vrot.lane.b32.xlu0 %v2735, 4
      %v3035 = vpop.permute.xlu0 %3034
      %3036 = vrot.lane.b32.xlu0 %v2736, 4
      %v3037 = vpop.permute.xlu0 %3036
      %3038 = vrot.lane.b32.xlu0 %v2737, 4
      %v3039 = vpop.permute.xlu0 %3038
      %3040 = vrot.lane.b32.xlu0 %v2738, 4
      %v3041 = vpop.permute.xlu0 %3040
      %3042 = vrot.lane.b32.xlu0 %v2739, 4
      %v3043 = vpop.permute.xlu0 %3042
      %3044 = vrot.lane.b32.xlu0 %v2740, 4
      %v3045 = vpop.permute.xlu0 %3044
      %3046 = vrot.lane.b32.xlu0 %v2741, 4
      %v3047 = vpop.permute.xlu0 %3046
      %3048 = vrot.lane.b32.xlu0 %v2742, 4
      %v3049 = vpop.permute.xlu0 %3048
      %3050 = vrot.lane.b32.xlu0 %v2743, 4
      %v3051 = vpop.permute.xlu0 %3050
      %3052 = vrot.lane.b32.xlu0 %v2744, 4
      %v3053 = vpop.permute.xlu0 %3052
      %3054 = vrot.lane.b32.xlu0 %v2745, 4
      %v3055 = vpop.permute.xlu0 %3054
      %3056 = vrot.lane.b32.xlu0 %v2746, 4
      %v3057 = vpop.permute.xlu0 %3056
      %3058 = vrot.lane.b32.xlu0 %v2747, 4
      %v3059 = vpop.permute.xlu0 %3058
      %3060 = vrot.lane.b32.xlu0 %v2748, 4
      %v3061 = vpop.permute.xlu0 %3060
      %v3078 = vsel %vm2122, %v3014, %v3031
      %v3079 = vsel %vm2122, %v3015, %v3033
      %v3080 = vsel %vm2122, %v3016, %v3035
      %v3081 = vsel %vm2122, %v3017, %v3037
      %v3082 = vsel %vm2122, %v3018, %v3039
      %v3083 = vsel %vm2122, %v3019, %v3041
      %v3084 = vsel %vm2122, %v3020, %v3043
      %v3085 = vsel %vm2122, %v3021, %v3045
      %v3086 = vsel %vm2122, %v3022, %v3047
      %v3087 = vsel %vm2122, %v3023, %v3049
      %v3088 = vsel %vm2122, %v3024, %v3051
      %v3089 = vsel %vm2122, %v3025, %v3053
      %v3090 = vsel %vm2122, %v3026, %v3055
      %v3091 = vsel %vm2122, %v3027, %v3057
      %v3092 = vsel %vm2122, %v3028, %v3059
      %v3093 = vsel %vm2122, %v3029, %v3061
      %3094 = vst.msk [vmem:[%s194] sm:$0xff] %vm257, %v3078
      %3095 = vst.msk [vmem:[%s194 + $0x8] sm:$0xff] %vm257, %v3079
      %3096 = vst.msk [vmem:[%s194 + $0x10] sm:$0xff] %vm257, %v3080
      %3097 = vst.msk [vmem:[%s194 + $0x18] sm:$0xff] %vm257, %v3081
      %3098 = vst.msk [vmem:[%s194 + $0x20] sm:$0xff] %vm257, %v3082
      %3099 = vst.msk [vmem:[%s194 + $0x28] sm:$0xff] %vm257, %v3083
      %3100 = vst.msk [vmem:[%s194 + $0x30] sm:$0xff] %vm257, %v3084
      %3101 = vst.msk [vmem:[%s194 + $0x38] sm:$0xff] %vm257, %v3085
      %3102 = vst.msk [vmem:[%s194 + $0x40] sm:$0xff] %vm257, %v3086
      %3103 = vst.msk [vmem:[%s194 + $0x48] sm:$0xff] %vm257, %v3087
      %3104 = vst.msk [vmem:[%s194 + $0x50] sm:$0xff] %vm257, %v3088
      %3105 = vst.msk [vmem:[%s194 + $0x58] sm:$0xff] %vm257, %v3089
      %3106 = vst.msk [vmem:[%s194 + $0x60] sm:$0xff] %vm257, %v3090
      %3107 = vst.msk [vmem:[%s194 + $0x68] sm:$0xff] %vm257, %v3091
      %3108 = vst.msk [vmem:[%s194 + $0x70] sm:$0xff] %vm257, %v3092
      %3109 = vst.msk [vmem:[%s194 + $0x78] sm:$0xff] %vm257, %v3093
      %s3110 = smul.u32 16, %s14
      %p3111 = scmp.lt.s32.totalorder %s3110, 63
      %s3112 = scalar_select %p3111, %s3110, 63
      %s3113 = smul.addr %s3112, 8
      %s3114 = scalar_lea.vmem %s3, %s3113
      // Predicated region
      $region33: #{gat_forward.1} parent=31 // pred_check
        %p3115 = pneg %p105
      $region34: #{gat_forward.1} parent=31 // pred_check_branch
        %3117 = sbr.rel (%p3115) target = $region36
      $region35: #{gat_forward.1} parent=31 // pred_region
        %s3118 = smul.u32 16, %s14
      $region36: #{gat_forward.1} parent=31 // pred_fallthru
        _
    $region32: #{gat_forward.1} parent=5 // pred_fallthru
      _
    %p3119 = scmp.le.s32.totalorder 2, %s9
    // Predicated region
    $region37: #{gat_forward.1} parent=5 // pred_check
      %p3120 = pneg %p3119
    $region38: #{gat_forward.1} parent=5 // pred_check_branch
      %3122 = sbr.rel (%p3120) target = $region40
    $region39: #{gat_forward.1} parent=5 // pred_region
      %s3123 = ssub.s32 %s9, 2
      // Predicated region
      $region41: #{gat_forward.1} parent=39 // pred_check
        %p3124 = pneg %p111
      $region42: #{gat_forward.1} parent=39 // pred_check_branch
        %3126 = sbr.rel (%p3124) target = $region44
      $region43: #{gat_forward.1} parent=39 // pred_region
        %s3127 = smul.u32 16, %s15
        %p3128 = scmp.lt.s32.totalorder %s3127, 63
        %s3129 = scalar_select %p3128, %s3127, 63
        %s3130 = smul.addr %s3129, 8
        %s3131 = scalar_lea.vmem %s3, %s3130
      $region44: #{gat_forward.1} parent=39 // pred_fallthru
        _
    $region40: #{gat_forward.1} parent=5 // pred_fallthru
      _
  $region6: #{gat_forward.1} parent=0 // loop_footer
    %s13 = sadd.s32 1, %s9
  $region7: #{gat_forward.1} parent=0 // loop_footer_branch
    %8 = sbr.rel target = $region3
  $region8: #{gat_forward.1} parent=0 // loop_exit
    _

</llo_original>
